<compile_context>
chip_gen: v5e
topology: v5e:2x2
jax: 0.10.0
libtpu: 0.0.40
codegen_flags: <defaults>
</compile_context>

<pallas_src>
import functools

import jax
import jax.numpy as jnp
import numpy as np
from jax.experimental import pallas as pl
from jax.experimental.pallas import tpu as pltpu


def _round_up(n, m):
    return -(-n // m) * m


# ----------------------------------------------------------------------------------
# Kernel
# ----------------------------------------------------------------------------------
def _eprop_kernel(
    # inputs
    x_ref, h_ref,
    wx_ref, wh_ref, whn_ref, bgr_ref, bpo_ref,
    rep_i_ref, rep_h_ref, tile_i_ref, tile_h_ref,
    ewgx_ref, ewgh_ref, ebg_ref, ewrx_ref, ewrh_ref, ebr_ref,
    # outputs
    out_ref, hnew_ref,
    ewgx_o, ewgh_o, ebg_o, ewrx_o, ewrh_o, ebr_o,
    hg_ref,
    *, hidden, outputs,
):
    H, O = hidden, outputs
    f32 = jnp.float32
    x = x_ref[...]
    h_last = h_ref[...]

    # ---- fused projections: 3 MXU matmuls instead of 8 ----
    xp = jnp.dot(x, wx_ref[...], preferred_element_type=f32)        # (TB, 2H+2O)
    hp = jnp.dot(h_last, wh_ref[...], preferred_element_type=f32)   # (TB, 2H)

    gr = jnp.tanh(xp[:, :2 * H] + hp + bgr_ref[...])   # one tanh stream for g and r
    g = jnp.maximum(gr[:, :H], 0.0)
    r = gr[:, H:]

    # ---- state update ----
    h = g * r + (1.0 - g) * h_last
    # H_g = clamp(ceil(g), 0, 1) == 1[g > 0] since g = relu(tanh(.)) in [0, 1)
    H_g = jnp.where(g > 0.0, 1.0, 0.0)

    one_m_g = 1.0 - g
    coef_g = (1.0 - g * g) * H_g * (r - h_last)     # dg * delta_h   (TB, H)
    coef_r = (1.0 - r * r) * g                      # dr * g         (TB, H)

    # ---- expand the per-gate / per-input factors to the lane-dense flat trace layout
    #      (col = j*I + i  /  j*H + k) on the otherwise-idle MXU ----
    rep_i = rep_i_ref[...]                                           # (H, H*I)
    rep_h = rep_h_ref[...]                                           # (H, H*H)
    omg_i = jnp.dot(one_m_g, rep_i, preferred_element_type=f32)      # (TB, H*I)
    omg_h = jnp.dot(one_m_g, rep_h, preferred_element_type=f32)      # (TB, H*H)
    cg_i = jnp.dot(coef_g, rep_i, preferred_element_type=f32)
    cg_h = jnp.dot(coef_g, rep_h, preferred_element_type=f32)
    cr_i = jnp.dot(coef_r, rep_i, preferred_element_type=f32)
    cr_h = jnp.dot(coef_r, rep_h, preferred_element_type=f32)
    x_t = jnp.dot(x, tile_i_ref[...], preferred_element_type=f32)       # x[b,i]      -> (TB, H*I)
    h_t = jnp.dot(h_last, tile_h_ref[...], preferred_element_type=f32)  # h_last[b,k] -> (TB, H*H)

    # ---- eligibility-trace updates (in place via input_output_aliases) ----
    tdt = ewgx_o.dtype   # trace storage dtype: float32 or bfloat16
    ewgx_o[...] = (ewgx_ref[...].astype(f32) * omg_i + cg_i * x_t).astype(tdt)
    ewgh_o[...] = (ewgh_ref[...].astype(f32) * omg_h + cg_h * h_t).astype(tdt)
    ebg_o[...] = (ebg_ref[...].astype(f32) * one_m_g + coef_g).astype(tdt)
    ewrx_o[...] = (ewrx_ref[...].astype(f32) * omg_i + cr_i * x_t).astype(tdt)
    ewrh_o[...] = (ewrh_ref[...].astype(f32) * omg_h + cr_h * h_t).astype(tdt)
    ebr_o[...] = (ebr_ref[...].astype(f32) * one_m_g + coef_r).astype(tdt)

    # ---- output heads (use the NEW hidden state h) ----
    hnp = jnp.dot(h, whn_ref[...], preferred_element_type=f32)      # (TB, 2O)
    po = xp[:, 2 * H:] + hnp + bpo_ref[...]
    p = jnp.tanh(po[:, :O])
    o = jax.nn.sigmoid(po[:, O:])

    out_ref[...] = o * p
    hnew_ref[...] = h
    hg_ref[...] = H_g


# ----------------------------------------------------------------------------------
# One-time parameter / trace preparation
# ----------------------------------------------------------------------------------
def prepare_params(params):
    """One-time weight prep: transpose + concatenate (3 fused matmuls) and build the
    constant 0/1 expansion matrices for the lane-dense flat trace layout.

    Call once at model-init time, NOT per forward call.
    """
    (w_gx, w_gh, b_g, w_rx, w_rh, b_r,
     w_px, w_ph, b_p, w_ox, w_oh, b_o) = params
    H, I = w_gx.shape
    f32 = jnp.float32
    w_x_cat = jnp.concatenate([w_gx.T, w_rx.T, w_px.T, w_ox.T], axis=1).astype(f32)  # (I, 2H+2O)
    w_h_cat = jnp.concatenate([w_gh.T, w_rh.T], axis=1).astype(f32)                   # (H, 2H)
    w_hn_cat = jnp.concatenate([w_ph.T, w_oh.T], axis=1).astype(f32)                  # (H, 2O)
    b_gr = jnp.concatenate([b_g, b_r]).reshape(1, -1).astype(f32)                     # (1, 2H)
    b_po = jnp.concatenate([b_p, b_o]).reshape(1, -1).astype(f32)                     # (1, 2O)

    # Flat trace column index: col = j*I + i (and j*H + k for the *h traces).
    col_i = np.arange(H * I)
    col_h = np.arange(H * H)
    rep_i = (col_i[None, :] // I == np.arange(H)[:, None]).astype(np.float32)   # (H, H*I)
    tile_i = (col_i[None, :] % I == np.arange(I)[:, None]).astype(np.float32)   # (I, H*I)
    rep_h = (col_h[None, :] // H == np.arange(H)[:, None]).astype(np.float32)   # (H, H*H)
    tile_h = (col_h[None, :] % H == np.arange(H)[:, None]).astype(np.float32)   # (H, H*H)
    return (w_x_cat, w_h_cat, w_hn_cat, b_gr, b_po,
            jnp.asarray(rep_i), jnp.asarray(rep_h),
            jnp.asarray(tile_i), jnp.asarray(tile_h))


def init_traces(batch_size, num_inputs, num_hidden, dtype=jnp.float32):
    """Zero eligibility traces in the kernel's persistent lane-dense (flat) layout."""
    B, I, H = batch_size, num_inputs, num_hidden
    z = lambda s: jnp.zeros(s, dtype)
    return (z((B, H * I)), z((B, H * H)), z((B, H)),
            z((B, H * I)), z((B, H * H)), z((B, H)))


def unflatten_traces(traces, num_hidden, num_inputs):
    """Flat kernel traces -> the module's (B, H, I)/(B, H, H) view (interop / tests)."""
    e_w_gx, e_w_gh, e_b_g, e_w_rx, e_w_rh, e_b_r = traces
    B = e_b_g.shape[0]
    H, I = num_hidden, num_inputs
    return (e_w_gx.reshape(B, H, I), e_w_gh.reshape(B, H, H), e_b_g,
            e_w_rx.reshape(B, H, I), e_w_rh.reshape(B, H, H), e_b_r)


# ----------------------------------------------------------------------------------
# Generation-aware VMEM planning
# ----------------------------------------------------------------------------------
@functools.lru_cache(maxsize=None)
def _vmem_capacity_bytes():
    try:
        return int(pltpu.get_tpu_info().vmem_capacity_bytes)
    except Exception:
        return 64 * 1024 * 1024   # conservative (v7x-sized) fallback


def _resident_bytes(I, H, O):
    """VMEM taken by grid-resident weight/expansion blocks (x2 for pipeline buffers)."""
    lane = lambda n: _round_up(max(n, 1), 128)
    sub = lambda n: _round_up(max(n, 1), 8)
    shapes = ((I, 2 * H + 2 * O), (H, 2 * H), (H, 2 * O), (1, 2 * H), (1, 2 * O),
              (H, H * I), (H, H * H), (I, H * I), (H, H * H))
    return 2 * sum(sub(r) * lane(c) * 4 for r, c in shapes)


def _pick_batch_tile(B, I, H, O, trace_itemsize, budget_bytes):
    """Largest legal batch tile whose double-buffered streamed blocks fit the budget.

    Uses 128-lane-padded block widths.  Chooses whole-batch grid=(1,) only if it really
    fits; otherwise keeps the pipeline >= 4 grid steps deep when possible.
    """
    lane = lambda n: _round_up(max(n, 1), 128)
    per_row = (
        4 * (lane(I) + lane(H))                             # x, h_last (in)
        + 4 * (lane(O) + 2 * lane(H))                       # out, h_new, H_g (out)
        + trace_itemsize * 4 * lane(H)                      # e_b_g, e_b_r (in + out)
        + trace_itemsize * 4 * (lane(H * I) + lane(H * H))  # 4 big traces (in + out)
    ) * 2                                                   # double-buffered pipeline
    max_tb = max(1, int(budget_bytes) // per_row)
    if max_tb >= B:
        return B                                            # whole batch -> grid=(1,)
    candidates = [tb for tb in range(8, min(max_tb, B - 1) + 1, 8) if B % tb == 0]
    if not candidates:
        raise ValueError(
            f"no legal batch tile for B={B} within the VMEM budget "
            f"({budget_bytes} B streamed, <= {max_tb} rows)")
    deep = [tb for tb in candidates if B // tb >= 4]
    return max(deep) if deep else max(candidates)


# ----------------------------------------------------------------------------------
# Forward wrapper
# ----------------------------------------------------------------------------------
@functools.partial(jax.jit, static_argnames=("batch_tile", "vmem_limit"),
                   donate_argnums=(3,))
def _forward_impl(x, h_last, prepared, traces, *, batch_tile, vmem_limit):
    B, I = x.shape
    H = h_last.shape[1]
    (w_x_cat, w_h_cat, w_hn_cat, b_gr, b_po, rep_i, rep_h, tile_i, tile_h) = prepared
    O = b_po.shape[1] // 2
    e_w_gx, e_w_gh, e_b_g, e_w_rx, e_w_rh, e_b_r = traces
    tdt = e_w_gx.dtype

    f32 = jnp.float32
    x = x.astype(f32)
    h_last = h_last.astype(f32)

    TB = batch_tile
    assert B % TB == 0 and (TB % 8 == 0 or TB == B), "illegal batch tile"
    grid = (B // TB,)

    row = lambda b: (b, 0)
    rep = lambda b: (0, 0)          # weights / expansion matrices: resident

    in_specs = [
        pl.BlockSpec((TB, I), row),                 # x
        pl.BlockSpec((TB, H), row),                 # h_last
        pl.BlockSpec(w_x_cat.shape, rep),           # fused x-projection weights
        pl.BlockSpec(w_h_cat.shape, rep),           # fused h_last-projection weights
        pl.BlockSpec(w_hn_cat.shape, rep),          # fused h_new-projection weights
        pl.BlockSpec(b_gr.shape, rep),
        pl.BlockSpec(b_po.shape, rep),
        pl.BlockSpec(rep_i.shape, rep),             # gate-factor repeat (H, H*I)
        pl.BlockSpec(rep_h.shape, rep),             # gate-factor repeat (H, H*H)
        pl.BlockSpec(tile_i.shape, rep),            # x tile (I, H*I)
        pl.BlockSpec(tile_h.shape, rep),            # h tile (H, H*H)
        pl.BlockSpec((TB, H * I), row),             # e_w_gx (flat, lane-dense)
        pl.BlockSpec((TB, H * H), row),             # e_w_gh
        pl.BlockSpec((TB, H), row),                 # e_b_g
        pl.BlockSpec((TB, H * I), row),             # e_w_rx
        pl.BlockSpec((TB, H * H), row),             # e_w_rh
        pl.BlockSpec((TB, H), row),                 # e_b_r
    ]
    out_specs = (
        pl.BlockSpec((TB, O), row),                 # o * p
        pl.BlockSpec((TB, H), row),                 # h_new
        pl.BlockSpec((TB, H * I), row),             # e_w_gx (aliased)
        pl.BlockSpec((TB, H * H), row),             # e_w_gh (aliased)
        pl.BlockSpec((TB, H), row),                 # e_b_g  (aliased)
        pl.BlockSpec((TB, H * I), row),             # e_w_rx (aliased)
        pl.BlockSpec((TB, H * H), row),             # e_w_rh (aliased)
        pl.BlockSpec((TB, H), row),                 # e_b_r  (aliased)
        pl.BlockSpec((TB, H), row),                 # H_g gate mask
    )
    out_shapes = (
        jax.ShapeDtypeStruct((B, O), f32),
        jax.ShapeDtypeStruct((B, H), f32),
        jax.ShapeDtypeStruct((B, H * I), tdt),
        jax.ShapeDtypeStruct((B, H * H), tdt),
        jax.ShapeDtypeStruct((B, H), tdt),
        jax.ShapeDtypeStruct((B, H * I), tdt),
        jax.ShapeDtypeStruct((B, H * H), tdt),
        jax.ShapeDtypeStruct((B, H), tdt),
        jax.ShapeDtypeStruct((B, H), f32),
    )

    res = pl.pallas_call(
        functools.partial(_eprop_kernel, hidden=H, outputs=O),
        grid=grid,
        in_specs=in_specs,
        out_specs=out_specs,
        out_shape=out_shapes,
        # traces are read and written in place (PyTorch buffer .copy_ semantics)
        input_output_aliases={11: 2, 12: 3, 13: 4, 14: 5, 15: 6, 16: 7},
        compiler_params=pltpu.CompilerParams(
            dimension_semantics=("parallel",),       # 2nd TensorCore on v7x, harmless else
            vmem_limit_bytes=vmem_limit,
        ),
    )(x, h_last, w_x_cat, w_h_cat, w_hn_cat, b_gr, b_po,
      rep_i, rep_h, tile_i, tile_h,
      e_w_gx, e_w_gh, e_b_g, e_w_rx, e_w_rh, e_b_r)

    (out, h_new, ne_w_gx, ne_w_gh, ne_b_g, ne_w_rx, ne_w_rh, ne_b_r, hg) = res
    openings = jnp.mean(hg)
    openings_perslot = jnp.mean(hg, axis=1)
    new_traces = (ne_w_gx, ne_w_gh, ne_b_g, ne_w_rx, ne_w_rh, ne_b_r)
    return out, h_new, new_traces, openings, openings_perslot


def eprop_gate_l0rd_shared_forward(x, h_last, prepared, traces, *, batch_tile=None):
    """EpropGateL0rdShared.eprop_forward -> (out, h_new, new_traces, openings, openings_perslot).

    `traces` is the flat-layout tuple from init_traces() / the previous step; it is
    donated and updated in place (do not reuse the input arrays afterwards).  Trace
    dtype may be float32 (exact) or bfloat16 (halved HBM trace traffic).
    """
    B, I = x.shape
    H = h_last.shape[1]
    O = prepared[4].shape[1] // 2
    tdt = traces[0].dtype
    assert all(t.dtype == tdt for t in traces), "all eligibility traces must share one dtype"
    assert tdt in (np.dtype(np.float32), np.dtype(jnp.bfloat16)), \
        "trace dtype must be float32 or bfloat16"

    cap = _vmem_capacity_bytes()
    vmem_limit = int(min(cap * 3 // 4, 100 * 1024 * 1024))
    if batch_tile is None:
        budget = min(vmem_limit - _resident_bytes(I, H, O) - 8 * 1024 * 1024,
                     int(cap * 0.65))
        budget = max(budget, 4 * 1024 * 1024)
        batch_tile = _pick_batch_tile(B, I, H, O, tdt.itemsize, budget)
    return _forward_impl(x, h_last, prepared, traces,
                         batch_tile=int(batch_tile), vmem_limit=vmem_limit)


# ----------------------------------------------------------------------------------
# Pure-JAX reference + test harness
# ----------------------------------------------------------------------------------
def _reference(x, h_last, params, traces):
    """Pure-JAX mirror of EpropGateL0rdShared.eprop_forward (noise=0, 3-D traces)."""
    (w_gx, w_gh, b_g, w_rx, w_rh, b_r,
     w_px, w_ph, b_p, w_ox, w_oh, b_o) = params
    (e_w_gx, e_w_gh, e_b_g, e_w_rx, e_w_rh, e_b_r) = traces
    g = jnp.maximum(jnp.tanh(x @ w_gx.T + h_last @ w_gh.T + b_g), 0.0)
    r = jnp.tanh(x @ w_rx.T + h_last @ w_rh.T + b_r)
    h = g * r + (1 - g) * h_last
    H_g = jnp.clip(jnp.ceil(g), 0.0, 1.0)
    dg = (1 - g ** 2) * H_g
    dr = 1 - r ** 2
    delta_h = r - h_last
    g_j, dg_j, dr_j = g[:, :, None], dg[:, :, None], dr[:, :, None]
    x_i, h_i, dh_j = x[:, None, :], h_last[:, None, :], delta_h[:, :, None]
    ne_w_gh = e_w_gh * (1 - g_j) + dg_j * h_i * dh_j
    ne_w_gx = e_w_gx * (1 - g_j) + dg_j * x_i * dh_j
    ne_b_g = e_b_g * (1 - g) + dg * delta_h
    ne_w_rh = e_w_rh * (1 - g_j) + dr_j * h_i * g_j
    ne_w_rx = e_w_rx * (1 - g_j) + dr_j * x_i * g_j
    ne_b_r = e_b_r * (1 - g) + dr * g
    p = jnp.tanh(x @ w_px.T + h @ w_ph.T + b_p)
    o = jax.nn.sigmoid(x @ w_ox.T + h @ w_oh.T + b_o)
    return (o * p, h,
            (ne_w_gx, ne_w_gh, ne_b_g, ne_w_rx, ne_w_rh, ne_b_r),
            jnp.mean(H_g), jnp.mean(H_g, axis=1))


def _check_step(kern, ref, num_hidden, num_inputs, *, rtol, atol,
                trace_rtol=None, trace_atol=None):
    trace_rtol = rtol if trace_rtol is None else trace_rtol
    trace_atol = atol if trace_atol is None else trace_atol
    out, h, traces, openings, perslot = kern
    r_out, r_h, r_traces, r_open, r_ps = ref
    np.testing.assert_allclose(np.asarray(out), np.asarray(r_out), rtol=rtol, atol=atol)
    np.testing.assert_allclose(np.asarray(h), np.asarray(r_h), rtol=rtol, atol=atol)
    for a, b in zip(unflatten_traces(traces, num_hidden, num_inputs), r_traces):
        np.testing.assert_allclose(np.asarray(a.astype(jnp.float32)), np.asarray(b),
                                   rtol=trace_rtol, atol=trace_atol)
    np.testing.assert_allclose(float(openings), float(r_open), rtol=rtol, atol=atol)
    np.testing.assert_allclose(np.asarray(perslot), np.asarray(r_ps), rtol=rtol, atol=atol)


if __name__ == "__main__":
    B, I, H, O = 16, 32, 32, 16   # batch, num_inputs, num_hidden, num_outputs

    key = jax.random.PRNGKey(0)
    ks = jax.random.split(key, 12)

    stdv_ih = float(np.sqrt(6.0 / (I + H)))
    stdv_hh = float(np.sqrt(3.0 / H))
    stdv_io = float(np.sqrt(6.0 / (I + O)))
    stdv_ho = float(np.sqrt(6.0 / (H + O)))

    w_gx = jax.random.uniform(ks[0], (H, I), jnp.float32, -stdv_ih, stdv_ih)
    w_gh = jax.random.uniform(ks[1], (H, H), jnp.float32, -stdv_hh, stdv_hh)
    b_g = jnp.zeros((H,), jnp.float32)
    w_rx = jax.random.uniform(ks[2], (H, I), jnp.float32, -stdv_ih, stdv_ih)
    w_rh = jax.random.uniform(ks[3], (H, H), jnp.float32, -stdv_hh, stdv_hh)
    b_r = jnp.zeros((H,), jnp.float32)
    w_px = jax.random.uniform(ks[4], (O, I), jnp.float32, -stdv_io, stdv_io)
    w_ph = jax.random.uniform(ks[5], (O, H), jnp.float32, -stdv_ho, stdv_ho)
    b_p = jnp.zeros((O,), jnp.float32)
    w_ox = jax.random.uniform(ks[6], (O, I), jnp.float32, -stdv_io, stdv_io)
    w_oh = jax.random.uniform(ks[7], (O, H), jnp.float32, -stdv_ho, stdv_ho)
    b_o = jnp.zeros((O,), jnp.float32)
    params = (w_gx, w_gh, b_g, w_rx, w_rh, b_r,
              w_px, w_ph, b_p, w_ox, w_oh, b_o)

    prepared = prepare_params(params)   # one-time fused/transposed weights + expansion mats

    x1 = jax.random.normal(ks[8], (B, I), jnp.float32)
    x2 = jax.random.normal(ks[10], (B, I), jnp.float32)
    h0 = 0.5 * jax.random.normal(ks[9], (B, H), jnp.float32)

    # ---- float32 traces: exact parity with the reference ----
    tr0 = init_traces(B, I, H, jnp.float32)
    ref1 = _reference(x1, h0, params, unflatten_traces(tr0, H, I))
    k1 = jax.block_until_ready(
        eprop_gate_l0rd_shared_forward(x1, h0, prepared, tr0, batch_tile=8))   # grid=(2,) path
    _check_step(k1, ref1, H, I, rtol=1e-5, atol=1e-5)

    out1, h1, tr1, _, _ = k1
    ref2 = _reference(x2, h1, params, unflatten_traces(tr1, H, I))
    k2 = jax.block_until_ready(
        eprop_gate_l0rd_shared_forward(x2, h1, prepared, tr1))                 # auto tile path
    _check_step(k2, ref2, H, I, rtol=1e-5, atol=1e-5)

    # ---- bfloat16 trace storage: forward outputs stay exact, traces within bf16 ----
    trb0 = init_traces(B, I, H, jnp.bfloat16)
    kb1 = jax.block_until_ready(
        eprop_gate_l0rd_shared_forward(x1, h0, prepared, trb0))
    _check_step(kb1, ref1, H, I, rtol=1e-5, atol=1e-5,
                trace_rtol=2e-2, trace_atol=2e-2)

    print("KERNEL_OK")
</pallas_src>

<mosaic_0001>
module attributes {stable_mosaic.version = 11 : i64} {
  func.func @_eprop_kernel(%arg0: i32, %arg1: memref<8x32xf32, #tpu.memory_space<vmem>>, %arg2: memref<8x32xf32, #tpu.memory_space<vmem>>, %arg3: memref<32x96xf32, #tpu.memory_space<vmem>>, %arg4: memref<32x64xf32, #tpu.memory_space<vmem>>, %arg5: memref<32x32xf32, #tpu.memory_space<vmem>>, %arg6: memref<1x64xf32, #tpu.memory_space<vmem>>, %arg7: memref<1x32xf32, #tpu.memory_space<vmem>>, %arg8: memref<32x1024xf32, #tpu.memory_space<vmem>>, %arg9: memref<32x1024xf32, #tpu.memory_space<vmem>>, %arg10: memref<32x1024xf32, #tpu.memory_space<vmem>>, %arg11: memref<32x1024xf32, #tpu.memory_space<vmem>>, %arg12: memref<8x1024xf32, #tpu.memory_space<vmem>>, %arg13: memref<8x1024xf32, #tpu.memory_space<vmem>>, %arg14: memref<8x32xf32, #tpu.memory_space<vmem>>, %arg15: memref<8x1024xf32, #tpu.memory_space<vmem>>, %arg16: memref<8x1024xf32, #tpu.memory_space<vmem>>, %arg17: memref<8x32xf32, #tpu.memory_space<vmem>>, %arg18: memref<8x16xf32, #tpu.memory_space<vmem>>, %arg19: memref<8x32xf32, #tpu.memory_space<vmem>>, %arg20: memref<8x1024xf32, #tpu.memory_space<vmem>>, %arg21: memref<8x1024xf32, #tpu.memory_space<vmem>>, %arg22: memref<8x32xf32, #tpu.memory_space<vmem>>, %arg23: memref<8x1024xf32, #tpu.memory_space<vmem>>, %arg24: memref<8x1024xf32, #tpu.memory_space<vmem>>, %arg25: memref<8x32xf32, #tpu.memory_space<vmem>>, %arg26: memref<8x32xf32, #tpu.memory_space<vmem>>) attributes {dimension_semantics = [#tpu.dimension_semantics<parallel>], iteration_bounds = array<i64: 2>, scalar_prefetch = 0 : i64, scratch_operands = 0 : i64, tpu.core_type = #tpu.core_type<tc>, window_params = [{transform_indices = @transform_0, window_bounds = array<i64: 8, 32>}, {transform_indices = @transform_1, window_bounds = array<i64: 8, 32>}, {pipeline_mode = #tpu.pipeline_mode<synchronous>, transform_indices = @transform_2, window_bounds = array<i64: 32, 96>}, {pipeline_mode = #tpu.pipeline_mode<synchronous>, transform_indices = @transform_3, window_bounds = array<i64: 32, 64>}, {pipeline_mode = #tpu.pipeline_mode<synchronous>, transform_indices = @transform_4, window_bounds = array<i64: 32, 32>}, {pipeline_mode = #tpu.pipeline_mode<synchronous>, transform_indices = @transform_5, window_bounds = array<i64: 1, 64>}, {pipeline_mode = #tpu.pipeline_mode<synchronous>, transform_indices = @transform_6, window_bounds = array<i64: 1, 32>}, {pipeline_mode = #tpu.pipeline_mode<synchronous>, transform_indices = @transform_7, window_bounds = array<i64: 32, 1024>}, {pipeline_mode = #tpu.pipeline_mode<synchronous>, transform_indices = @transform_8, window_bounds = array<i64: 32, 1024>}, {pipeline_mode = #tpu.pipeline_mode<synchronous>, transform_indices = @transform_9, window_bounds = array<i64: 32, 1024>}, {pipeline_mode = #tpu.pipeline_mode<synchronous>, transform_indices = @transform_10, window_bounds = array<i64: 32, 1024>}, {transform_indices = @transform_11, window_bounds = array<i64: 8, 1024>}, {transform_indices = @transform_12, window_bounds = array<i64: 8, 1024>}, {transform_indices = @transform_13, window_bounds = array<i64: 8, 32>}, {transform_indices = @transform_14, window_bounds = array<i64: 8, 1024>}, {transform_indices = @transform_15, window_bounds = array<i64: 8, 1024>}, {transform_indices = @transform_16, window_bounds = array<i64: 8, 32>}, {transform_indices = @transform_17, window_bounds = array<i64: 8, 16>}, {transform_indices = @transform_18, window_bounds = array<i64: 8, 32>}, {transform_indices = @transform_19, window_bounds = array<i64: 8, 1024>}, {transform_indices = @transform_20, window_bounds = array<i64: 8, 1024>}, {transform_indices = @transform_21, window_bounds = array<i64: 8, 32>}, {transform_indices = @transform_22, window_bounds = array<i64: 8, 1024>}, {transform_indices = @transform_23, window_bounds = array<i64: 8, 1024>}, {transform_indices = @transform_24, window_bounds = array<i64: 8, 32>}, {transform_indices = @transform_25, window_bounds = array<i64: 8, 32>}]} {
    %c0 = arith.constant 0 : index
    %c0_0 = arith.constant 0 : index
    %0 = vector.load %arg1[%c0, %c0_0] : memref<8x32xf32, #tpu.memory_space<vmem>>, vector<8x32xf32>
    %c0_1 = arith.constant 0 : index
    %c0_2 = arith.constant 0 : index
    %1 = vector.load %arg2[%c0_1, %c0_2] : memref<8x32xf32, #tpu.memory_space<vmem>>, vector<8x32xf32>
    %c0_3 = arith.constant 0 : index
    %c0_4 = arith.constant 0 : index
    %2 = vector.load %arg3[%c0_3, %c0_4] : memref<32x96xf32, #tpu.memory_space<vmem>>, vector<32x96xf32>
    %cst = arith.constant dense<0.000000e+00> : vector<8x96xf32>
    %3 = tpu.matmul %0, %2, %cst {dimension_numbers = #tpu.dot_dimension_numbers<[1], [0], [0], [1], [0, 0, 1, 1], [], []>} : vector<8x32xf32>, vector<32x96xf32>, vector<8x96xf32> -> vector<8x96xf32>
    %c0_5 = arith.constant 0 : index
    %c0_6 = arith.constant 0 : index
    %4 = vector.load %arg4[%c0_5, %c0_6] : memref<32x64xf32, #tpu.memory_space<vmem>>, vector<32x64xf32>
    %cst_7 = arith.constant dense<0.000000e+00> : vector<8x64xf32>
    %5 = tpu.matmul %1, %4, %cst_7 {dimension_numbers = #tpu.dot_dimension_numbers<[1], [0], [0], [1], [0, 0, 1, 1], [], []>} : vector<8x32xf32>, vector<32x64xf32>, vector<8x64xf32> -> vector<8x64xf32>
    %6 = vector.extract_strided_slice %3 {offsets = [0, 0], sizes = [8, 64], strides = [1, 1]} : vector<8x96xf32> to vector<8x64xf32>
    %7 = arith.addf %6, %5 : vector<8x64xf32>
    %c0_8 = arith.constant 0 : index
    %c0_9 = arith.constant 0 : index
    %8 = vector.load %arg6[%c0_8, %c0_9] : memref<1x64xf32, #tpu.memory_space<vmem>>, vector<1x64xf32>
    %9 = vector.broadcast %8 : vector<1x64xf32> to vector<8x64xf32>
    %10 = arith.addf %7, %9 : vector<8x64xf32>
    %11 = math.tanh %10 : vector<8x64xf32>
    %12 = vector.extract_strided_slice %11 {offsets = [0, 0], sizes = [8, 32], strides = [1, 1]} : vector<8x64xf32> to vector<8x32xf32>
    %cst_10 = arith.constant 0.000000e+00 : f32
    %13 = vector.broadcast %cst_10 : f32 to vector<8x32xf32>
    %14 = arith.maximumf %12, %13 : vector<8x32xf32>
    %15 = vector.extract_strided_slice %11 {offsets = [0, 32], sizes = [8, 32], strides = [1, 1]} : vector<8x64xf32> to vector<8x32xf32>
    %16 = arith.mulf %14, %15 : vector<8x32xf32>
    %cst_11 = arith.constant 1.000000e+00 : f32
    %17 = vector.broadcast %cst_11 : f32 to vector<8x32xf32>
    %18 = arith.subf %17, %14 : vector<8x32xf32>
    %19 = arith.mulf %18, %1 : vector<8x32xf32>
    %20 = arith.addf %16, %19 : vector<8x32xf32>
    %cst_12 = arith.constant 0.000000e+00 : f32
    %21 = vector.broadcast %cst_12 : f32 to vector<8x32xf32>
    %22 = arith.cmpf ogt, %14, %21 : vector<8x32xf32>
    %cst_13 = arith.constant 1.000000e+00 : f32
    %cst_14 = arith.constant 0.000000e+00 : f32
    %23 = vector.broadcast %cst_13 : f32 to vector<8x32xf32>
    %24 = vector.broadcast %cst_14 : f32 to vector<8x32xf32>
    %25 = arith.select %22, %23, %24 : vector<8x32xi1>, vector<8x32xf32>
    %cst_15 = arith.constant 1.000000e+00 : f32
    %26 = vector.broadcast %cst_15 : f32 to vector<8x32xf32>
    %27 = arith.subf %26, %14 : vector<8x32xf32>
    %28 = arith.mulf %14, %14 : vector<8x32xf32>
    %cst_16 = arith.constant 1.000000e+00 : f32
    %29 = vector.broadcast %cst_16 : f32 to vector<8x32xf32>
    %30 = arith.subf %29, %28 : vector<8x32xf32>
    %31 = arith.mulf %30, %25 : vector<8x32xf32>
    %32 = arith.subf %15, %1 : vector<8x32xf32>
    %33 = arith.mulf %31, %32 : vector<8x32xf32>
    %34 = arith.mulf %15, %15 : vector<8x32xf32>
    %cst_17 = arith.constant 1.000000e+00 : f32
    %35 = vector.broadcast %cst_17 : f32 to vector<8x32xf32>
    %36 = arith.subf %35, %34 : vector<8x32xf32>
    %37 = arith.mulf %36, %14 : vector<8x32xf32>
    %c0_18 = arith.constant 0 : index
    %c0_19 = arith.constant 0 : index
    %38 = vector.load %arg8[%c0_18, %c0_19] : memref<32x1024xf32, #tpu.memory_space<vmem>>, vector<32x1024xf32>
    %c0_20 = arith.constant 0 : index
    %c0_21 = arith.constant 0 : index
    %39 = vector.load %arg9[%c0_20, %c0_21] : memref<32x1024xf32, #tpu.memory_space<vmem>>, vector<32x1024xf32>
    %cst_22 = arith.constant dense<0.000000e+00> : vector<8x1024xf32>
    %40 = tpu.matmul %27, %38, %cst_22 {dimension_numbers = #tpu.dot_dimension_numbers<[1], [0], [0], [1], [0, 0, 1, 1], [], []>} : vector<8x32xf32>, vector<32x1024xf32>, vector<8x1024xf32> -> vector<8x1024xf32>
    %cst_23 = arith.constant dense<0.000000e+00> : vector<8x1024xf32>
    %41 = tpu.matmul %27, %39, %cst_23 {dimension_numbers = #tpu.dot_dimension_numbers<[1], [0], [0], [1], [0, 0, 1, 1], [], []>} : vector<8x32xf32>, vector<32x1024xf32>, vector<8x1024xf32> -> vector<8x1024xf32>
    %cst_24 = arith.constant dense<0.000000e+00> : vector<8x1024xf32>
    %42 = tpu.matmul %33, %38, %cst_24 {dimension_numbers = #tpu.dot_dimension_numbers<[1], [0], [0], [1], [0, 0, 1, 1], [], []>} : vector<8x32xf32>, vector<32x1024xf32>, vector<8x1024xf32> -> vector<8x1024xf32>
    %cst_25 = arith.constant dense<0.000000e+00> : vector<8x1024xf32>
    %43 = tpu.matmul %33, %39, %cst_25 {dimension_numbers = #tpu.dot_dimension_numbers<[1], [0], [0], [1], [0, 0, 1, 1], [], []>} : vector<8x32xf32>, vector<32x1024xf32>, vector<8x1024xf32> -> vector<8x1024xf32>
    %cst_26 = arith.constant dense<0.000000e+00> : vector<8x1024xf32>
    %44 = tpu.matmul %37, %38, %cst_26 {dimension_numbers = #tpu.dot_dimension_numbers<[1], [0], [0], [1], [0, 0, 1, 1], [], []>} : vector<8x32xf32>, vector<32x1024xf32>, vector<8x1024xf32> -> vector<8x1024xf32>
    %cst_27 = arith.constant dense<0.000000e+00> : vector<8x1024xf32>
    %45 = tpu.matmul %37, %39, %cst_27 {dimension_numbers = #tpu.dot_dimension_numbers<[1], [0], [0], [1], [0, 0, 1, 1], [], []>} : vector<8x32xf32>, vector<32x1024xf32>, vector<8x1024xf32> -> vector<8x1024xf32>
    %c0_28 = arith.constant 0 : index
    %c0_29 = arith.constant 0 : index
    %46 = vector.load %arg10[%c0_28, %c0_29] : memref<32x1024xf32, #tpu.memory_space<vmem>>, vector<32x1024xf32>
    %cst_30 = arith.constant dense<0.000000e+00> : vector<8x1024xf32>
    %47 = tpu.matmul %0, %46, %cst_30 {dimension_numbers = #tpu.dot_dimension_numbers<[1], [0], [0], [1], [0, 0, 1, 1], [], []>} : vector<8x32xf32>, vector<32x1024xf32>, vector<8x1024xf32> -> vector<8x1024xf32>
    %c0_31 = arith.constant 0 : index
    %c0_32 = arith.constant 0 : index
    %48 = vector.load %arg11[%c0_31, %c0_32] : memref<32x1024xf32, #tpu.memory_space<vmem>>, vector<32x1024xf32>
    %cst_33 = arith.constant dense<0.000000e+00> : vector<8x1024xf32>
    %49 = tpu.matmul %1, %48, %cst_33 {dimension_numbers = #tpu.dot_dimension_numbers<[1], [0], [0], [1], [0, 0, 1, 1], [], []>} : vector<8x32xf32>, vector<32x1024xf32>, vector<8x1024xf32> -> vector<8x1024xf32>
    %c0_34 = arith.constant 0 : index
    %c0_35 = arith.constant 0 : index
    %50 = vector.load %arg12[%c0_34, %c0_35] : memref<8x1024xf32, #tpu.memory_space<vmem>>, vector<8x1024xf32>
    %51 = arith.mulf %50, %40 : vector<8x1024xf32>
    %52 = arith.mulf %42, %47 : vector<8x1024xf32>
    %53 = arith.addf %51, %52 : vector<8x1024xf32>
    %c0_36 = arith.constant 0 : index
    %c0_37 = arith.constant 0 : index
    %54 = vector.load %arg20[%c0_36, %c0_37] : memref<8x1024xf32, #tpu.memory_space<vmem>>, vector<8x1024xf32>
    tpu.vector_store %arg20[%c0_36, %c0_37], %53 {strides = array<i32>} : memref<8x1024xf32, #tpu.memory_space<vmem>>, vector<8x1024xf32>,
    %c0_38 = arith.constant 0 : index
    %c0_39 = arith.constant 0 : index
    %55 = vector.load %arg13[%c0_38, %c0_39] : memref<8x1024xf32, #tpu.memory_space<vmem>>, vector<8x1024xf32>
    %56 = arith.mulf %55, %41 : vector<8x1024xf32>
    %57 = arith.mulf %43, %49 : vector<8x1024xf32>
    %58 = arith.addf %56, %57 : vector<8x1024xf32>
    %c0_40 = arith.constant 0 : index
    %c0_41 = arith.constant 0 : index
    %59 = vector.load %arg21[%c0_40, %c0_41] : memref<8x1024xf32, #tpu.memory_space<vmem>>, vector<8x1024xf32>
    tpu.vector_store %arg21[%c0_40, %c0_41], %58 {strides = array<i32>} : memref<8x1024xf32, #tpu.memory_space<vmem>>, vector<8x1024xf32>,
    %c0_42 = arith.constant 0 : index
    %c0_43 = arith.constant 0 : index
    %60 = vector.load %arg14[%c0_42, %c0_43] : memref<8x32xf32, #tpu.memory_space<vmem>>, vector<8x32xf32>
    %61 = arith.mulf %60, %27 : vector<8x32xf32>
    %62 = arith.addf %61, %33 : vector<8x32xf32>
    %c0_44 = arith.constant 0 : index
    %c0_45 = arith.constant 0 : index
    %63 = vector.load %arg22[%c0_44, %c0_45] : memref<8x32xf32, #tpu.memory_space<vmem>>, vector<8x32xf32>
    tpu.vector_store %arg22[%c0_44, %c0_45], %62 {strides = array<i32>} : memref<8x32xf32, #tpu.memory_space<vmem>>, vector<8x32xf32>,
    %c0_46 = arith.constant 0 : index
    %c0_47 = arith.constant 0 : index
    %64 = vector.load %arg15[%c0_46, %c0_47] : memref<8x1024xf32, #tpu.memory_space<vmem>>, vector<8x1024xf32>
    %65 = arith.mulf %64, %40 : vector<8x1024xf32>
    %66 = arith.mulf %44, %47 : vector<8x1024xf32>
    %67 = arith.addf %65, %66 : vector<8x1024xf32>
    %c0_48 = arith.constant 0 : index
    %c0_49 = arith.constant 0 : index
    %68 = vector.load %arg23[%c0_48, %c0_49] : memref<8x1024xf32, #tpu.memory_space<vmem>>, vector<8x1024xf32>
    tpu.vector_store %arg23[%c0_48, %c0_49], %67 {strides = array<i32>} : memref<8x1024xf32, #tpu.memory_space<vmem>>, vector<8x1024xf32>,
    %c0_50 = arith.constant 0 : index
    %c0_51 = arith.constant 0 : index
    %69 = vector.load %arg16[%c0_50, %c0_51] : memref<8x1024xf32, #tpu.memory_space<vmem>>, vector<8x1024xf32>
    %70 = arith.mulf %69, %41 : vector<8x1024xf32>
    %71 = arith.mulf %45, %49 : vector<8x1024xf32>
    %72 = arith.addf %70, %71 : vector<8x1024xf32>
    %c0_52 = arith.constant 0 : index
    %c0_53 = arith.constant 0 : index
    %73 = vector.load %arg24[%c0_52, %c0_53] : memref<8x1024xf32, #tpu.memory_space<vmem>>, vector<8x1024xf32>
    tpu.vector_store %arg24[%c0_52, %c0_53], %72 {strides = array<i32>} : memref<8x1024xf32, #tpu.memory_space<vmem>>, vector<8x1024xf32>,
    %c0_54 = arith.constant 0 : index
    %c0_55 = arith.constant 0 : index
    %74 = vector.load %arg17[%c0_54, %c0_55] : memref<8x32xf32, #tpu.memory_space<vmem>>, vector<8x32xf32>
    %75 = arith.mulf %74, %27 : vector<8x32xf32>
    %76 = arith.addf %75, %37 : vector<8x32xf32>
    %c0_56 = arith.constant 0 : index
    %c0_57 = arith.constant 0 : index
    %77 = vector.load %arg25[%c0_56, %c0_57] : memref<8x32xf32, #tpu.memory_space<vmem>>, vector<8x32xf32>
    tpu.vector_store %arg25[%c0_56, %c0_57], %76 {strides = array<i32>} : memref<8x32xf32, #tpu.memory_space<vmem>>, vector<8x32xf32>,
    %c0_58 = arith.constant 0 : index
    %c0_59 = arith.constant 0 : index
    %78 = vector.load %arg5[%c0_58, %c0_59] : memref<32x32xf32, #tpu.memory_space<vmem>>, vector<32x32xf32>
    %cst_60 = arith.constant dense<0.000000e+00> : vector<8x32xf32>
    %79 = tpu.matmul %20, %78, %cst_60 {dimension_numbers = #tpu.dot_dimension_numbers<[1], [0], [0], [1], [0, 0, 1, 1], [], []>} : vector<8x32xf32>, vector<32x32xf32>, vector<8x32xf32> -> vector<8x32xf32>
    %80 = vector.extract_strided_slice %3 {offsets = [0, 64], sizes = [8, 32], strides = [1, 1]} : vector<8x96xf32> to vector<8x32xf32>
    %81 = arith.addf %80, %79 : vector<8x32xf32>
    %c0_61 = arith.constant 0 : index
    %c0_62 = arith.constant 0 : index
    %82 = vector.load %arg7[%c0_61, %c0_62] : memref<1x32xf32, #tpu.memory_space<vmem>>, vector<1x32xf32>
    %83 = vector.broadcast %82 : vector<1x32xf32> to vector<8x32xf32>
    %84 = arith.addf %81, %83 : vector<8x32xf32>
    %85 = vector.extract_strided_slice %84 {offsets = [0, 0], sizes = [8, 16], strides = [1, 1]} : vector<8x32xf32> to vector<8x16xf32>
    %86 = math.tanh %85 : vector<8x16xf32>
    %87 = vector.extract_strided_slice %84 {offsets = [0, 16], sizes = [8, 16], strides = [1, 1]} : vector<8x32xf32> to vector<8x16xf32>
    %88 = arith.negf %87 : vector<8x16xf32>
    %89 = math.exp %88 : vector<8x16xf32>
    %cst_63 = arith.constant 1.000000e+00 : f32
    %90 = vector.broadcast %cst_63 : f32 to vector<8x16xf32>
    %91 = arith.addf %90, %89 : vector<8x16xf32>
    %92 = arith.divf %90, %91 : vector<8x16xf32>
    %93 = arith.mulf %92, %86 : vector<8x16xf32>
    %c0_64 = arith.constant 0 : index
    %c0_65 = arith.constant 0 : index
    %94 = vector.load %arg18[%c0_64, %c0_65] : memref<8x16xf32, #tpu.memory_space<vmem>>, vector<8x16xf32>
    tpu.vector_store %arg18[%c0_64, %c0_65], %93 {strides = array<i32>} : memref<8x16xf32, #tpu.memory_space<vmem>>, vector<8x16xf32>,
    %c0_66 = arith.constant 0 : index
    %c0_67 = arith.constant 0 : index
    %95 = vector.load %arg19[%c0_66, %c0_67] : memref<8x32xf32, #tpu.memory_space<vmem>>, vector<8x32xf32>
    tpu.vector_store %arg19[%c0_66, %c0_67], %20 {strides = array<i32>} : memref<8x32xf32, #tpu.memory_space<vmem>>, vector<8x32xf32>,
    %c0_68 = arith.constant 0 : index
    %c0_69 = arith.constant 0 : index
    %96 = vector.load %arg26[%c0_68, %c0_69] : memref<8x32xf32, #tpu.memory_space<vmem>>, vector<8x32xf32>
    tpu.vector_store %arg26[%c0_68, %c0_69], %25 {strides = array<i32>} : memref<8x32xf32, #tpu.memory_space<vmem>>, vector<8x32xf32>,
    return
  }
  func.func @transform_0(%arg0: i32) -> (i32, i32) {
    %c0_i32 = arith.constant 0 : i32
    %c0_i32_0 = arith.constant 0 : i32
    return %arg0, %c0_i32 : i32, i32
  }
  func.func @transform_1(%arg0: i32) -> (i32, i32) {
    %c0_i32 = arith.constant 0 : i32
    %c0_i32_0 = arith.constant 0 : i32
    return %arg0, %c0_i32 : i32, i32
  }
  func.func @transform_2(%arg0: i32) -> (i32, i32) {
    %c0_i32 = arith.constant 0 : i32
    %c0_i32_0 = arith.constant 0 : i32
    %c0_i32_1 = arith.constant 0 : i32
    return %c0_i32, %c0_i32_0 : i32, i32
  }
  func.func @transform_3(%arg0: i32) -> (i32, i32) {
    %c0_i32 = arith.constant 0 : i32
    %c0_i32_0 = arith.constant 0 : i32
    %c0_i32_1 = arith.constant 0 : i32
    return %c0_i32, %c0_i32_0 : i32, i32
  }
  func.func @transform_4(%arg0: i32) -> (i32, i32) {
    %c0_i32 = arith.constant 0 : i32
    %c0_i32_0 = arith.constant 0 : i32
    %c0_i32_1 = arith.constant 0 : i32
    return %c0_i32, %c0_i32_0 : i32, i32
  }
  func.func @transform_5(%arg0: i32) -> (i32, i32) {
    %c0_i32 = arith.constant 0 : i32
    %c0_i32_0 = arith.constant 0 : i32
    %c0_i32_1 = arith.constant 0 : i32
    return %c0_i32, %c0_i32_0 : i32, i32
  }
  func.func @transform_6(%arg0: i32) -> (i32, i32) {
    %c0_i32 = arith.constant 0 : i32
    %c0_i32_0 = arith.constant 0 : i32
    %c0_i32_1 = arith.constant 0 : i32
    return %c0_i32, %c0_i32_0 : i32, i32
  }
  func.func @transform_7(%arg0: i32) -> (i32, i32) {
    %c0_i32 = arith.constant 0 : i32
    %c0_i32_0 = arith.constant 0 : i32
    %c0_i32_1 = arith.constant 0 : i32
    return %c0_i32, %c0_i32_0 : i32, i32
  }
  func.func @transform_8(%arg0: i32) -> (i32, i32) {
    %c0_i32 = arith.constant 0 : i32
    %c0_i32_0 = arith.constant 0 : i32
    %c0_i32_1 = arith.constant 0 : i32
    return %c0_i32, %c0_i32_0 : i32, i32
  }
  func.func @transform_9(%arg0: i32) -> (i32, i32) {
    %c0_i32 = arith.constant 0 : i32
    %c0_i32_0 = arith.constant 0 : i32
    %c0_i32_1 = arith.constant 0 : i32
    return %c0_i32, %c0_i32_0 : i32, i32
  }
  func.func @transform_10(%arg0: i32) -> (i32, i32) {
    %c0_i32 = arith.constant 0 : i32
    %c0_i32_0 = arith.constant 0 : i32
    %c0_i32_1 = arith.constant 0 : i32
    return %c0_i32, %c0_i32_0 : i32, i32
  }
  func.func @transform_11(%arg0: i32) -> (i32, i32) {
    %c0_i32 = arith.constant 0 : i32
    %c0_i32_0 = arith.constant 0 : i32
    return %arg0, %c0_i32 : i32, i32
  }
  func.func @transform_12(%arg0: i32) -> (i32, i32) {
    %c0_i32 = arith.constant 0 : i32
    %c0_i32_0 = arith.constant 0 : i32
    return %arg0, %c0_i32 : i32, i32
  }
  func.func @transform_13(%arg0: i32) -> (i32, i32) {
    %c0_i32 = arith.constant 0 : i32
    %c0_i32_0 = arith.constant 0 : i32
    return %arg0, %c0_i32 : i32, i32
  }
  func.func @transform_14(%arg0: i32) -> (i32, i32) {
    %c0_i32 = arith.constant 0 : i32
    %c0_i32_0 = arith.constant 0 : i32
    return %arg0, %c0_i32 : i32, i32
  }
  func.func @transform_15(%arg0: i32) -> (i32, i32) {
    %c0_i32 = arith.constant 0 : i32
    %c0_i32_0 = arith.constant 0 : i32
    return %arg0, %c0_i32 : i32, i32
  }
  func.func @transform_16(%arg0: i32) -> (i32, i32) {
    %c0_i32 = arith.constant 0 : i32
    %c0_i32_0 = arith.constant 0 : i32
    return %arg0, %c0_i32 : i32, i32
  }
  func.func @transform_17(%arg0: i32) -> (i32, i32) {
    %c0_i32 = arith.constant 0 : i32
    %c0_i32_0 = arith.constant 0 : i32
    return %arg0, %c0_i32 : i32, i32
  }
  func.func @transform_18(%arg0: i32) -> (i32, i32) {
    %c0_i32 = arith.constant 0 : i32
    %c0_i32_0 = arith.constant 0 : i32
    return %arg0, %c0_i32 : i32, i32
  }
  func.func @transform_19(%arg0: i32) -> (i32, i32) {
    %c0_i32 = arith.constant 0 : i32
    %c0_i32_0 = arith.constant 0 : i32
    return %arg0, %c0_i32 : i32, i32
  }
  func.func @transform_20(%arg0: i32) -> (i32, i32) {
    %c0_i32 = arith.constant 0 : i32
    %c0_i32_0 = arith.constant 0 : i32
    return %arg0, %c0_i32 : i32, i32
  }
  func.func @transform_21(%arg0: i32) -> (i32, i32) {
    %c0_i32 = arith.constant 0 : i32
    %c0_i32_0 = arith.constant 0 : i32
    return %arg0, %c0_i32 : i32, i32
  }
  func.func @transform_22(%arg0: i32) -> (i32, i32) {
    %c0_i32 = arith.constant 0 : i32
    %c0_i32_0 = arith.constant 0 : i32
    return %arg0, %c0_i32 : i32, i32
  }
  func.func @transform_23(%arg0: i32) -> (i32, i32) {
    %c0_i32 = arith.constant 0 : i32
    %c0_i32_0 = arith.constant 0 : i32
    return %arg0, %c0_i32 : i32, i32
  }
  func.func @transform_24(%arg0: i32) -> (i32, i32) {
    %c0_i32 = arith.constant 0 : i32
    %c0_i32_0 = arith.constant 0 : i32
    return %arg0, %c0_i32 : i32, i32
  }
  func.func @transform_25(%arg0: i32) -> (i32, i32) {
    %c0_i32 = arith.constant 0 : i32
    %c0_i32_0 = arith.constant 0 : i32
    return %arg0, %c0_i32 : i32, i32
  }
}

</mosaic_0001>

<llo_original>
// kernel: _forward_impl.1
$region0: #{_forward_impl.1}
  #allocation0 [shape = 'u32[]', space=smem, size = 0x4, offset = 0x4, fixed_abs, tag = 'smem constant byte address 0x4 - core index']
  #allocation1 [shape = 'u32[72,128]{1,0:T(1,128)}', space=vmem, size = 0x9000, scoped, tag = 'internal scratch']
  %s0 = inlined_call_operand.hbm [shape: f32[16,32], index: 0, kind: input, shape index: {}]
  %s1 = inlined_call_operand.hbm [shape: f32[16,32], index: 1, kind: input, shape index: {}]
  %s2 = inlined_call_operand.hbm [shape: f32[32,96], index: 2, kind: input, shape index: {}]
  %s3 = inlined_call_operand.hbm [shape: f32[32,64], index: 3, kind: input, shape index: {}]
  %s4 = inlined_call_operand.hbm [shape: f32[32,32], index: 4, kind: input, shape index: {}]
  %s5 = inlined_call_operand.vmem [shape: f32[1,64], index: 5, kind: input, shape index: {}]
  %s6 = inlined_call_operand.vmem [shape: f32[1,32], index: 6, kind: input, shape index: {}]
  %s7 = inlined_call_operand.hbm [shape: f32[32,1024], index: 7, kind: input, shape index: {}]
  %s8 = inlined_call_operand.hbm [shape: f32[32,1024], index: 8, kind: input, shape index: {}]
  %s9 = inlined_call_operand.hbm [shape: f32[32,1024], index: 9, kind: input, shape index: {}]
  %s10 = inlined_call_operand.hbm [shape: f32[32,1024], index: 10, kind: input, shape index: {}]
  %s11 = inlined_call_operand.hbm [shape: f32[16,1024], index: 11, kind: input, shape index: {}, may-alias: {11,19}]
  %s12 = inlined_call_operand.hbm [shape: f32[16,1024], index: 12, kind: input, shape index: {}, may-alias: {12,20}]
  %s13 = inlined_call_operand.vmem [shape: f32[16,32], index: 13, kind: input, shape index: {}, may-alias: {13,21}]
  %s14 = inlined_call_operand.hbm [shape: f32[16,1024], index: 14, kind: input, shape index: {}, may-alias: {14,22}]
  %s15 = inlined_call_operand.hbm [shape: f32[16,1024], index: 15, kind: input, shape index: {}, may-alias: {15,23}]
  %s16 = inlined_call_operand.vmem [shape: f32[16,32], index: 16, kind: input, shape index: {}, may-alias: {16,24}]
  %s17 = inlined_call_operand.hbm [shape: f32[16,16], index: 17, kind: output, shape index: {0}]
  %s18 = inlined_call_operand.vmem [shape: f32[16,32], index: 18, kind: output, shape index: {1}]
  %s19 = inlined_call_operand.hbm [shape: f32[16,1024], index: 19, kind: output, shape index: {2}, may-alias: {11,19}]
  %s20 = inlined_call_operand.hbm [shape: f32[16,1024], index: 20, kind: output, shape index: {3}, may-alias: {12,20}]
  %s21 = inlined_call_operand.vmem [shape: f32[16,32], index: 21, kind: output, shape index: {4}, may-alias: {13,21}]
  %s22 = inlined_call_operand.hbm [shape: f32[16,1024], index: 22, kind: output, shape index: {5}, may-alias: {14,22}]
  %s23 = inlined_call_operand.hbm [shape: f32[16,1024], index: 23, kind: output, shape index: {6}, may-alias: {15,23}]
  %s24 = inlined_call_operand.vmem [shape: f32[16,32], index: 24, kind: output, shape index: {7}, may-alias: {16,24}]
  %s25 = inlined_call_operand.vmem [shape: f32[16,32], index: 25, kind: output, shape index: {8}]
  %26 = xla_tuple %s17, %s18, %s19, %s20, %s21, %s22, %s23, %s24, %s25
  %s27 = sld [smem:[#allocation0]]
  $region217: #{_forward_impl.1} parent=0
    _
  %s29 = ssub.s32 1, %s27
  %s30 = scalar_select 0, %s29, %s27
  $region1: #{_forward_impl.1} parent=0
    #allocation2 [shape = 'u8[8192]{0}', space=vmem, size = 0x2000, scoped, tag = 'input window, operand 0']
    #allocation3 [shape = 's32[2]{0}', space=sflag, size = 0x8, scoped, tag = 'scoped memory for _forward_impl.1']
    #allocation4 [shape = 's32[2]{0}', space=sflag, size = 0x8, scoped, tag = 'scoped memory for _forward_impl.1']
    #allocation5 [shape = 'u8[8192]{0}', space=vmem, size = 0x2000, scoped, tag = 'input window, operand 1']
    #allocation6 [shape = 's32[2]{0}', space=sflag, size = 0x8, scoped, tag = 'scoped memory for _forward_impl.1']
    #allocation7 [shape = 'u8[16384]{0}', space=vmem, size = 0x4000, scoped, tag = 'input window, operand 2, single buffered']
    #allocation8 [shape = 'u8[16384]{0}', space=vmem, size = 0x4000, scoped, tag = 'input window, operand 3, single buffered']
    #allocation9 [shape = 's32[1]{0}', space=sflag, size = 0x4, scoped, tag = 'scoped memory for _forward_impl.1']
    #allocation10 [shape = 'u8[16384]{0}', space=vmem, size = 0x4000, scoped, tag = 'input window, operand 4, single buffered']
    #allocation11 [shape = 'u8[131072]{0}', space=vmem, size = 0x20000, scoped, tag = 'input window, operand 7, single buffered']
    #allocation12 [shape = 's32[1]{0}', space=sflag, size = 0x4, scoped, tag = 'scoped memory for _forward_impl.1']
    #allocation13 [shape = 'u8[131072]{0}', space=vmem, size = 0x20000, scoped, tag = 'input window, operand 8, single buffered']
    #allocation14 [shape = 'u8[131072]{0}', space=vmem, size = 0x20000, scoped, tag = 'input window, operand 9, single buffered']
    #allocation15 [shape = 's32[1]{0}', space=sflag, size = 0x4, scoped, tag = 'scoped memory for _forward_impl.1']
    #allocation16 [shape = 'u8[131072]{0}', space=vmem, size = 0x20000, scoped, tag = 'input window, operand 10, single buffered']
    #allocation17 [shape = 'u8[65536]{0}', space=vmem, size = 0x10000, scoped, tag = 'input window, operand 11']
    #allocation18 [shape = 's32[2]{0}', space=sflag, size = 0x8, scoped, tag = 'scoped memory for _forward_impl.1']
    #allocation19 [shape = 'u8[65536]{0}', space=vmem, size = 0x10000, scoped, tag = 'input window, operand 12']
    #allocation20 [shape = 'u8[65536]{0}', space=vmem, size = 0x10000, scoped, tag = 'input window, operand 14']
    #allocation21 [shape = 's32[2]{0}', space=sflag, size = 0x8, scoped, tag = 'scoped memory for _forward_impl.1']
    #allocation22 [shape = 'u8[65536]{0}', space=vmem, size = 0x10000, scoped, tag = 'input window, operand 15']
    #allocation23 [shape = 'u8[8192]{0}', space=vmem, size = 0x2000, scoped, tag = 'output window, operand 0']
    #allocation24 [shape = 'u8[65536]{0}', space=vmem, size = 0x10000, scoped, tag = 'output window, operand 2']
    #allocation25 [shape = 's32[2]{0}', space=sflag, size = 0x8, scoped, tag = 'scoped memory for _forward_impl.1']
    #allocation26 [shape = 'u8[65536]{0}', space=vmem, size = 0x10000, scoped, tag = 'output window, operand 3']
    #allocation27 [shape = 'u8[65536]{0}', space=vmem, size = 0x10000, scoped, tag = 'output window, operand 5']
    #allocation28 [shape = 's32[2]{0}', space=sflag, size = 0x8, scoped, tag = 'scoped memory for _forward_impl.1']
    #allocation29 [shape = 'u8[65536]{0}', space=vmem, size = 0x10000, scoped, tag = 'output window, operand 6']
    %31 = vsyncpa [#allocation3], 0
    %s32 = scalar_lea.sflag [#allocation3], 1
    %33 = vsyncpa %s32, 0
    %34 = vsyncpa [#allocation6], 0
    %s35 = scalar_lea.sflag [#allocation6], 1
    %36 = vsyncpa %s35, 0
    %37 = vsyncpa [#allocation9], 0
    %38 = vsyncpa [#allocation12], 0
    %39 = vsyncpa [#allocation15], 0
    %40 = vsyncpa [#allocation18], 0
    %s41 = scalar_lea.sflag [#allocation18], 1
    %42 = vsyncpa %s41, 0
    %43 = vsyncpa [#allocation21], 0
    %s44 = scalar_lea.sflag [#allocation21], 1
    %45 = vsyncpa %s44, 0
    %46 = vsyncpa [#allocation4], 0
    %s47 = scalar_lea.sflag [#allocation4], 1
    %48 = vsyncpa %s47, 0
    %49 = vsyncpa [#allocation25], 0
    %s50 = scalar_lea.sflag [#allocation25], 1
    %51 = vsyncpa %s50, 0
    %52 = vsyncpa [#allocation28], 0
    %s53 = scalar_lea.sflag [#allocation28], 1
    %54 = vsyncpa %s53, 0
    loop: start=0, step=1, limit=4
    $region2: #{_forward_impl.1} parent=1 // loop_pre_header
      _
    $region3: #{_forward_impl.1} parent=1 // loop_header
      %s56 = sphi 0, %s60
      %p57 = scmp.ge.s32.totalorder %s56, 4
      %s66 = sphi 0, %s68
      %s69 = sphi 0, %s66
      %s70 = sphi 0, %s69
      %s86 = sphi 0, %s70
      %s92 = sphi 0, %s94
      %s95 = sphi 0, %s92
      %s96 = sphi 0, %s95
      %s112 = sphi 0, %s96
      %s116 = sphi 0, %s116
      %s118 = sphi 0, %s116
      %s119 = sphi 0, %s118
      %s133 = sphi 0, %s119
      %s137 = sphi 0, %s137
      %s139 = sphi 0, %s137
      %s140 = sphi 0, %s139
      %s154 = sphi 0, %s140
      %s158 = sphi 0, %s158
      %s160 = sphi 0, %s158
      %s161 = sphi 0, %s160
      %s175 = sphi 0, %s161
      %s179 = sphi 0, %s179
      %s181 = sphi 0, %s179
      %s182 = sphi 0, %s181
      %s196 = sphi 0, %s182
      %s200 = sphi 0, %s200
      %s202 = sphi 0, %s200
      %s203 = sphi 0, %s202
      %s217 = sphi 0, %s203
      %s221 = sphi 0, %s221
      %s223 = sphi 0, %s221
      %s224 = sphi 0, %s223
      %s238 = sphi 0, %s224
      %s242 = sphi 0, %s242
      %s244 = sphi 0, %s242
      %s245 = sphi 0, %s244
      %s259 = sphi 0, %s245
      %s263 = sphi 0, %s263
      %s265 = sphi 0, %s263
      %s266 = sphi 0, %s265
      %s280 = sphi 0, %s266
      %s284 = sphi 0, %s284
      %s286 = sphi 0, %s284
      %s287 = sphi 0, %s286
      %s301 = sphi 0, %s287
      %s307 = sphi 0, %s309
      %s310 = sphi 0, %s307
      %s311 = sphi 0, %s310
      %s327 = sphi 0, %s311
      %s333 = sphi 0, %s335
      %s336 = sphi 0, %s333
      %s337 = sphi 0, %s336
      %s353 = sphi 0, %s337
      %s359 = sphi 0, %s361
      %s362 = sphi 0, %s359
      %s363 = sphi 0, %s362
      %s379 = sphi 0, %s363
      %s385 = sphi 0, %s387
      %s388 = sphi 0, %s385
      %s389 = sphi 0, %s388
      %s405 = sphi 0, %s389
      %s411 = sphi 0, %s413
      %s414 = sphi 0, %s411
      %s415 = sphi 0, %s414
      %s431 = sphi 0, %s415
      %s437 = sphi 0, %s439
      %s440 = sphi 0, %s437
      %s441 = sphi 0, %s440
      %s457 = sphi 0, %s441
      %s463 = sphi 0, %s465
      %s466 = sphi 0, %s463
      %s467 = sphi 0, %s466
      %s483 = sphi 0, %s467
      %s489 = sphi 0, %s491
      %s492 = sphi 0, %s489
      %s493 = sphi 0, %s492
      %s509 = sphi 0, %s493
      %s515 = sphi 0, %s517
      %s518 = sphi 0, %s515
      %s519 = sphi 0, %s518
      %s535 = sphi 0, %s519
      %s541 = sphi 0, %s543
      %s544 = sphi 0, %s541
      %s545 = sphi 0, %s544
      %s561 = sphi 0, %s545
      %s567 = sphi 0, %s569
      %s570 = sphi 0, %s567
      %s571 = sphi 0, %s570
      %s587 = sphi 0, %s571
      %s593 = sphi 0, %s595
      %s596 = sphi 0, %s593
      %s597 = sphi 0, %s596
      %s613 = sphi 0, %s597
      %s619 = sphi 0, %s621
      %s622 = sphi 0, %s619
      %s623 = sphi 0, %s622
      %s639 = sphi 0, %s623
      %s645 = sphi 0, %s647
      %s648 = sphi 0, %s645
      %s649 = sphi 0, %s648
      %s665 = sphi 0, %s649
      %s671 = sphi 0, %s673
      %s674 = sphi 0, %s671
      %s675 = sphi 0, %s674
      %s691 = sphi 0, %s675
    $region4: #{_forward_impl.1} parent=1 // loop_header_branch
      %59 = sbr.rel (%p57) target = $region8
    $region5: #{_forward_impl.1} parent=1 // loop_body
      %s61 = ssub.s32 %s56, 1
      %s62 = ssub.s32 %s56, 2
      %s63 = sadd.s32 %s56, 1
      %s64 = ssub.s32 %s56, %s63
      %p65 = scmp.eq.s32.totalorder %s64, 0
      %s67 = sadd.s32 %s66, 1
      %s68 = scalar_select %p65, %s66, %s67
      %p71 = pneg %p65
      %p72 = scmp.eq.s32.totalorder %s56, 1
      %p73 = por %p71, %p72
      %p74 = scmp.ne.s32.totalorder %s66, %s69
      %p75 = scmp.eq.s32.totalorder %s56, 0
      %p76 = por %p74, %p75
      %p77 = scmp.ne.s32.totalorder %s66, %s69
      %p78 = scmp.eq.s32.totalorder %s61, 1
      %p79 = por %p77, %p78
      %p80 = scmp.ne.s32.totalorder %s69, %s70
      %p81 = scmp.eq.s32.totalorder %s61, 0
      %p82 = por %p80, %p81
      %p83 = scmp.ne.s32.totalorder %s69, %s70
      %p84 = scmp.eq.s32.totalorder %s62, 1
      %p85 = por %p83, %p84
      %p87 = scmp.ne.s32.totalorder %s70, %s86
      %p88 = scmp.eq.s32.totalorder %s62, 0
      %p89 = por %p87, %p88
      %s90 = ssub.s32 %s56, %s63
      %p91 = scmp.eq.s32.totalorder %s90, 0
      %s93 = sadd.s32 %s92, 1
      %s94 = scalar_select %p91, %s92, %s93
      %p97 = pneg %p91
      %p98 = scmp.eq.s32.totalorder %s56, 1
      %p99 = por %p97, %p98
      %p100 = scmp.ne.s32.totalorder %s92, %s95
      %p101 = scmp.eq.s32.totalorder %s56, 0
      %p102 = por %p100, %p101
      %p103 = scmp.ne.s32.totalorder %s92, %s95
      %p104 = scmp.eq.s32.totalorder %s61, 1
      %p105 = por %p103, %p104
      %p106 = scmp.ne.s32.totalorder %s95, %s96
      %p107 = scmp.eq.s32.totalorder %s61, 0
      %p108 = por %p106, %p107
      %p109 = scmp.ne.s32.totalorder %s95, %s96
      %p110 = scmp.eq.s32.totalorder %s62, 1
      %p111 = por %p109, %p110
      %p113 = scmp.ne.s32.totalorder %s96, %s112
      %p114 = scmp.eq.s32.totalorder %s62, 0
      %p115 = por %p113, %p114
      %s117 = sadd.s32 %s116, 1
      %p120 = scmp.eq.s32.totalorder %s56, 1
      %p121 = scmp.ne.s32.totalorder %s116, %s118
      %p122 = scmp.eq.s32.totalorder %s56, 0
      %p123 = por %p121, %p122
      %p124 = scmp.ne.s32.totalorder %s116, %s118
      %p125 = scmp.eq.s32.totalorder %s61, 1
      %p126 = por %p124, %p125
      %p127 = scmp.ne.s32.totalorder %s118, %s119
      %p128 = scmp.eq.s32.totalorder %s61, 0
      %p129 = por %p127, %p128
      %p130 = scmp.ne.s32.totalorder %s118, %s119
      %p131 = scmp.eq.s32.totalorder %s62, 1
      %p132 = por %p130, %p131
      %p134 = scmp.ne.s32.totalorder %s119, %s133
      %p135 = scmp.eq.s32.totalorder %s62, 0
      %p136 = por %p134, %p135
      %s138 = sadd.s32 %s137, 1
      %p141 = scmp.eq.s32.totalorder %s56, 1
      %p142 = scmp.ne.s32.totalorder %s137, %s139
      %p143 = scmp.eq.s32.totalorder %s56, 0
      %p144 = por %p142, %p143
      %p145 = scmp.ne.s32.totalorder %s137, %s139
      %p146 = scmp.eq.s32.totalorder %s61, 1
      %p147 = por %p145, %p146
      %p148 = scmp.ne.s32.totalorder %s139, %s140
      %p149 = scmp.eq.s32.totalorder %s61, 0
      %p150 = por %p148, %p149
      %p151 = scmp.ne.s32.totalorder %s139, %s140
      %p152 = scmp.eq.s32.totalorder %s62, 1
      %p153 = por %p151, %p152
      %p155 = scmp.ne.s32.totalorder %s140, %s154
      %p156 = scmp.eq.s32.totalorder %s62, 0
      %p157 = por %p155, %p156
      %s159 = sadd.s32 %s158, 1
      %p162 = scmp.eq.s32.totalorder %s56, 1
      %p163 = scmp.ne.s32.totalorder %s158, %s160
      %p164 = scmp.eq.s32.totalorder %s56, 0
      %p165 = por %p163, %p164
      %p166 = scmp.ne.s32.totalorder %s158, %s160
      %p167 = scmp.eq.s32.totalorder %s61, 1
      %p168 = por %p166, %p167
      %p169 = scmp.ne.s32.totalorder %s160, %s161
      %p170 = scmp.eq.s32.totalorder %s61, 0
      %p171 = por %p169, %p170
      %p172 = scmp.ne.s32.totalorder %s160, %s161
      %p173 = scmp.eq.s32.totalorder %s62, 1
      %p174 = por %p172, %p173
      %p176 = scmp.ne.s32.totalorder %s161, %s175
      %p177 = scmp.eq.s32.totalorder %s62, 0
      %p178 = por %p176, %p177
      %s180 = sadd.s32 %s179, 1
      %p183 = scmp.eq.s32.totalorder %s56, 1
      %p184 = scmp.ne.s32.totalorder %s179, %s181
      %p185 = scmp.eq.s32.totalorder %s56, 0
      %p186 = por %p184, %p185
      %p187 = scmp.ne.s32.totalorder %s179, %s181
      %p188 = scmp.eq.s32.totalorder %s61, 1
      %p189 = por %p187, %p188
      %p190 = scmp.ne.s32.totalorder %s181, %s182
      %p191 = scmp.eq.s32.totalorder %s61, 0
      %p192 = por %p190, %p191
      %p193 = scmp.ne.s32.totalorder %s181, %s182
      %p194 = scmp.eq.s32.totalorder %s62, 1
      %p195 = por %p193, %p194
      %p197 = scmp.ne.s32.totalorder %s182, %s196
      %p198 = scmp.eq.s32.totalorder %s62, 0
      %p199 = por %p197, %p198
      %s201 = sadd.s32 %s200, 1
      %p204 = scmp.eq.s32.totalorder %s56, 1
      %p205 = scmp.ne.s32.totalorder %s200, %s202
      %p206 = scmp.eq.s32.totalorder %s56, 0
      %p207 = por %p205, %p206
      %p208 = scmp.ne.s32.totalorder %s200, %s202
      %p209 = scmp.eq.s32.totalorder %s61, 1
      %p210 = por %p208, %p209
      %p211 = scmp.ne.s32.totalorder %s202, %s203
      %p212 = scmp.eq.s32.totalorder %s61, 0
      %p213 = por %p211, %p212
      %p214 = scmp.ne.s32.totalorder %s202, %s203
      %p215 = scmp.eq.s32.totalorder %s62, 1
      %p216 = por %p214, %p215
      %p218 = scmp.ne.s32.totalorder %s203, %s217
      %p219 = scmp.eq.s32.totalorder %s62, 0
      %p220 = por %p218, %p219
      %s222 = sadd.s32 %s221, 1
      %p225 = scmp.eq.s32.totalorder %s56, 1
      %p226 = scmp.ne.s32.totalorder %s221, %s223
      %p227 = scmp.eq.s32.totalorder %s56, 0
      %p228 = por %p226, %p227
      %p229 = scmp.ne.s32.totalorder %s221, %s223
      %p230 = scmp.eq.s32.totalorder %s61, 1
      %p231 = por %p229, %p230
      %p232 = scmp.ne.s32.totalorder %s223, %s224
      %p233 = scmp.eq.s32.totalorder %s61, 0
      %p234 = por %p232, %p233
      %p235 = scmp.ne.s32.totalorder %s223, %s224
      %p236 = scmp.eq.s32.totalorder %s62, 1
      %p237 = por %p235, %p236
      %p239 = scmp.ne.s32.totalorder %s224, %s238
      %p240 = scmp.eq.s32.totalorder %s62, 0
      %p241 = por %p239, %p240
      %s243 = sadd.s32 %s242, 1
      %p246 = scmp.eq.s32.totalorder %s56, 1
      %p247 = scmp.ne.s32.totalorder %s242, %s244
      %p248 = scmp.eq.s32.totalorder %s56, 0
      %p249 = por %p247, %p248
      %p250 = scmp.ne.s32.totalorder %s242, %s244
      %p251 = scmp.eq.s32.totalorder %s61, 1
      %p252 = por %p250, %p251
      %p253 = scmp.ne.s32.totalorder %s244, %s245
      %p254 = scmp.eq.s32.totalorder %s61, 0
      %p255 = por %p253, %p254
      %p256 = scmp.ne.s32.totalorder %s244, %s245
      %p257 = scmp.eq.s32.totalorder %s62, 1
      %p258 = por %p256, %p257
      %p260 = scmp.ne.s32.totalorder %s245, %s259
      %p261 = scmp.eq.s32.totalorder %s62, 0
      %p262 = por %p260, %p261
      %s264 = sadd.s32 %s263, 1
      %p267 = scmp.eq.s32.totalorder %s56, 1
      %p268 = scmp.ne.s32.totalorder %s263, %s265
      %p269 = scmp.eq.s32.totalorder %s56, 0
      %p270 = por %p268, %p269
      %p271 = scmp.ne.s32.totalorder %s263, %s265
      %p272 = scmp.eq.s32.totalorder %s61, 1
      %p273 = por %p271, %p272
      %p274 = scmp.ne.s32.totalorder %s265, %s266
      %p275 = scmp.eq.s32.totalorder %s61, 0
      %p276 = por %p274, %p275
      %p277 = scmp.ne.s32.totalorder %s265, %s266
      %p278 = scmp.eq.s32.totalorder %s62, 1
      %p279 = por %p277, %p278
      %p281 = scmp.ne.s32.totalorder %s266, %s280
      %p282 = scmp.eq.s32.totalorder %s62, 0
      %p283 = por %p281, %p282
      %s285 = sadd.s32 %s284, 1
      %p288 = scmp.eq.s32.totalorder %s56, 1
      %p289 = scmp.ne.s32.totalorder %s284, %s286
      %p290 = scmp.eq.s32.totalorder %s56, 0
      %p291 = por %p289, %p290
      %p292 = scmp.ne.s32.totalorder %s284, %s286
      %p293 = scmp.eq.s32.totalorder %s61, 1
      %p294 = por %p292, %p293
      %p295 = scmp.ne.s32.totalorder %s286, %s287
      %p296 = scmp.eq.s32.totalorder %s61, 0
      %p297 = por %p295, %p296
      %p298 = scmp.ne.s32.totalorder %s286, %s287
      %p299 = scmp.eq.s32.totalorder %s62, 1
      %p300 = por %p298, %p299
      %p302 = scmp.ne.s32.totalorder %s287, %s301
      %p303 = scmp.eq.s32.totalorder %s62, 0
      %p304 = por %p302, %p303
      %s305 = ssub.s32 %s56, %s63
      %p306 = scmp.eq.s32.totalorder %s305, 0
      %s308 = sadd.s32 %s307, 1
      %s309 = scalar_select %p306, %s307, %s308
      %p312 = pneg %p306
      %p313 = scmp.eq.s32.totalorder %s56, 1
      %p314 = por %p312, %p313
      %p315 = scmp.ne.s32.totalorder %s307, %s310
      %p316 = scmp.eq.s32.totalorder %s56, 0
      %p317 = por %p315, %p316
      %p318 = scmp.ne.s32.totalorder %s307, %s310
      %p319 = scmp.eq.s32.totalorder %s61, 1
      %p320 = por %p318, %p319
      %p321 = scmp.ne.s32.totalorder %s310, %s311
      %p322 = scmp.eq.s32.totalorder %s61, 0
      %p323 = por %p321, %p322
      %p324 = scmp.ne.s32.totalorder %s310, %s311
      %p325 = scmp.eq.s32.totalorder %s62, 1
      %p326 = por %p324, %p325
      %p328 = scmp.ne.s32.totalorder %s311, %s327
      %p329 = scmp.eq.s32.totalorder %s62, 0
      %p330 = por %p328, %p329
      %s331 = ssub.s32 %s56, %s63
      %p332 = scmp.eq.s32.totalorder %s331, 0
      %s334 = sadd.s32 %s333, 1
      %s335 = scalar_select %p332, %s333, %s334
      %p338 = pneg %p332
      %p339 = scmp.eq.s32.totalorder %s56, 1
      %p340 = por %p338, %p339
      %p341 = scmp.ne.s32.totalorder %s333, %s336
      %p342 = scmp.eq.s32.totalorder %s56, 0
      %p343 = por %p341, %p342
      %p344 = scmp.ne.s32.totalorder %s333, %s336
      %p345 = scmp.eq.s32.totalorder %s61, 1
      %p346 = por %p344, %p345
      %p347 = scmp.ne.s32.totalorder %s336, %s337
      %p348 = scmp.eq.s32.totalorder %s61, 0
      %p349 = por %p347, %p348
      %p350 = scmp.ne.s32.totalorder %s336, %s337
      %p351 = scmp.eq.s32.totalorder %s62, 1
      %p352 = por %p350, %p351
      %p354 = scmp.ne.s32.totalorder %s337, %s353
      %p355 = scmp.eq.s32.totalorder %s62, 0
      %p356 = por %p354, %p355
      %s357 = ssub.s32 %s56, %s63
      %p358 = scmp.eq.s32.totalorder %s357, 0
      %s360 = sadd.s32 %s359, 1
      %s361 = scalar_select %p358, %s359, %s360
      %p364 = pneg %p358
      %p365 = scmp.eq.s32.totalorder %s56, 1
      %p366 = por %p364, %p365
      %p367 = scmp.ne.s32.totalorder %s359, %s362
      %p368 = scmp.eq.s32.totalorder %s56, 0
      %p369 = por %p367, %p368
      %p370 = scmp.ne.s32.totalorder %s359, %s362
      %p371 = scmp.eq.s32.totalorder %s61, 1
      %p372 = por %p370, %p371
      %p373 = scmp.ne.s32.totalorder %s362, %s363
      %p374 = scmp.eq.s32.totalorder %s61, 0
      %p375 = por %p373, %p374
      %p376 = scmp.ne.s32.totalorder %s362, %s363
      %p377 = scmp.eq.s32.totalorder %s62, 1
      %p378 = por %p376, %p377
      %p380 = scmp.ne.s32.totalorder %s363, %s379
      %p381 = scmp.eq.s32.totalorder %s62, 0
      %p382 = por %p380, %p381
      %s383 = ssub.s32 %s56, %s63
      %p384 = scmp.eq.s32.totalorder %s383, 0
      %s386 = sadd.s32 %s385, 1
      %s387 = scalar_select %p384, %s385, %s386
      %p390 = pneg %p384
      %p391 = scmp.eq.s32.totalorder %s56, 1
      %p392 = por %p390, %p391
      %p393 = scmp.ne.s32.totalorder %s385, %s388
      %p394 = scmp.eq.s32.totalorder %s56, 0
      %p395 = por %p393, %p394
      %p396 = scmp.ne.s32.totalorder %s385, %s388
      %p397 = scmp.eq.s32.totalorder %s61, 1
      %p398 = por %p396, %p397
      %p399 = scmp.ne.s32.totalorder %s388, %s389
      %p400 = scmp.eq.s32.totalorder %s61, 0
      %p401 = por %p399, %p400
      %p402 = scmp.ne.s32.totalorder %s388, %s389
      %p403 = scmp.eq.s32.totalorder %s62, 1
      %p404 = por %p402, %p403
      %p406 = scmp.ne.s32.totalorder %s389, %s405
      %p407 = scmp.eq.s32.totalorder %s62, 0
      %p408 = por %p406, %p407
      %s409 = ssub.s32 %s56, %s63
      %p410 = scmp.eq.s32.totalorder %s409, 0
      %s412 = sadd.s32 %s411, 1
      %s413 = scalar_select %p410, %s411, %s412
      %p416 = pneg %p410
      %p417 = scmp.eq.s32.totalorder %s56, 1
      %p418 = por %p416, %p417
      %p419 = scmp.ne.s32.totalorder %s411, %s414
      %p420 = scmp.eq.s32.totalorder %s56, 0
      %p421 = por %p419, %p420
      %p422 = scmp.ne.s32.totalorder %s411, %s414
      %p423 = scmp.eq.s32.totalorder %s61, 1
      %p424 = por %p422, %p423
      %p425 = scmp.ne.s32.totalorder %s414, %s415
      %p426 = scmp.eq.s32.totalorder %s61, 0
      %p427 = por %p425, %p426
      %p428 = scmp.ne.s32.totalorder %s414, %s415
      %p429 = scmp.eq.s32.totalorder %s62, 1
      %p430 = por %p428, %p429
      %p432 = scmp.ne.s32.totalorder %s415, %s431
      %p433 = scmp.eq.s32.totalorder %s62, 0
      %p434 = por %p432, %p433
      %s435 = ssub.s32 %s56, %s63
      %p436 = scmp.eq.s32.totalorder %s435, 0
      %s438 = sadd.s32 %s437, 1
      %s439 = scalar_select %p436, %s437, %s438
      %p442 = pneg %p436
      %p443 = scmp.eq.s32.totalorder %s56, 1
      %p444 = por %p442, %p443
      %p445 = scmp.ne.s32.totalorder %s437, %s440
      %p446 = scmp.eq.s32.totalorder %s56, 0
      %p447 = por %p445, %p446
      %p448 = scmp.ne.s32.totalorder %s437, %s440
      %p449 = scmp.eq.s32.totalorder %s61, 1
      %p450 = por %p448, %p449
      %p451 = scmp.ne.s32.totalorder %s440, %s441
      %p452 = scmp.eq.s32.totalorder %s61, 0
      %p453 = por %p451, %p452
      %p454 = scmp.ne.s32.totalorder %s440, %s441
      %p455 = scmp.eq.s32.totalorder %s62, 1
      %p456 = por %p454, %p455
      %p458 = scmp.ne.s32.totalorder %s441, %s457
      %p459 = scmp.eq.s32.totalorder %s62, 0
      %p460 = por %p458, %p459
      %s461 = ssub.s32 %s56, %s63
      %p462 = scmp.eq.s32.totalorder %s461, 0
      %s464 = sadd.s32 %s463, 1
      %s465 = scalar_select %p462, %s463, %s464
      %p468 = pneg %p462
      %p469 = scmp.eq.s32.totalorder %s56, 1
      %p470 = por %p468, %p469
      %p471 = scmp.ne.s32.totalorder %s463, %s466
      %p472 = scmp.eq.s32.totalorder %s56, 0
      %p473 = por %p471, %p472
      %p474 = scmp.ne.s32.totalorder %s463, %s466
      %p475 = scmp.eq.s32.totalorder %s61, 1
      %p476 = por %p474, %p475
      %p477 = scmp.ne.s32.totalorder %s466, %s467
      %p478 = scmp.eq.s32.totalorder %s61, 0
      %p479 = por %p477, %p478
      %p480 = scmp.ne.s32.totalorder %s466, %s467
      %p481 = scmp.eq.s32.totalorder %s62, 1
      %p482 = por %p480, %p481
      %p484 = scmp.ne.s32.totalorder %s467, %s483
      %p485 = scmp.eq.s32.totalorder %s62, 0
      %p486 = por %p484, %p485
      %s487 = ssub.s32 %s56, %s63
      %p488 = scmp.eq.s32.totalorder %s487, 0
      %s490 = sadd.s32 %s489, 1
      %s491 = scalar_select %p488, %s489, %s490
      %p494 = pneg %p488
      %p495 = scmp.eq.s32.totalorder %s56, 1
      %p496 = por %p494, %p495
      %p497 = scmp.ne.s32.totalorder %s489, %s492
      %p498 = scmp.eq.s32.totalorder %s56, 0
      %p499 = por %p497, %p498
      %p500 = scmp.ne.s32.totalorder %s489, %s492
      %p501 = scmp.eq.s32.totalorder %s61, 1
      %p502 = por %p500, %p501
      %p503 = scmp.ne.s32.totalorder %s492, %s493
      %p504 = scmp.eq.s32.totalorder %s61, 0
      %p505 = por %p503, %p504
      %p506 = scmp.ne.s32.totalorder %s492, %s493
      %p507 = scmp.eq.s32.totalorder %s62, 1
      %p508 = por %p506, %p507
      %p510 = scmp.ne.s32.totalorder %s493, %s509
      %p511 = scmp.eq.s32.totalorder %s62, 0
      %p512 = por %p510, %p511
      %s513 = ssub.s32 %s56, %s63
      %p514 = scmp.eq.s32.totalorder %s513, 0
      %s516 = sadd.s32 %s515, 1
      %s517 = scalar_select %p514, %s515, %s516
      %p520 = pneg %p514
      %p521 = scmp.eq.s32.totalorder %s56, 1
      %p522 = por %p520, %p521
      %p523 = scmp.ne.s32.totalorder %s515, %s518
      %p524 = scmp.eq.s32.totalorder %s56, 0
      %p525 = por %p523, %p524
      %p526 = scmp.ne.s32.totalorder %s515, %s518
      %p527 = scmp.eq.s32.totalorder %s61, 1
      %p528 = por %p526, %p527
      %p529 = scmp.ne.s32.totalorder %s518, %s519
      %p530 = scmp.eq.s32.totalorder %s61, 0
      %p531 = por %p529, %p530
      %p532 = scmp.ne.s32.totalorder %s518, %s519
      %p533 = scmp.eq.s32.totalorder %s62, 1
      %p534 = por %p532, %p533
      %p536 = scmp.ne.s32.totalorder %s519, %s535
      %p537 = scmp.eq.s32.totalorder %s62, 0
      %p538 = por %p536, %p537
      %s539 = ssub.s32 %s56, %s63
      %p540 = scmp.eq.s32.totalorder %s539, 0
      %s542 = sadd.s32 %s541, 1
      %s543 = scalar_select %p540, %s541, %s542
      %p546 = pneg %p540
      %p547 = scmp.eq.s32.totalorder %s56, 1
      %p548 = por %p546, %p547
      %p549 = scmp.ne.s32.totalorder %s541, %s544
      %p550 = scmp.eq.s32.totalorder %s56, 0
      %p551 = por %p549, %p550
      %p552 = scmp.ne.s32.totalorder %s541, %s544
      %p553 = scmp.eq.s32.totalorder %s61, 1
      %p554 = por %p552, %p553
      %p555 = scmp.ne.s32.totalorder %s544, %s545
      %p556 = scmp.eq.s32.totalorder %s61, 0
      %p557 = por %p555, %p556
      %p558 = scmp.ne.s32.totalorder %s544, %s545
      %p559 = scmp.eq.s32.totalorder %s62, 1
      %p560 = por %p558, %p559
      %p562 = scmp.ne.s32.totalorder %s545, %s561
      %p563 = scmp.eq.s32.totalorder %s62, 0
      %p564 = por %p562, %p563
      %s565 = ssub.s32 %s56, %s63
      %p566 = scmp.eq.s32.totalorder %s565, 0
      %s568 = sadd.s32 %s567, 1
      %s569 = scalar_select %p566, %s567, %s568
      %p572 = pneg %p566
      %p573 = scmp.eq.s32.totalorder %s56, 1
      %p574 = por %p572, %p573
      %p575 = scmp.ne.s32.totalorder %s567, %s570
      %p576 = scmp.eq.s32.totalorder %s56, 0
      %p577 = por %p575, %p576
      %p578 = scmp.ne.s32.totalorder %s567, %s570
      %p579 = scmp.eq.s32.totalorder %s61, 1
      %p580 = por %p578, %p579
      %p581 = scmp.ne.s32.totalorder %s570, %s571
      %p582 = scmp.eq.s32.totalorder %s61, 0
      %p583 = por %p581, %p582
      %p584 = scmp.ne.s32.totalorder %s570, %s571
      %p585 = scmp.eq.s32.totalorder %s62, 1
      %p586 = por %p584, %p585
      %p588 = scmp.ne.s32.totalorder %s571, %s587
      %p589 = scmp.eq.s32.totalorder %s62, 0
      %p590 = por %p588, %p589
      %s591 = ssub.s32 %s56, %s63
      %p592 = scmp.eq.s32.totalorder %s591, 0
      %s594 = sadd.s32 %s593, 1
      %s595 = scalar_select %p592, %s593, %s594
      %p598 = pneg %p592
      %p599 = scmp.eq.s32.totalorder %s56, 1
      %p600 = por %p598, %p599
      %p601 = scmp.ne.s32.totalorder %s593, %s596
      %p602 = scmp.eq.s32.totalorder %s56, 0
      %p603 = por %p601, %p602
      %p604 = scmp.ne.s32.totalorder %s593, %s596
      %p605 = scmp.eq.s32.totalorder %s61, 1
      %p606 = por %p604, %p605
      %p607 = scmp.ne.s32.totalorder %s596, %s597
      %p608 = scmp.eq.s32.totalorder %s61, 0
      %p609 = por %p607, %p608
      %p610 = scmp.ne.s32.totalorder %s596, %s597
      %p611 = scmp.eq.s32.totalorder %s62, 1
      %p612 = por %p610, %p611
      %p614 = scmp.ne.s32.totalorder %s597, %s613
      %p615 = scmp.eq.s32.totalorder %s62, 0
      %p616 = por %p614, %p615
      %s617 = ssub.s32 %s56, %s63
      %p618 = scmp.eq.s32.totalorder %s617, 0
      %s620 = sadd.s32 %s619, 1
      %s621 = scalar_select %p618, %s619, %s620
      %p624 = pneg %p618
      %p625 = scmp.eq.s32.totalorder %s56, 1
      %p626 = por %p624, %p625
      %p627 = scmp.ne.s32.totalorder %s619, %s622
      %p628 = scmp.eq.s32.totalorder %s56, 0
      %p629 = por %p627, %p628
      %p630 = scmp.ne.s32.totalorder %s619, %s622
      %p631 = scmp.eq.s32.totalorder %s61, 1
      %p632 = por %p630, %p631
      %p633 = scmp.ne.s32.totalorder %s622, %s623
      %p634 = scmp.eq.s32.totalorder %s61, 0
      %p635 = por %p633, %p634
      %p636 = scmp.ne.s32.totalorder %s622, %s623
      %p637 = scmp.eq.s32.totalorder %s62, 1
      %p638 = por %p636, %p637
      %p640 = scmp.ne.s32.totalorder %s623, %s639
      %p641 = scmp.eq.s32.totalorder %s62, 0
      %p642 = por %p640, %p641
      %s643 = ssub.s32 %s56, %s63
      %p644 = scmp.eq.s32.totalorder %s643, 0
      %s646 = sadd.s32 %s645, 1
      %s647 = scalar_select %p644, %s645, %s646
      %p650 = pneg %p644
      %p651 = scmp.eq.s32.totalorder %s56, 1
      %p652 = por %p650, %p651
      %p653 = scmp.ne.s32.totalorder %s645, %s648
      %p654 = scmp.eq.s32.totalorder %s56, 0
      %p655 = por %p653, %p654
      %p656 = scmp.ne.s32.totalorder %s645, %s648
      %p657 = scmp.eq.s32.totalorder %s61, 1
      %p658 = por %p656, %p657
      %p659 = scmp.ne.s32.totalorder %s648, %s649
      %p660 = scmp.eq.s32.totalorder %s61, 0
      %p661 = por %p659, %p660
      %p662 = scmp.ne.s32.totalorder %s648, %s649
      %p663 = scmp.eq.s32.totalorder %s62, 1
      %p664 = por %p662, %p663
      %p666 = scmp.ne.s32.totalorder %s649, %s665
      %p667 = scmp.eq.s32.totalorder %s62, 0
      %p668 = por %p666, %p667
      %s669 = ssub.s32 %s56, %s63
      %p670 = scmp.eq.s32.totalorder %s669, 0
      %s672 = sadd.s32 %s671, 1
      %s673 = scalar_select %p670, %s671, %s672
      %p676 = pneg %p670
      %p677 = scmp.eq.s32.totalorder %s56, 1
      %p678 = por %p676, %p677
      %p679 = scmp.ne.s32.totalorder %s671, %s674
      %p680 = scmp.eq.s32.totalorder %s56, 0
      %p681 = por %p679, %p680
      %p682 = scmp.ne.s32.totalorder %s671, %s674
      %p683 = scmp.eq.s32.totalorder %s61, 1
      %p684 = por %p682, %p683
      %p685 = scmp.ne.s32.totalorder %s674, %s675
      %p686 = scmp.eq.s32.totalorder %s61, 0
      %p687 = por %p685, %p686
      %p688 = scmp.ne.s32.totalorder %s674, %s675
      %p689 = scmp.eq.s32.totalorder %s62, 1
      %p690 = por %p688, %p689
      %p692 = scmp.ne.s32.totalorder %s675, %s691
      %p693 = scmp.eq.s32.totalorder %s62, 0
      %p694 = por %p692, %p693
      %p695 = scmp.le.s32.totalorder 1, %s56
      %p696 = scmp.lt.s32.totalorder %s56, 3
      %p697 = pnand %p695, %p696
      %p698 = pneg %p697
      // Predicated region
      $region9: #{_forward_impl.1} parent=5 // pred_check
        _
      $region10: #{_forward_impl.1} parent=5 // pred_check_branch
        %700 = sbr.rel (%p697) target = $region12
      $region11: #{_forward_impl.1} parent=5 // pred_region
        %s701 = ssub.s32 %s56, 1
        // Predicated region
        $region13: #{_forward_impl.1} parent=11 // pred_check
          %p702 = pneg %p129
        $region14: #{_forward_impl.1} parent=11 // pred_check_branch
          %704 = sbr.rel (%p702) target = $region16
        $region15: #{_forward_impl.1} parent=11 // pred_region
          %706 = vsyncadd [#allocation6], 0
          %s707 = sshll.u32 %s2, 4
          %s708 = int_to_ptr.hbm [resolvable:$true] %s707
          %s709 = sshll.u32 [#allocation7], 4
          %s710 = int_to_ptr.vmem [resolvable:$true] %s709
          %715 = dma.hbm_to_vmem [thread:$0]  %s708, 512, %s710, [#allocation6], 128, 128, 8
        $region16: #{_forward_impl.1} parent=11 // pred_fallthru
          _
        // Predicated region
        $region17: #{_forward_impl.1} parent=11 // pred_check
          %p716 = pneg %p150
        $region18: #{_forward_impl.1} parent=11 // pred_check_branch
          %718 = sbr.rel (%p716) target = $region20
        $region19: #{_forward_impl.1} parent=11 // pred_region
          %720 = vsyncadd [#allocation9], 0
          %s721 = sshll.u32 %s3, 4
          %s722 = int_to_ptr.hbm [resolvable:$true] %s721
          %s723 = sshll.u32 [#allocation8], 4
          %s724 = int_to_ptr.vmem [resolvable:$true] %s723
          %729 = dma.hbm_to_vmem [thread:$0]  %s722, 512, %s724, [#allocation9], 128, 128, 8
        $region20: #{_forward_impl.1} parent=11 // pred_fallthru
          _
        // Predicated region
        $region21: #{_forward_impl.1} parent=11 // pred_check
          %p730 = pneg %p171
        $region22: #{_forward_impl.1} parent=11 // pred_check_branch
          %732 = sbr.rel (%p730) target = $region24
        $region23: #{_forward_impl.1} parent=11 // pred_region
          %734 = vsyncadd [#allocation9], 0
          %s735 = sshll.u32 %s4, 4
          %s736 = int_to_ptr.hbm [resolvable:$true] %s735
          %s737 = sshll.u32 [#allocation10], 4
          %s738 = int_to_ptr.vmem [resolvable:$true] %s737
          %743 = dma.hbm_to_vmem [thread:$0]  %s736, 512, %s738, [#allocation9], 128, 128, 8
        $region24: #{_forward_impl.1} parent=11 // pred_fallthru
          _
        // Predicated region
        $region25: #{_forward_impl.1} parent=11 // pred_check
          %p744 = pneg %p192
        $region26: #{_forward_impl.1} parent=11 // pred_check_branch
          %746 = sbr.rel (%p744) target = $region28
        $region27: #{_forward_impl.1} parent=11 // pred_region
          _
        $region28: #{_forward_impl.1} parent=11 // pred_fallthru
          _
        // Predicated region
        $region29: #{_forward_impl.1} parent=11 // pred_check
          %p747 = pneg %p213
        $region30: #{_forward_impl.1} parent=11 // pred_check_branch
          %749 = sbr.rel (%p747) target = $region32
        $region31: #{_forward_impl.1} parent=11 // pred_region
          _
        $region32: #{_forward_impl.1} parent=11 // pred_fallthru
          _
        // Predicated region
        $region33: #{_forward_impl.1} parent=11 // pred_check
          %p750 = pneg %p234
        $region34: #{_forward_impl.1} parent=11 // pred_check_branch
          %752 = sbr.rel (%p750) target = $region36
        $region35: #{_forward_impl.1} parent=11 // pred_region
          %754 = vsyncadd [#allocation12], 0
          %s755 = sshll.u32 %s7, 4
          %s756 = int_to_ptr.hbm [resolvable:$true] %s755
          %s757 = sshll.u32 [#allocation11], 4
          %s758 = int_to_ptr.vmem [resolvable:$true] %s757
          %763 = dma.hbm_to_vmem [thread:$0]  %s756, 4096, %s758, [#allocation12], 1024, 1024, 64
        $region36: #{_forward_impl.1} parent=11 // pred_fallthru
          _
        // Predicated region
        $region37: #{_forward_impl.1} parent=11 // pred_check
          %p764 = pneg %p255
        $region38: #{_forward_impl.1} parent=11 // pred_check_branch
          %766 = sbr.rel (%p764) target = $region40
        $region39: #{_forward_impl.1} parent=11 // pred_region
          %768 = vsyncadd [#allocation12], 0
          %s769 = sshll.u32 %s8, 4
          %s770 = int_to_ptr.hbm [resolvable:$true] %s769
          %s771 = sshll.u32 [#allocation13], 4
          %s772 = int_to_ptr.vmem [resolvable:$true] %s771
          %777 = dma.hbm_to_vmem [thread:$0]  %s770, 4096, %s772, [#allocation12], 1024, 1024, 64
        $region40: #{_forward_impl.1} parent=11 // pred_fallthru
          _
        // Predicated region
        $region41: #{_forward_impl.1} parent=11 // pred_check
          %p778 = pneg %p276
        $region42: #{_forward_impl.1} parent=11 // pred_check_branch
          %780 = sbr.rel (%p778) target = $region44
        $region43: #{_forward_impl.1} parent=11 // pred_region
          %782 = vsyncadd [#allocation15], 0
          %s783 = sshll.u32 %s9, 4
          %s784 = int_to_ptr.hbm [resolvable:$true] %s783
          %s785 = sshll.u32 [#allocation14], 4
          %s786 = int_to_ptr.vmem [resolvable:$true] %s785
          %791 = dma.hbm_to_vmem [thread:$0]  %s784, 4096, %s786, [#allocation15], 1024, 1024, 64
        $region44: #{_forward_impl.1} parent=11 // pred_fallthru
          _
        // Predicated region
        $region45: #{_forward_impl.1} parent=11 // pred_check
          %p792 = pneg %p297
        $region46: #{_forward_impl.1} parent=11 // pred_check_branch
          %794 = sbr.rel (%p792) target = $region48
        $region47: #{_forward_impl.1} parent=11 // pred_region
          %796 = vsyncadd [#allocation15], 0
          %s797 = sshll.u32 %s10, 4
          %s798 = int_to_ptr.hbm [resolvable:$true] %s797
          %s799 = sshll.u32 [#allocation16], 4
          %s800 = int_to_ptr.vmem [resolvable:$true] %s799
          %805 = dma.hbm_to_vmem [thread:$0]  %s798, 4096, %s800, [#allocation15], 1024, 1024, 64
        $region48: #{_forward_impl.1} parent=11 // pred_fallthru
          _
      $region12: #{_forward_impl.1} parent=5 // pred_fallthru
        _
      %p806 = scmp.lt.s32.totalorder %s56, 2
      // Predicated region
      $region49: #{_forward_impl.1} parent=5 // pred_check
        %p807 = pneg %p806
      $region50: #{_forward_impl.1} parent=5 // pred_check_branch
        %809 = sbr.rel (%p807) target = $region52
      $region51: #{_forward_impl.1} parent=5 // pred_region
        // Predicated region
        $region53: #{_forward_impl.1} parent=51 // pred_check
          %p810 = pneg %p76
        $region54: #{_forward_impl.1} parent=51 // pred_check_branch
          %812 = sbr.rel (%p810) target = $region56
        $region55: #{_forward_impl.1} parent=51 // pred_region
          %s813 = sand.u32 %s66, 1
          %s814 = scalar_lea.sflag [#allocation3], %s813
          %s815 = sand.u32 %s66, 1
          %s816 = smul.addr %s815, 8
          %s817 = scalar_lea.vmem [#allocation2], %s816
          %819 = vsyncadd %s814, 0
          %s820 = smul.addr %s56, 8
          %s821 = scalar_lea.hbm %s0, %s820
          %s823 = sshll.u32 %s821, 4
          %s824 = int_to_ptr.hbm [resolvable:$true] %s823
          %s825 = sshll.u32 %s817, 4
          %s826 = int_to_ptr.vmem [resolvable:$true] %s825
          %828 = dma.hbm_to_vmem [thread:$0]  %s824, 128, %s826, %s814
        $region56: #{_forward_impl.1} parent=51 // pred_fallthru
          _
        // Predicated region
        $region57: #{_forward_impl.1} parent=51 // pred_check
          %p829 = pneg %p102
        $region58: #{_forward_impl.1} parent=51 // pred_check_branch
          %831 = sbr.rel (%p829) target = $region60
        $region59: #{_forward_impl.1} parent=51 // pred_region
          %s832 = sand.u32 %s56, 1
          %s833 = scalar_lea.sflag [#allocation6], %s832
          %s834 = sand.u32 %s92, 1
          %s835 = smul.addr %s834, 8
          %s836 = scalar_lea.vmem [#allocation5], %s835
          %838 = vsyncadd %s833, 0
          %s839 = smul.addr %s56, 8
          %s840 = scalar_lea.hbm %s1, %s839
          %s842 = sshll.u32 %s840, 4
          %s843 = int_to_ptr.hbm [resolvable:$true] %s842
          %s844 = sshll.u32 %s836, 4
          %s845 = int_to_ptr.vmem [resolvable:$true] %s844
          %847 = dma.hbm_to_vmem [thread:$0]  %s843, 128, %s845, %s833
        $region60: #{_forward_impl.1} parent=51 // pred_fallthru
          _
        // Predicated region
        $region61: #{_forward_impl.1} parent=51 // pred_check
          %p848 = pneg %p317
        $region62: #{_forward_impl.1} parent=51 // pred_check_branch
          %850 = sbr.rel (%p848) target = $region64
        $region63: #{_forward_impl.1} parent=51 // pred_region
          %s851 = sand.u32 %s56, 1
          %s852 = scalar_lea.sflag [#allocation18], %s851
          %s853 = sand.u32 %s307, 1
          %s854 = smul.addr %s853, 64
          %s855 = scalar_lea.vmem [#allocation17], %s854
          %857 = vsyncadd %s852, 0
          %s858 = smul.addr %s56, 8
          %s859 = smul.addr %s858, 8
          %s860 = scalar_lea.hbm %s11, %s859
          %s862 = sshll.u32 %s860, 4
          %s863 = int_to_ptr.hbm [resolvable:$true] %s862
          %s864 = sshll.u32 %s855, 4
          %s865 = int_to_ptr.vmem [resolvable:$true] %s864
          %867 = dma.hbm_to_vmem [thread:$0]  %s863, 1024, %s865, %s852
        $region64: #{_forward_impl.1} parent=51 // pred_fallthru
          _
        // Predicated region
        $region65: #{_forward_impl.1} parent=51 // pred_check
          %p868 = pneg %p343
        $region66: #{_forward_impl.1} parent=51 // pred_check_branch
          %870 = sbr.rel (%p868) target = $region68
        $region67: #{_forward_impl.1} parent=51 // pred_region
          %s871 = sand.u32 %s56, 1
          %s872 = scalar_lea.sflag [#allocation18], %s871
          %s873 = sand.u32 %s333, 1
          %s874 = smul.addr %s873, 64
          %s875 = scalar_lea.vmem [#allocation19], %s874
          %877 = vsyncadd %s872, 0
          %s878 = smul.addr %s56, 8
          %s879 = smul.addr %s878, 8
          %s880 = scalar_lea.hbm %s12, %s879
          %s882 = sshll.u32 %s880, 4
          %s883 = int_to_ptr.hbm [resolvable:$true] %s882
          %s884 = sshll.u32 %s875, 4
          %s885 = int_to_ptr.vmem [resolvable:$true] %s884
          %887 = dma.hbm_to_vmem [thread:$0]  %s883, 1024, %s885, %s872
        $region68: #{_forward_impl.1} parent=51 // pred_fallthru
          _
        // Predicated region
        $region69: #{_forward_impl.1} parent=51 // pred_check
          %p888 = pneg %p369
        $region70: #{_forward_impl.1} parent=51 // pred_check_branch
          %890 = sbr.rel (%p888) target = $region72
        $region71: #{_forward_impl.1} parent=51 // pred_region
          %p891 = scmp.lt.s32.totalorder %s56, 1
          %s892 = scalar_select %p891, %s56, 1
          %s893 = smul.addr %s892, 8
          %s894 = scalar_lea.vmem %s13, %s893
        $region72: #{_forward_impl.1} parent=51 // pred_fallthru
          _
        // Predicated region
        $region73: #{_forward_impl.1} parent=51 // pred_check
          %p895 = pneg %p395
        $region74: #{_forward_impl.1} parent=51 // pred_check_branch
          %897 = sbr.rel (%p895) target = $region76
        $region75: #{_forward_impl.1} parent=51 // pred_region
          %s898 = sand.u32 %s56, 1
          %s899 = scalar_lea.sflag [#allocation21], %s898
          %s900 = sand.u32 %s385, 1
          %s901 = smul.addr %s900, 64
          %s902 = scalar_lea.vmem [#allocation20], %s901
          %904 = vsyncadd %s899, 0
          %s905 = smul.addr %s56, 8
          %s906 = smul.addr %s905, 8
          %s907 = scalar_lea.hbm %s14, %s906
          %s909 = sshll.u32 %s907, 4
          %s910 = int_to_ptr.hbm [resolvable:$true] %s909
          %s911 = sshll.u32 %s902, 4
          %s912 = int_to_ptr.vmem [resolvable:$true] %s911
          %914 = dma.hbm_to_vmem [thread:$0]  %s910, 1024, %s912, %s899
        $region76: #{_forward_impl.1} parent=51 // pred_fallthru
          _
        // Predicated region
        $region77: #{_forward_impl.1} parent=51 // pred_check
          %p915 = pneg %p421
        $region78: #{_forward_impl.1} parent=51 // pred_check_branch
          %917 = sbr.rel (%p915) target = $region80
        $region79: #{_forward_impl.1} parent=51 // pred_region
          %s918 = sand.u32 %s56, 1
          %s919 = scalar_lea.sflag [#allocation21], %s918
          %s920 = sand.u32 %s411, 1
          %s921 = smul.addr %s920, 64
          %s922 = scalar_lea.vmem [#allocation22], %s921
          %924 = vsyncadd %s919, 0
          %s925 = smul.addr %s56, 8
          %s926 = smul.addr %s925, 8
          %s927 = scalar_lea.hbm %s15, %s926
          %s929 = sshll.u32 %s927, 4
          %s930 = int_to_ptr.hbm [resolvable:$true] %s929
          %s931 = sshll.u32 %s922, 4
          %s932 = int_to_ptr.vmem [resolvable:$true] %s931
          %934 = dma.hbm_to_vmem [thread:$0]  %s930, 1024, %s932, %s919
        $region80: #{_forward_impl.1} parent=51 // pred_fallthru
          _
        // Predicated region
        $region81: #{_forward_impl.1} parent=51 // pred_check
          %p935 = pneg %p447
        $region82: #{_forward_impl.1} parent=51 // pred_check_branch
          %937 = sbr.rel (%p935) target = $region84
        $region83: #{_forward_impl.1} parent=51 // pred_region
          %p938 = scmp.lt.s32.totalorder %s56, 1
          %s939 = scalar_select %p938, %s56, 1
          %s940 = smul.addr %s939, 8
          %s941 = scalar_lea.vmem %s16, %s940
        $region84: #{_forward_impl.1} parent=51 // pred_fallthru
          _
      $region52: #{_forward_impl.1} parent=5 // pred_fallthru
        _
      %p942 = scmp.le.s32.totalorder 1, %s56
      %p943 = scmp.lt.s32.totalorder %s56, 3
      %p944 = pnand %p942, %p943
      %p945 = pneg %p944
      // Predicated region
      $region85: #{_forward_impl.1} parent=5 // pred_check
        _
      $region86: #{_forward_impl.1} parent=5 // pred_check_branch
        %947 = sbr.rel (%p944) target = $region88
      $region87: #{_forward_impl.1} parent=5 // pred_region
        %s948 = ssub.s32 %s56, 1
        %s949 = sand.u32 %s69, 1
        %s950 = scalar_lea.sflag [#allocation3], %s949
        %s951 = sand.u32 %s69, 1
        %s952 = smul.addr %s951, 8
        %s953 = scalar_lea.vmem [#allocation2], %s952
        // Predicated region
        $region89: #{_forward_impl.1} parent=87 // pred_check
          %p954 = pneg %p82
        $region90: #{_forward_impl.1} parent=87 // pred_check_branch
          %956 = sbr.rel (%p954) target = $region92
        $region91: #{_forward_impl.1} parent=87 // pred_region
          %958 = dma.done %s950, 128
        $region92: #{_forward_impl.1} parent=87 // pred_fallthru
          _
        %s959 = sand.u32 %s61, 1
        %s960 = scalar_lea.sflag [#allocation6], %s959
        %s961 = sand.u32 %s95, 1
        %s962 = smul.addr %s961, 8
        %s963 = scalar_lea.vmem [#allocation5], %s962
        // Predicated region
        $region93: #{_forward_impl.1} parent=87 // pred_check
          %p964 = pneg %p108
        $region94: #{_forward_impl.1} parent=87 // pred_check_branch
          %966 = sbr.rel (%p964) target = $region96
        $region95: #{_forward_impl.1} parent=87 // pred_region
          %968 = dma.done %s960, 128
        $region96: #{_forward_impl.1} parent=87 // pred_fallthru
          _
        // Predicated region
        $region97: #{_forward_impl.1} parent=87 // pred_check
          %p969 = pneg %p129
        $region98: #{_forward_impl.1} parent=87 // pred_check_branch
          %971 = sbr.rel (%p969) target = $region100
        $region99: #{_forward_impl.1} parent=87 // pred_region
          %973 = dma.done [#allocation6], 512
        $region100: #{_forward_impl.1} parent=87 // pred_fallthru
          _
        // Predicated region
        $region101: #{_forward_impl.1} parent=87 // pred_check
          %p974 = pneg %p150
        $region102: #{_forward_impl.1} parent=87 // pred_check_branch
          %976 = sbr.rel (%p974) target = $region104
        $region103: #{_forward_impl.1} parent=87 // pred_region
          %978 = dma.done [#allocation9], 512
        $region104: #{_forward_impl.1} parent=87 // pred_fallthru
          _
        // Predicated region
        $region105: #{_forward_impl.1} parent=87 // pred_check
          %p979 = pneg %p171
        $region106: #{_forward_impl.1} parent=87 // pred_check_branch
          %981 = sbr.rel (%p979) target = $region108
        $region107: #{_forward_impl.1} parent=87 // pred_region
          %983 = dma.done [#allocation9], 512
        $region108: #{_forward_impl.1} parent=87 // pred_fallthru
          _
        // Predicated region
        $region109: #{_forward_impl.1} parent=87 // pred_check
          %p984 = pneg %p234
        $region110: #{_forward_impl.1} parent=87 // pred_check_branch
          %986 = sbr.rel (%p984) target = $region112
        $region111: #{_forward_impl.1} parent=87 // pred_region
          %988 = dma.done [#allocation12], 4096
        $region112: #{_forward_impl.1} parent=87 // pred_fallthru
          _
        // Predicated region
        $region113: #{_forward_impl.1} parent=87 // pred_check
          %p989 = pneg %p255
        $region114: #{_forward_impl.1} parent=87 // pred_check_branch
          %991 = sbr.rel (%p989) target = $region116
        $region115: #{_forward_impl.1} parent=87 // pred_region
          %993 = dma.done [#allocation12], 4096
        $region116: #{_forward_impl.1} parent=87 // pred_fallthru
          _
        // Predicated region
        $region117: #{_forward_impl.1} parent=87 // pred_check
          %p994 = pneg %p276
        $region118: #{_forward_impl.1} parent=87 // pred_check_branch
          %996 = sbr.rel (%p994) target = $region120
        $region119: #{_forward_impl.1} parent=87 // pred_region
          %998 = dma.done [#allocation15], 4096
        $region120: #{_forward_impl.1} parent=87 // pred_fallthru
          _
        // Predicated region
        $region121: #{_forward_impl.1} parent=87 // pred_check
          %p999 = pneg %p297
        $region122: #{_forward_impl.1} parent=87 // pred_check_branch
          %1001 = sbr.rel (%p999) target = $region124
        $region123: #{_forward_impl.1} parent=87 // pred_region
          %1003 = dma.done [#allocation15], 4096
        $region124: #{_forward_impl.1} parent=87 // pred_fallthru
          _
        %s1004 = sand.u32 %s61, 1
        %s1005 = scalar_lea.sflag [#allocation18], %s1004
        %s1006 = sand.u32 %s310, 1
        %s1007 = smul.addr %s1006, 64
        %s1008 = scalar_lea.vmem [#allocation17], %s1007
        // Predicated region
        $region125: #{_forward_impl.1} parent=87 // pred_check
          %p1009 = pneg %p323
        $region126: #{_forward_impl.1} parent=87 // pred_check_branch
          %1011 = sbr.rel (%p1009) target = $region128
        $region127: #{_forward_impl.1} parent=87 // pred_region
          %1013 = dma.done %s1005, 1024
        $region128: #{_forward_impl.1} parent=87 // pred_fallthru
          _
        %s1014 = sand.u32 %s61, 1
        %s1015 = scalar_lea.sflag [#allocation18], %s1014
        %s1016 = sand.u32 %s336, 1
        %s1017 = smul.addr %s1016, 64
        %s1018 = scalar_lea.vmem [#allocation19], %s1017
        // Predicated region
        $region129: #{_forward_impl.1} parent=87 // pred_check
          %p1019 = pneg %p349
        $region130: #{_forward_impl.1} parent=87 // pred_check_branch
          %1021 = sbr.rel (%p1019) target = $region132
        $region131: #{_forward_impl.1} parent=87 // pred_region
          %1023 = dma.done %s1015, 1024
        $region132: #{_forward_impl.1} parent=87 // pred_fallthru
          _
        %s1024 = sand.u32 %s61, 1
        %s1025 = scalar_lea.sflag [#allocation21], %s1024
        %s1026 = sand.u32 %s388, 1
        %s1027 = smul.addr %s1026, 64
        %s1028 = scalar_lea.vmem [#allocation20], %s1027
        // Predicated region
        $region133: #{_forward_impl.1} parent=87 // pred_check
          %p1029 = pneg %p401
        $region134: #{_forward_impl.1} parent=87 // pred_check_branch
          %1031 = sbr.rel (%p1029) target = $region136
        $region135: #{_forward_impl.1} parent=87 // pred_region
          %1033 = dma.done %s1025, 1024
        $region136: #{_forward_impl.1} parent=87 // pred_fallthru
          _
        %s1034 = sand.u32 %s61, 1
        %s1035 = scalar_lea.sflag [#allocation21], %s1034
        %s1036 = sand.u32 %s414, 1
        %s1037 = smul.addr %s1036, 64
        %s1038 = scalar_lea.vmem [#allocation22], %s1037
        // Predicated region
        $region137: #{_forward_impl.1} parent=87 // pred_check
          %p1039 = pneg %p427
        $region138: #{_forward_impl.1} parent=87 // pred_check_branch
          %1041 = sbr.rel (%p1039) target = $region140
        $region139: #{_forward_impl.1} parent=87 // pred_region
          %1043 = dma.done %s1035, 1024
        $region140: #{_forward_impl.1} parent=87 // pred_fallthru
          _
        %s1044 = sand.u32 %s69, 1
        %s1045 = scalar_lea.sflag [#allocation3], %s1044
        %s1046 = sand.u32 %s69, 1
        %s1047 = smul.addr %s1046, 8
        %s1048 = scalar_lea.vmem [#allocation2], %s1047
        %p1049 = pneg %p82
        %p1050 = pneg %p79
        %s1051 = sand.u32 %s61, 1
        %s1052 = scalar_lea.sflag [#allocation6], %s1051
        %s1053 = sand.u32 %s95, 1
        %s1054 = smul.addr %s1053, 8
        %s1055 = scalar_lea.vmem [#allocation5], %s1054
        %p1056 = pneg %p108
        %p1057 = pneg %p105
        %p1058 = pneg %p129
        %p1059 = pneg %p126
        %p1060 = pneg %p150
        %p1061 = pneg %p147
        %p1062 = pneg %p171
        %p1063 = pneg %p168
        %p1064 = pneg %p192
        %p1065 = pneg %p189
        %p1066 = pneg %p213
        %p1067 = pneg %p210
        %p1068 = pneg %p234
        %p1069 = pneg %p231
        %p1070 = pneg %p255
        %p1071 = pneg %p252
        %p1072 = pneg %p276
        %p1073 = pneg %p273
        %p1074 = pneg %p297
        %p1075 = pneg %p294
        %s1076 = sand.u32 %s61, 1
        %s1077 = scalar_lea.sflag [#allocation18], %s1076
        %s1078 = sand.u32 %s310, 1
        %s1079 = smul.addr %s1078, 64
        %s1080 = scalar_lea.vmem [#allocation17], %s1079
        %p1081 = pneg %p323
        %p1082 = pneg %p320
        %s1083 = sand.u32 %s61, 1
        %s1084 = scalar_lea.sflag [#allocation18], %s1083
        %s1085 = sand.u32 %s336, 1
        %s1086 = smul.addr %s1085, 64
        %s1087 = scalar_lea.vmem [#allocation19], %s1086
        %p1088 = pneg %p349
        %p1089 = pneg %p346
        %p1090 = scmp.lt.s32.totalorder %s61, 1
        %s1091 = scalar_select %p1090, %s61, 1
        %s1092 = smul.addr %s1091, 8
        %s1093 = scalar_lea.vmem %s13, %s1092
        %p1094 = pneg %p375
        %p1095 = pneg %p372
        %s1096 = sand.u32 %s61, 1
        %s1097 = scalar_lea.sflag [#allocation21], %s1096
        %s1098 = sand.u32 %s388, 1
        %s1099 = smul.addr %s1098, 64
        %s1100 = scalar_lea.vmem [#allocation20], %s1099
        %p1101 = pneg %p401
        %p1102 = pneg %p398
        %s1103 = sand.u32 %s61, 1
        %s1104 = scalar_lea.sflag [#allocation21], %s1103
        %s1105 = sand.u32 %s414, 1
        %s1106 = smul.addr %s1105, 64
        %s1107 = scalar_lea.vmem [#allocation22], %s1106
        %p1108 = pneg %p427
        %p1109 = pneg %p424
        %p1110 = scmp.lt.s32.totalorder %s61, 1
        %s1111 = scalar_select %p1110, %s61, 1
        %s1112 = smul.addr %s1111, 8
        %s1113 = scalar_lea.vmem %s16, %s1112
        %p1114 = pneg %p453
        %p1115 = pneg %p450
        %p1116 = pneg %p479
        %p1117 = pneg %p476
        %s1118 = sand.u32 %s466, 1
        %s1119 = scalar_lea.sflag [#allocation4], %s1118
        %s1120 = sand.u32 %s466, 1
        %s1121 = smul.addr %s1120, 8
        %s1122 = scalar_lea.vmem [#allocation23], %s1121
        %p1123 = pneg %p505
        %p1124 = pneg %p502
        %p1125 = scmp.lt.s32.totalorder %s61, 1
        %s1126 = scalar_select %p1125, %s61, 1
        %s1127 = smul.addr %s1126, 8
        %s1128 = scalar_lea.vmem %s18, %s1127
        %p1129 = pneg %p531
        %p1130 = pneg %p528
        %s1131 = sand.u32 %s61, 1
        %s1132 = scalar_lea.sflag [#allocation25], %s1131
        %s1133 = sand.u32 %s518, 1
        %s1134 = smul.addr %s1133, 64
        %s1135 = scalar_lea.vmem [#allocation24], %s1134
        %p1136 = pneg %p557
        %p1137 = pneg %p554
        %s1138 = sand.u32 %s61, 1
        %s1139 = scalar_lea.sflag [#allocation25], %s1138
        %s1140 = sand.u32 %s544, 1
        %s1141 = smul.addr %s1140, 64
        %s1142 = scalar_lea.vmem [#allocation26], %s1141
        %p1143 = pneg %p583
        %p1144 = pneg %p580
        %p1145 = scmp.lt.s32.totalorder %s61, 1
        %s1146 = scalar_select %p1145, %s61, 1
        %s1147 = smul.addr %s1146, 8
        %s1148 = scalar_lea.vmem %s21, %s1147
        %p1149 = pneg %p609
        %p1150 = pneg %p606
        %s1151 = sand.u32 %s61, 1
        %s1152 = scalar_lea.sflag [#allocation28], %s1151
        %s1153 = sand.u32 %s596, 1
        %s1154 = smul.addr %s1153, 64
        %s1155 = scalar_lea.vmem [#allocation27], %s1154
        %p1156 = pneg %p635
        %p1157 = pneg %p632
        %s1158 = sand.u32 %s61, 1
        %s1159 = scalar_lea.sflag [#allocation28], %s1158
        %s1160 = sand.u32 %s622, 1
        %s1161 = smul.addr %s1160, 64
        %s1162 = scalar_lea.vmem [#allocation29], %s1161
        %p1163 = pneg %p661
        %p1164 = pneg %p658
        %p1165 = scmp.lt.s32.totalorder %s61, 1
        %s1166 = scalar_select %p1165, %s61, 1
        %s1167 = smul.addr %s1166, 8
        %s1168 = scalar_lea.vmem %s24, %s1167
        %p1169 = pneg %p687
        %p1170 = pneg %p684
        %p1171 = scmp.lt.s32.totalorder %s61, 1
        %s1172 = scalar_select %p1171, %s61, 1
        %s1173 = smul.addr %s1172, 8
        %s1174 = scalar_lea.vmem %s25, %s1173
        %p1175 = scmp.lt.s32.totalorder %s61, 1
        %s1176 = scalar_select %p1175, %s61, 1
        %s1177 = smul.addr %s1176, 8
        %s1178 = scalar_lea.vmem %s13, %s1177
        %p1179 = scmp.lt.s32.totalorder %s61, 1
        %s1180 = scalar_select %p1179, %s61, 1
        %s1181 = smul.addr %s1180, 8
        %s1182 = scalar_lea.vmem %s16, %s1181
        %p1183 = scmp.lt.s32.totalorder %s61, 1
        %s1184 = scalar_select %p1183, %s61, 1
        %s1185 = smul.addr %s1184, 8
        %s1186 = scalar_lea.vmem %s18, %s1185
        %p1187 = scmp.lt.s32.totalorder %s61, 1
        %s1188 = scalar_select %p1187, %s61, 1
        %s1189 = smul.addr %s1188, 8
        %s1190 = scalar_lea.vmem %s21, %s1189
        %p1191 = scmp.lt.s32.totalorder %s61, 1
        %s1192 = scalar_select %p1191, %s61, 1
        %s1193 = smul.addr %s1192, 8
        %s1194 = scalar_lea.vmem %s24, %s1193
        %p1195 = scmp.lt.s32.totalorder %s61, 1
        %s1196 = scalar_select %p1195, %s61, 1
        %s1197 = smul.addr %s1196, 8
        %s1198 = scalar_lea.vmem %s25, %s1197
        %v1199 = vld [vmem:[%s953] sm:$0xff]
        %v1200 = vld [vmem:[%s963] sm:$0xff]
        %v1201 = vld [vmem:[#allocation7] sm:$0xff]
        %v1202 = vld [vmem:[#allocation7 + $0x8] sm:$0xff]
        %v1203 = vld [vmem:[#allocation7 + $0x10] sm:$0xff]
        %v1204 = vld [vmem:[#allocation7 + $0x18] sm:$0xff]
        %vm1205 = vcmask 261120
        %v1207 = vsel %vm1205, %v1199, 0
        %1209 = vmatpush.msra.mxu0 0.0
        %1210 = vmatpush.msra.mxu0 0.0
        %1211 = vmatpush.msra.mxu0 0.0
        %1212 = vmatpush.msra.mxu0 0.0
        %1213 = vmatpush.msra.mxu0 0.0
        %1214 = vmatpush.msra.mxu0 0.0
        %1215 = vmatpush.msra.mxu0 0.0
        %1216 = vmatpush.msra.mxu0 0.0
        %1217 = vmatpush.msra.mxu0 0.0
        %1218 = vmatpush.msra.mxu0 0.0
        %1219 = vmatpush.msra.mxu0 0.0
        %1220 = vmatpush.msra.mxu0 0.0
        %1221 = vmatpush.msra.mxu0 %v1204
        %1222 = vmatpush.msra.mxu0 %v1203
        %1223 = vmatpush.msra.mxu0 %v1202
        %1224 = vmatpush.msra.mxu0 %v1201
        %1225 = vmatmul.f32.gmra.mxu0 %v1207
        %v1226 = vpop.f32.mrf.mxu0
        %v1227 = vadd.f32 0.0, %v1226
        %1228 = vdwg.mxu0
        %v1229 = vld [vmem:[#allocation8] sm:$0xff]
        %v1230 = vld [vmem:[#allocation8 + $0x8] sm:$0xff]
        %v1231 = vld [vmem:[#allocation8 + $0x10] sm:$0xff]
        %v1232 = vld [vmem:[#allocation8 + $0x18] sm:$0xff]
        %v1234 = vsel %vm1205, %v1200, 0
        %1236 = vmatpush.msra.mxu0 0.0
        %1237 = vmatpush.msra.mxu0 0.0
        %1238 = vmatpush.msra.mxu0 0.0
        %1239 = vmatpush.msra.mxu0 0.0
        %1240 = vmatpush.msra.mxu0 0.0
        %1241 = vmatpush.msra.mxu0 0.0
        %1242 = vmatpush.msra.mxu0 0.0
        %1243 = vmatpush.msra.mxu0 0.0
        %1244 = vmatpush.msra.mxu0 0.0
        %1245 = vmatpush.msra.mxu0 0.0
        %1246 = vmatpush.msra.mxu0 0.0
        %1247 = vmatpush.msra.mxu0 0.0
        %1248 = vmatpush.msra.mxu0 %v1232
        %1249 = vmatpush.msra.mxu0 %v1231
        %1250 = vmatpush.msra.mxu0 %v1230
        %1251 = vmatpush.msra.mxu0 %v1229
        %1252 = vmatmul.f32.gmra.mxu0 %v1234
        %v1253 = vpop.f32.mrf.mxu0
        %v1254 = vadd.f32 0.0, %v1253
        %1255 = vdwg.mxu0
        %v1256 = vadd.f32 %v1227, %v1254
        %v1257 = vld [vmem:[%s5] sm:$0x1]
        %v1259 = vperm.slane %v1257, 0
        %v1261 = vadd.f32 %v1256, %v1259
        %v1262 = vtanh.pop %v1261
        %v1263 = vmax.f32 %v1262, 0.0
        %1265 = vrot.lane.b32.xlu0 %v1262, 96
        %v1266 = vpop.permute.xlu0 %1265
        %v1268 = vmul.f32 %v1263, %v1266
        %v1269 = vsub.f32 1.0, %v1263
        %v1270 = vmul.f32 %v1269, %v1200
        %v1271 = vadd.f32 %v1268, %v1270
        %vm1272 = vcmp.gt.f32.partialorder %v1263, 0.0
        %v1273 = vsel %vm1272, 1.0, 0.0
        %v1274 = vmul.f32 %v1263, %v1263
        %v1275 = vsub.f32 1.0, %v1274
        %v1276 = vmul.f32 %v1275, %v1273
        %1277 = vrot.lane.b32.xlu0 %v1200, 32
        %v1278 = vpop.permute.xlu0 %1277
        %v1280 = vsub.f32 %v1262, %v1278
        %1282 = vrot.lane.b32.xlu0 %v1280, 96
        %v1283 = vpop.permute.xlu0 %1282
        %v1285 = vmul.f32 %v1276, %v1283
        %v1286 = vmul.f32 %v1262, %v1262
        %v1287 = vsub.f32 1.0, %v1286
        %1289 = vrot.lane.b32.xlu0 %v1263, 32
        %v1290 = vpop.permute.xlu0 %1289
        %v1292 = vmul.f32 %v1287, %v1290
        %v1293 = vld [vmem:[#allocation11] sm:$0xff]
        %v1294 = vld [vmem:[#allocation11 + $0x8] sm:$0xff]
        %v1295 = vld [vmem:[#allocation11 + $0x10] sm:$0xff]
        %v1296 = vld [vmem:[#allocation11 + $0x18] sm:$0xff]
        %v1297 = vld [vmem:[#allocation11 + $0x20] sm:$0xff]
        %v1298 = vld [vmem:[#allocation11 + $0x28] sm:$0xff]
        %v1299 = vld [vmem:[#allocation11 + $0x30] sm:$0xff]
        %v1300 = vld [vmem:[#allocation11 + $0x38] sm:$0xff]
        %v1301 = vld [vmem:[#allocation11 + $0x40] sm:$0xff]
        %v1302 = vld [vmem:[#allocation11 + $0x48] sm:$0xff]
        %v1303 = vld [vmem:[#allocation11 + $0x50] sm:$0xff]
        %v1304 = vld [vmem:[#allocation11 + $0x58] sm:$0xff]
        %v1305 = vld [vmem:[#allocation11 + $0x60] sm:$0xff]
        %v1306 = vld [vmem:[#allocation11 + $0x68] sm:$0xff]
        %v1307 = vld [vmem:[#allocation11 + $0x70] sm:$0xff]
        %v1308 = vld [vmem:[#allocation11 + $0x78] sm:$0xff]
        %v1309 = vld [vmem:[#allocation11 + $0x80] sm:$0xff]
        %v1310 = vld [vmem:[#allocation11 + $0x88] sm:$0xff]
        %v1311 = vld [vmem:[#allocation11 + $0x90] sm:$0xff]
        %v1312 = vld [vmem:[#allocation11 + $0x98] sm:$0xff]
        %v1313 = vld [vmem:[#allocation11 + $0xa0] sm:$0xff]
        %v1314 = vld [vmem:[#allocation11 + $0xa8] sm:$0xff]
        %v1315 = vld [vmem:[#allocation11 + $0xb0] sm:$0xff]
        %v1316 = vld [vmem:[#allocation11 + $0xb8] sm:$0xff]
        %v1317 = vld [vmem:[#allocation11 + $0xc0] sm:$0xff]
        %v1318 = vld [vmem:[#allocation11 + $0xc8] sm:$0xff]
        %v1319 = vld [vmem:[#allocation11 + $0xd0] sm:$0xff]
        %v1320 = vld [vmem:[#allocation11 + $0xd8] sm:$0xff]
        %v1321 = vld [vmem:[#allocation11 + $0xe0] sm:$0xff]
        %v1322 = vld [vmem:[#allocation11 + $0xe8] sm:$0xff]
        %v1323 = vld [vmem:[#allocation11 + $0xf0] sm:$0xff]
        %v1324 = vld [vmem:[#allocation11 + $0xf8] sm:$0xff]
        %v1325 = vld [vmem:[#allocation13] sm:$0xff]
        %v1326 = vld [vmem:[#allocation13 + $0x8] sm:$0xff]
        %v1327 = vld [vmem:[#allocation13 + $0x10] sm:$0xff]
        %v1328 = vld [vmem:[#allocation13 + $0x18] sm:$0xff]
        %v1329 = vld [vmem:[#allocation13 + $0x20] sm:$0xff]
        %v1330 = vld [vmem:[#allocation13 + $0x28] sm:$0xff]
        %v1331 = vld [vmem:[#allocation13 + $0x30] sm:$0xff]
        %v1332 = vld [vmem:[#allocation13 + $0x38] sm:$0xff]
        %v1333 = vld [vmem:[#allocation13 + $0x40] sm:$0xff]
        %v1334 = vld [vmem:[#allocation13 + $0x48] sm:$0xff]
        %v1335 = vld [vmem:[#allocation13 + $0x50] sm:$0xff]
        %v1336 = vld [vmem:[#allocation13 + $0x58] sm:$0xff]
        %v1337 = vld [vmem:[#allocation13 + $0x60] sm:$0xff]
        %v1338 = vld [vmem:[#allocation13 + $0x68] sm:$0xff]
        %v1339 = vld [vmem:[#allocation13 + $0x70] sm:$0xff]
        %v1340 = vld [vmem:[#allocation13 + $0x78] sm:$0xff]
        %v1341 = vld [vmem:[#allocation13 + $0x80] sm:$0xff]
        %v1342 = vld [vmem:[#allocation13 + $0x88] sm:$0xff]
        %v1343 = vld [vmem:[#allocation13 + $0x90] sm:$0xff]
        %v1344 = vld [vmem:[#allocation13 + $0x98] sm:$0xff]
        %v1345 = vld [vmem:[#allocation13 + $0xa0] sm:$0xff]
        %v1346 = vld [vmem:[#allocation13 + $0xa8] sm:$0xff]
        %v1347 = vld [vmem:[#allocation13 + $0xb0] sm:$0xff]
        %v1348 = vld [vmem:[#allocation13 + $0xb8] sm:$0xff]
        %v1349 = vld [vmem:[#allocation13 + $0xc0] sm:$0xff]
        %v1350 = vld [vmem:[#allocation13 + $0xc8] sm:$0xff]
        %v1351 = vld [vmem:[#allocation13 + $0xd0] sm:$0xff]
        %v1352 = vld [vmem:[#allocation13 + $0xd8] sm:$0xff]
        %v1353 = vld [vmem:[#allocation13 + $0xe0] sm:$0xff]
        %v1354 = vld [vmem:[#allocation13 + $0xe8] sm:$0xff]
        %v1355 = vld [vmem:[#allocation13 + $0xf0] sm:$0xff]
        %v1356 = vld [vmem:[#allocation13 + $0xf8] sm:$0xff]
        %v1358 = vsel %vm1205, %v1269, 0
        %1360 = vmatpush.msra.mxu0 0.0
        %1361 = vmatpush.msra.mxu0 0.0
        %1362 = vmatpush.msra.mxu0 0.0
        %1363 = vmatpush.msra.mxu0 0.0
        %1364 = vmatpush.msra.mxu0 0.0
        %1365 = vmatpush.msra.mxu0 0.0
        %1366 = vmatpush.msra.mxu0 0.0
        %1367 = vmatpush.msra.mxu0 0.0
        %1368 = vmatpush.msra.mxu0 0.0
        %1369 = vmatpush.msra.mxu0 0.0
        %1370 = vmatpush.msra.mxu0 0.0
        %1371 = vmatpush.msra.mxu0 0.0
        %1372 = vmatpush.msra.mxu0 %v1317
        %1373 = vmatpush.msra.mxu0 %v1309
        %1374 = vmatpush.msra.mxu0 %v1301
        %1375 = vmatpush.msra.mxu0 %v1293
        %1376 = vmatmul.f32.gmra.mxu0 %v1358
        %v1377 = vpop.f32.mrf.mxu0
        %v1378 = vadd.f32 0.0, %v1377
        %1379 = vdwg.mxu0
        %1380 = vmatpush.msra.mxu0 0.0
        %1381 = vmatpush.msra.mxu0 0.0
        %1382 = vmatpush.msra.mxu0 0.0
        %1383 = vmatpush.msra.mxu0 0.0
        %1384 = vmatpush.msra.mxu0 0.0
        %1385 = vmatpush.msra.mxu0 0.0
        %1386 = vmatpush.msra.mxu0 0.0
        %1387 = vmatpush.msra.mxu0 0.0
        %1388 = vmatpush.msra.mxu0 0.0
        %1389 = vmatpush.msra.mxu0 0.0
        %1390 = vmatpush.msra.mxu0 0.0
        %1391 = vmatpush.msra.mxu0 0.0
        %1392 = vmatpush.msra.mxu0 %v1318
        %1393 = vmatpush.msra.mxu0 %v1310
        %1394 = vmatpush.msra.mxu0 %v1302
        %1395 = vmatpush.msra.mxu0 %v1294
        %1396 = vmatmul.f32.gmra.mxu0 %v1358
        %v1397 = vpop.f32.mrf.mxu0
        %v1398 = vadd.f32 0.0, %v1397
        %1399 = vdwg.mxu0
        %1400 = vmatpush.msra.mxu0 0.0
        %1401 = vmatpush.msra.mxu0 0.0
        %1402 = vmatpush.msra.mxu0 0.0
        %1403 = vmatpush.msra.mxu0 0.0
        %1404 = vmatpush.msra.mxu0 0.0
        %1405 = vmatpush.msra.mxu0 0.0
        %1406 = vmatpush.msra.mxu0 0.0
        %1407 = vmatpush.msra.mxu0 0.0
        %1408 = vmatpush.msra.mxu0 0.0
        %1409 = vmatpush.msra.mxu0 0.0
        %1410 = vmatpush.msra.mxu0 0.0
        %1411 = vmatpush.msra.mxu0 0.0
        %1412 = vmatpush.msra.mxu0 %v1319
        %1413 = vmatpush.msra.mxu0 %v1311
        %1414 = vmatpush.msra.mxu0 %v1303
        %1415 = vmatpush.msra.mxu0 %v1295
        %1416 = vmatmul.f32.gmra.mxu0 %v1358
        %v1417 = vpop.f32.mrf.mxu0
        %v1418 = vadd.f32 0.0, %v1417
        %1419 = vdwg.mxu0
        %1420 = vmatpush.msra.mxu0 0.0
        %1421 = vmatpush.msra.mxu0 0.0
        %1422 = vmatpush.msra.mxu0 0.0
        %1423 = vmatpush.msra.mxu0 0.0
        %1424 = vmatpush.msra.mxu0 0.0
        %1425 = vmatpush.msra.mxu0 0.0
        %1426 = vmatpush.msra.mxu0 0.0
        %1427 = vmatpush.msra.mxu0 0.0
        %1428 = vmatpush.msra.mxu0 0.0
        %1429 = vmatpush.msra.mxu0 0.0
        %1430 = vmatpush.msra.mxu0 0.0
        %1431 = vmatpush.msra.mxu0 0.0
        %1432 = vmatpush.msra.mxu0 %v1320
        %1433 = vmatpush.msra.mxu0 %v1312
        %1434 = vmatpush.msra.mxu0 %v1304
        %1435 = vmatpush.msra.mxu0 %v1296
        %1436 = vmatmul.f32.gmra.mxu0 %v1358
        %v1437 = vpop.f32.mrf.mxu0
        %v1438 = vadd.f32 0.0, %v1437
        %1439 = vdwg.mxu0
        %1440 = vmatpush.msra.mxu0 0.0
        %1441 = vmatpush.msra.mxu0 0.0
        %1442 = vmatpush.msra.mxu0 0.0
        %1443 = vmatpush.msra.mxu0 0.0
        %1444 = vmatpush.msra.mxu0 0.0
        %1445 = vmatpush.msra.mxu0 0.0
        %1446 = vmatpush.msra.mxu0 0.0
        %1447 = vmatpush.msra.mxu0 0.0
        %1448 = vmatpush.msra.mxu0 0.0
        %1449 = vmatpush.msra.mxu0 0.0
        %1450 = vmatpush.msra.mxu0 0.0
        %1451 = vmatpush.msra.mxu0 0.0
        %1452 = vmatpush.msra.mxu0 %v1321
        %1453 = vmatpush.msra.mxu0 %v1313
        %1454 = vmatpush.msra.mxu0 %v1305
        %1455 = vmatpush.msra.mxu0 %v1297
        %1456 = vmatmul.f32.gmra.mxu0 %v1358
        %v1457 = vpop.f32.mrf.mxu0
        %v1458 = vadd.f32 0.0, %v1457
        %1459 = vdwg.mxu0
        %1460 = vmatpush.msra.mxu0 0.0
        %1461 = vmatpush.msra.mxu0 0.0
        %1462 = vmatpush.msra.mxu0 0.0
        %1463 = vmatpush.msra.mxu0 0.0
        %1464 = vmatpush.msra.mxu0 0.0
        %1465 = vmatpush.msra.mxu0 0.0
        %1466 = vmatpush.msra.mxu0 0.0
        %1467 = vmatpush.msra.mxu0 0.0
        %1468 = vmatpush.msra.mxu0 0.0
        %1469 = vmatpush.msra.mxu0 0.0
        %1470 = vmatpush.msra.mxu0 0.0
        %1471 = vmatpush.msra.mxu0 0.0
        %1472 = vmatpush.msra.mxu0 %v1322
        %1473 = vmatpush.msra.mxu0 %v1314
        %1474 = vmatpush.msra.mxu0 %v1306
        %1475 = vmatpush.msra.mxu0 %v1298
        %1476 = vmatmul.f32.gmra.mxu0 %v1358
        %v1477 = vpop.f32.mrf.mxu0
        %v1478 = vadd.f32 0.0, %v1477
        %1479 = vdwg.mxu0
        %1480 = vmatpush.msra.mxu0 0.0
        %1481 = vmatpush.msra.mxu0 0.0
        %1482 = vmatpush.msra.mxu0 0.0
        %1483 = vmatpush.msra.mxu0 0.0
        %1484 = vmatpush.msra.mxu0 0.0
        %1485 = vmatpush.msra.mxu0 0.0
        %1486 = vmatpush.msra.mxu0 0.0
        %1487 = vmatpush.msra.mxu0 0.0
        %1488 = vmatpush.msra.mxu0 0.0
        %1489 = vmatpush.msra.mxu0 0.0
        %1490 = vmatpush.msra.mxu0 0.0
        %1491 = vmatpush.msra.mxu0 0.0
        %1492 = vmatpush.msra.mxu0 %v1323
        %1493 = vmatpush.msra.mxu0 %v1315
        %1494 = vmatpush.msra.mxu0 %v1307
        %1495 = vmatpush.msra.mxu0 %v1299
        %1496 = vmatmul.f32.gmra.mxu0 %v1358
        %v1497 = vpop.f32.mrf.mxu0
        %v1498 = vadd.f32 0.0, %v1497
        %1499 = vdwg.mxu0
        %1500 = vmatpush.msra.mxu0 0.0
        %1501 = vmatpush.msra.mxu0 0.0
        %1502 = vmatpush.msra.mxu0 0.0
        %1503 = vmatpush.msra.mxu0 0.0
        %1504 = vmatpush.msra.mxu0 0.0
        %1505 = vmatpush.msra.mxu0 0.0
        %1506 = vmatpush.msra.mxu0 0.0
        %1507 = vmatpush.msra.mxu0 0.0
        %1508 = vmatpush.msra.mxu0 0.0
        %1509 = vmatpush.msra.mxu0 0.0
        %1510 = vmatpush.msra.mxu0 0.0
        %1511 = vmatpush.msra.mxu0 0.0
        %1512 = vmatpush.msra.mxu0 %v1324
        %1513 = vmatpush.msra.mxu0 %v1316
        %1514 = vmatpush.msra.mxu0 %v1308
        %1515 = vmatpush.msra.mxu0 %v1300
        %1516 = vmatmul.f32.gmra.mxu0 %v1358
        %v1517 = vpop.f32.mrf.mxu0
        %v1518 = vadd.f32 0.0, %v1517
        %1519 = vdwg.mxu0
        %1520 = vmatpush.msra.mxu0 0.0
        %1521 = vmatpush.msra.mxu0 0.0
        %1522 = vmatpush.msra.mxu0 0.0
        %1523 = vmatpush.msra.mxu0 0.0
        %1524 = vmatpush.msra.mxu0 0.0
        %1525 = vmatpush.msra.mxu0 0.0
        %1526 = vmatpush.msra.mxu0 0.0
        %1527 = vmatpush.msra.mxu0 0.0
        %1528 = vmatpush.msra.mxu0 0.0
        %1529 = vmatpush.msra.mxu0 0.0
        %1530 = vmatpush.msra.mxu0 0.0
        %1531 = vmatpush.msra.mxu0 0.0
        %1532 = vmatpush.msra.mxu0 %v1349
        %1533 = vmatpush.msra.mxu0 %v1341
        %1534 = vmatpush.msra.mxu0 %v1333
        %1535 = vmatpush.msra.mxu0 %v1325
        %1536 = vmatmul.f32.gmra.mxu0 %v1358
        %v1537 = vpop.f32.mrf.mxu0
        %v1538 = vadd.f32 0.0, %v1537
        %1539 = vdwg.mxu0
        %1540 = vmatpush.msra.mxu0 0.0
        %1541 = vmatpush.msra.mxu0 0.0
        %1542 = vmatpush.msra.mxu0 0.0
        %1543 = vmatpush.msra.mxu0 0.0
        %1544 = vmatpush.msra.mxu0 0.0
        %1545 = vmatpush.msra.mxu0 0.0
        %1546 = vmatpush.msra.mxu0 0.0
        %1547 = vmatpush.msra.mxu0 0.0
        %1548 = vmatpush.msra.mxu0 0.0
        %1549 = vmatpush.msra.mxu0 0.0
        %1550 = vmatpush.msra.mxu0 0.0
        %1551 = vmatpush.msra.mxu0 0.0
        %1552 = vmatpush.msra.mxu0 %v1350
        %1553 = vmatpush.msra.mxu0 %v1342
        %1554 = vmatpush.msra.mxu0 %v1334
        %1555 = vmatpush.msra.mxu0 %v1326
        %1556 = vmatmul.f32.gmra.mxu0 %v1358
        %v1557 = vpop.f32.mrf.mxu0
        %v1558 = vadd.f32 0.0, %v1557
        %1559 = vdwg.mxu0
        %1560 = vmatpush.msra.mxu0 0.0
        %1561 = vmatpush.msra.mxu0 0.0
        %1562 = vmatpush.msra.mxu0 0.0
        %1563 = vmatpush.msra.mxu0 0.0
        %1564 = vmatpush.msra.mxu0 0.0
        %1565 = vmatpush.msra.mxu0 0.0
        %1566 = vmatpush.msra.mxu0 0.0
        %1567 = vmatpush.msra.mxu0 0.0
        %1568 = vmatpush.msra.mxu0 0.0
        %1569 = vmatpush.msra.mxu0 0.0
        %1570 = vmatpush.msra.mxu0 0.0
        %1571 = vmatpush.msra.mxu0 0.0
        %1572 = vmatpush.msra.mxu0 %v1351
        %1573 = vmatpush.msra.mxu0 %v1343
        %1574 = vmatpush.msra.mxu0 %v1335
        %1575 = vmatpush.msra.mxu0 %v1327
        %1576 = vmatmul.f32.gmra.mxu0 %v1358
        %v1577 = vpop.f32.mrf.mxu0
        %v1578 = vadd.f32 0.0, %v1577
        %1579 = vdwg.mxu0
        %1580 = vmatpush.msra.mxu0 0.0
        %1581 = vmatpush.msra.mxu0 0.0
        %1582 = vmatpush.msra.mxu0 0.0
        %1583 = vmatpush.msra.mxu0 0.0
        %1584 = vmatpush.msra.mxu0 0.0
        %1585 = vmatpush.msra.mxu0 0.0
        %1586 = vmatpush.msra.mxu0 0.0
        %1587 = vmatpush.msra.mxu0 0.0
        %1588 = vmatpush.msra.mxu0 0.0
        %1589 = vmatpush.msra.mxu0 0.0
        %1590 = vmatpush.msra.mxu0 0.0
        %1591 = vmatpush.msra.mxu0 0.0
        %1592 = vmatpush.msra.mxu0 %v1352
        %1593 = vmatpush.msra.mxu0 %v1344
        %1594 = vmatpush.msra.mxu0 %v1336
        %1595 = vmatpush.msra.mxu0 %v1328
        %1596 = vmatmul.f32.gmra.mxu0 %v1358
        %v1597 = vpop.f32.mrf.mxu0
        %v1598 = vadd.f32 0.0, %v1597
        %1599 = vdwg.mxu0
        %1600 = vmatpush.msra.mxu0 0.0
        %1601 = vmatpush.msra.mxu0 0.0
        %1602 = vmatpush.msra.mxu0 0.0
        %1603 = vmatpush.msra.mxu0 0.0
        %1604 = vmatpush.msra.mxu0 0.0
        %1605 = vmatpush.msra.mxu0 0.0
        %1606 = vmatpush.msra.mxu0 0.0
        %1607 = vmatpush.msra.mxu0 0.0
        %1608 = vmatpush.msra.mxu0 0.0
        %1609 = vmatpush.msra.mxu0 0.0
        %1610 = vmatpush.msra.mxu0 0.0
        %1611 = vmatpush.msra.mxu0 0.0
        %1612 = vmatpush.msra.mxu0 %v1353
        %1613 = vmatpush.msra.mxu0 %v1345
        %1614 = vmatpush.msra.mxu0 %v1337
        %1615 = vmatpush.msra.mxu0 %v1329
        %1616 = vmatmul.f32.gmra.mxu0 %v1358
        %v1617 = vpop.f32.mrf.mxu0
        %v1618 = vadd.f32 0.0, %v1617
        %1619 = vdwg.mxu0
        %1620 = vmatpush.msra.mxu0 0.0
        %1621 = vmatpush.msra.mxu0 0.0
        %1622 = vmatpush.msra.mxu0 0.0
        %1623 = vmatpush.msra.mxu0 0.0
        %1624 = vmatpush.msra.mxu0 0.0
        %1625 = vmatpush.msra.mxu0 0.0
        %1626 = vmatpush.msra.mxu0 0.0
        %1627 = vmatpush.msra.mxu0 0.0
        %1628 = vmatpush.msra.mxu0 0.0
        %1629 = vmatpush.msra.mxu0 0.0
        %1630 = vmatpush.msra.mxu0 0.0
        %1631 = vmatpush.msra.mxu0 0.0
        %1632 = vmatpush.msra.mxu0 %v1354
        %1633 = vmatpush.msra.mxu0 %v1346
        %1634 = vmatpush.msra.mxu0 %v1338
        %1635 = vmatpush.msra.mxu0 %v1330
        %1636 = vmatmul.f32.gmra.mxu0 %v1358
        %v1637 = vpop.f32.mrf.mxu0
        %v1638 = vadd.f32 0.0, %v1637
        %1639 = vdwg.mxu0
        %1640 = vmatpush.msra.mxu0 0.0
        %1641 = vmatpush.msra.mxu0 0.0
        %1642 = vmatpush.msra.mxu0 0.0
        %1643 = vmatpush.msra.mxu0 0.0
        %1644 = vmatpush.msra.mxu0 0.0
        %1645 = vmatpush.msra.mxu0 0.0
        %1646 = vmatpush.msra.mxu0 0.0
        %1647 = vmatpush.msra.mxu0 0.0
        %1648 = vmatpush.msra.mxu0 0.0
        %1649 = vmatpush.msra.mxu0 0.0
        %1650 = vmatpush.msra.mxu0 0.0
        %1651 = vmatpush.msra.mxu0 0.0
        %1652 = vmatpush.msra.mxu0 %v1355
        %1653 = vmatpush.msra.mxu0 %v1347
        %1654 = vmatpush.msra.mxu0 %v1339
        %1655 = vmatpush.msra.mxu0 %v1331
        %1656 = vmatmul.f32.gmra.mxu0 %v1358
        %v1657 = vpop.f32.mrf.mxu0
        %v1658 = vadd.f32 0.0, %v1657
        %1659 = vdwg.mxu0
        %1660 = vmatpush.msra.mxu0 0.0
        %1661 = vmatpush.msra.mxu0 0.0
        %1662 = vmatpush.msra.mxu0 0.0
        %1663 = vmatpush.msra.mxu0 0.0
        %1664 = vmatpush.msra.mxu0 0.0
        %1665 = vmatpush.msra.mxu0 0.0
        %1666 = vmatpush.msra.mxu0 0.0
        %1667 = vmatpush.msra.mxu0 0.0
        %1668 = vmatpush.msra.mxu0 0.0
        %1669 = vmatpush.msra.mxu0 0.0
        %1670 = vmatpush.msra.mxu0 0.0
        %1671 = vmatpush.msra.mxu0 0.0
        %1672 = vmatpush.msra.mxu0 %v1356
        %1673 = vmatpush.msra.mxu0 %v1348
        %1674 = vmatpush.msra.mxu0 %v1340
        %1675 = vmatpush.msra.mxu0 %v1332
        %1676 = vmatmul.f32.gmra.mxu0 %v1358
        %v1677 = vpop.f32.mrf.mxu0
        %v1678 = vadd.f32 0.0, %v1677
        %1679 = vdwg.mxu0
        %v1681 = vsel %vm1205, %v1285, 0
        %1683 = vmatpush.msra.mxu0 0.0
        %1684 = vmatpush.msra.mxu0 0.0
        %1685 = vmatpush.msra.mxu0 0.0
        %1686 = vmatpush.msra.mxu0 0.0
        %1687 = vmatpush.msra.mxu0 0.0
        %1688 = vmatpush.msra.mxu0 0.0
        %1689 = vmatpush.msra.mxu0 0.0
        %1690 = vmatpush.msra.mxu0 0.0
        %1691 = vmatpush.msra.mxu0 0.0
        %1692 = vmatpush.msra.mxu0 0.0
        %1693 = vmatpush.msra.mxu0 0.0
        %1694 = vmatpush.msra.mxu0 0.0
        %1695 = vmatpush.msra.mxu0 %v1317
        %1696 = vmatpush.msra.mxu0 %v1309
        %1697 = vmatpush.msra.mxu0 %v1301
        %1698 = vmatpush.msra.mxu0 %v1293
        %1699 = vmatmul.f32.gmra.mxu0 %v1681
        %v1700 = vpop.f32.mrf.mxu0
        %v1701 = vadd.f32 0.0, %v1700
        %1702 = vdwg.mxu0
        %1703 = vmatpush.msra.mxu0 0.0
        %1704 = vmatpush.msra.mxu0 0.0
        %1705 = vmatpush.msra.mxu0 0.0
        %1706 = vmatpush.msra.mxu0 0.0
        %1707 = vmatpush.msra.mxu0 0.0
        %1708 = vmatpush.msra.mxu0 0.0
        %1709 = vmatpush.msra.mxu0 0.0
        %1710 = vmatpush.msra.mxu0 0.0
        %1711 = vmatpush.msra.mxu0 0.0
        %1712 = vmatpush.msra.mxu0 0.0
        %1713 = vmatpush.msra.mxu0 0.0
        %1714 = vmatpush.msra.mxu0 0.0
        %1715 = vmatpush.msra.mxu0 %v1318
        %1716 = vmatpush.msra.mxu0 %v1310
        %1717 = vmatpush.msra.mxu0 %v1302
        %1718 = vmatpush.msra.mxu0 %v1294
        %1719 = vmatmul.f32.gmra.mxu0 %v1681
        %v1720 = vpop.f32.mrf.mxu0
        %v1721 = vadd.f32 0.0, %v1720
        %1722 = vdwg.mxu0
        %1723 = vmatpush.msra.mxu0 0.0
        %1724 = vmatpush.msra.mxu0 0.0
        %1725 = vmatpush.msra.mxu0 0.0
        %1726 = vmatpush.msra.mxu0 0.0
        %1727 = vmatpush.msra.mxu0 0.0
        %1728 = vmatpush.msra.mxu0 0.0
        %1729 = vmatpush.msra.mxu0 0.0
        %1730 = vmatpush.msra.mxu0 0.0
        %1731 = vmatpush.msra.mxu0 0.0
        %1732 = vmatpush.msra.mxu0 0.0
        %1733 = vmatpush.msra.mxu0 0.0
        %1734 = vmatpush.msra.mxu0 0.0
        %1735 = vmatpush.msra.mxu0 %v1319
        %1736 = vmatpush.msra.mxu0 %v1311
        %1737 = vmatpush.msra.mxu0 %v1303
        %1738 = vmatpush.msra.mxu0 %v1295
        %1739 = vmatmul.f32.gmra.mxu0 %v1681
        %v1740 = vpop.f32.mrf.mxu0
        %v1741 = vadd.f32 0.0, %v1740
        %1742 = vdwg.mxu0
        %1743 = vmatpush.msra.mxu0 0.0
        %1744 = vmatpush.msra.mxu0 0.0
        %1745 = vmatpush.msra.mxu0 0.0
        %1746 = vmatpush.msra.mxu0 0.0
        %1747 = vmatpush.msra.mxu0 0.0
        %1748 = vmatpush.msra.mxu0 0.0
        %1749 = vmatpush.msra.mxu0 0.0
        %1750 = vmatpush.msra.mxu0 0.0
        %1751 = vmatpush.msra.mxu0 0.0
        %1752 = vmatpush.msra.mxu0 0.0
        %1753 = vmatpush.msra.mxu0 0.0
        %1754 = vmatpush.msra.mxu0 0.0
        %1755 = vmatpush.msra.mxu0 %v1320
        %1756 = vmatpush.msra.mxu0 %v1312
        %1757 = vmatpush.msra.mxu0 %v1304
        %1758 = vmatpush.msra.mxu0 %v1296
        %1759 = vmatmul.f32.gmra.mxu0 %v1681
        %v1760 = vpop.f32.mrf.mxu0
        %v1761 = vadd.f32 0.0, %v1760
        %1762 = vdwg.mxu0
        %1763 = vmatpush.msra.mxu0 0.0
        %1764 = vmatpush.msra.mxu0 0.0
        %1765 = vmatpush.msra.mxu0 0.0
        %1766 = vmatpush.msra.mxu0 0.0
        %1767 = vmatpush.msra.mxu0 0.0
        %1768 = vmatpush.msra.mxu0 0.0
        %1769 = vmatpush.msra.mxu0 0.0
        %1770 = vmatpush.msra.mxu0 0.0
        %1771 = vmatpush.msra.mxu0 0.0
        %1772 = vmatpush.msra.mxu0 0.0
        %1773 = vmatpush.msra.mxu0 0.0
        %1774 = vmatpush.msra.mxu0 0.0
        %1775 = vmatpush.msra.mxu0 %v1321
        %1776 = vmatpush.msra.mxu0 %v1313
        %1777 = vmatpush.msra.mxu0 %v1305
        %1778 = vmatpush.msra.mxu0 %v1297
        %1779 = vmatmul.f32.gmra.mxu0 %v1681
        %v1780 = vpop.f32.mrf.mxu0
        %v1781 = vadd.f32 0.0, %v1780
        %1782 = vdwg.mxu0
        %1783 = vmatpush.msra.mxu0 0.0
        %1784 = vmatpush.msra.mxu0 0.0
        %1785 = vmatpush.msra.mxu0 0.0
        %1786 = vmatpush.msra.mxu0 0.0
        %1787 = vmatpush.msra.mxu0 0.0
        %1788 = vmatpush.msra.mxu0 0.0
        %1789 = vmatpush.msra.mxu0 0.0
        %1790 = vmatpush.msra.mxu0 0.0
        %1791 = vmatpush.msra.mxu0 0.0
        %1792 = vmatpush.msra.mxu0 0.0
        %1793 = vmatpush.msra.mxu0 0.0
        %1794 = vmatpush.msra.mxu0 0.0
        %1795 = vmatpush.msra.mxu0 %v1322
        %1796 = vmatpush.msra.mxu0 %v1314
        %1797 = vmatpush.msra.mxu0 %v1306
        %1798 = vmatpush.msra.mxu0 %v1298
        %1799 = vmatmul.f32.gmra.mxu0 %v1681
        %v1800 = vpop.f32.mrf.mxu0
        %v1801 = vadd.f32 0.0, %v1800
        %1802 = vdwg.mxu0
        %1803 = vmatpush.msra.mxu0 0.0
        %1804 = vmatpush.msra.mxu0 0.0
        %1805 = vmatpush.msra.mxu0 0.0
        %1806 = vmatpush.msra.mxu0 0.0
        %1807 = vmatpush.msra.mxu0 0.0
        %1808 = vmatpush.msra.mxu0 0.0
        %1809 = vmatpush.msra.mxu0 0.0
        %1810 = vmatpush.msra.mxu0 0.0
        %1811 = vmatpush.msra.mxu0 0.0
        %1812 = vmatpush.msra.mxu0 0.0
        %1813 = vmatpush.msra.mxu0 0.0
        %1814 = vmatpush.msra.mxu0 0.0
        %1815 = vmatpush.msra.mxu0 %v1323
        %1816 = vmatpush.msra.mxu0 %v1315
        %1817 = vmatpush.msra.mxu0 %v1307
        %1818 = vmatpush.msra.mxu0 %v1299
        %1819 = vmatmul.f32.gmra.mxu0 %v1681
        %v1820 = vpop.f32.mrf.mxu0
        %v1821 = vadd.f32 0.0, %v1820
        %1822 = vdwg.mxu0
        %1823 = vmatpush.msra.mxu0 0.0
        %1824 = vmatpush.msra.mxu0 0.0
        %1825 = vmatpush.msra.mxu0 0.0
        %1826 = vmatpush.msra.mxu0 0.0
        %1827 = vmatpush.msra.mxu0 0.0
        %1828 = vmatpush.msra.mxu0 0.0
        %1829 = vmatpush.msra.mxu0 0.0
        %1830 = vmatpush.msra.mxu0 0.0
        %1831 = vmatpush.msra.mxu0 0.0
        %1832 = vmatpush.msra.mxu0 0.0
        %1833 = vmatpush.msra.mxu0 0.0
        %1834 = vmatpush.msra.mxu0 0.0
        %1835 = vmatpush.msra.mxu0 %v1324
        %1836 = vmatpush.msra.mxu0 %v1316
        %1837 = vmatpush.msra.mxu0 %v1308
        %1838 = vmatpush.msra.mxu0 %v1300
        %1839 = vmatmul.f32.gmra.mxu0 %v1681
        %v1840 = vpop.f32.mrf.mxu0
        %v1841 = vadd.f32 0.0, %v1840
        %1842 = vdwg.mxu0
        %1843 = vmatpush.msra.mxu0 0.0
        %1844 = vmatpush.msra.mxu0 0.0
        %1845 = vmatpush.msra.mxu0 0.0
        %1846 = vmatpush.msra.mxu0 0.0
        %1847 = vmatpush.msra.mxu0 0.0
        %1848 = vmatpush.msra.mxu0 0.0
        %1849 = vmatpush.msra.mxu0 0.0
        %1850 = vmatpush.msra.mxu0 0.0
        %1851 = vmatpush.msra.mxu0 0.0
        %1852 = vmatpush.msra.mxu0 0.0
        %1853 = vmatpush.msra.mxu0 0.0
        %1854 = vmatpush.msra.mxu0 0.0
        %1855 = vmatpush.msra.mxu0 %v1349
        %1856 = vmatpush.msra.mxu0 %v1341
        %1857 = vmatpush.msra.mxu0 %v1333
        %1858 = vmatpush.msra.mxu0 %v1325
        %1859 = vmatmul.f32.gmra.mxu0 %v1681
        %v1860 = vpop.f32.mrf.mxu0
        %v1861 = vadd.f32 0.0, %v1860
        %1862 = vdwg.mxu0
        %1863 = vmatpush.msra.mxu0 0.0
        %1864 = vmatpush.msra.mxu0 0.0
        %1865 = vmatpush.msra.mxu0 0.0
        %1866 = vmatpush.msra.mxu0 0.0
        %1867 = vmatpush.msra.mxu0 0.0
        %1868 = vmatpush.msra.mxu0 0.0
        %1869 = vmatpush.msra.mxu0 0.0
        %1870 = vmatpush.msra.mxu0 0.0
        %1871 = vmatpush.msra.mxu0 0.0
        %1872 = vmatpush.msra.mxu0 0.0
        %1873 = vmatpush.msra.mxu0 0.0
        %1874 = vmatpush.msra.mxu0 0.0
        %1875 = vmatpush.msra.mxu0 %v1350
        %1876 = vmatpush.msra.mxu0 %v1342
        %1877 = vmatpush.msra.mxu0 %v1334
        %1878 = vmatpush.msra.mxu0 %v1326
        %1879 = vmatmul.f32.gmra.mxu0 %v1681
        %v1880 = vpop.f32.mrf.mxu0
        %v1881 = vadd.f32 0.0, %v1880
        %1882 = vdwg.mxu0
        %1883 = vmatpush.msra.mxu0 0.0
        %1884 = vmatpush.msra.mxu0 0.0
        %1885 = vmatpush.msra.mxu0 0.0
        %1886 = vmatpush.msra.mxu0 0.0
        %1887 = vmatpush.msra.mxu0 0.0
        %1888 = vmatpush.msra.mxu0 0.0
        %1889 = vmatpush.msra.mxu0 0.0
        %1890 = vmatpush.msra.mxu0 0.0
        %1891 = vmatpush.msra.mxu0 0.0
        %1892 = vmatpush.msra.mxu0 0.0
        %1893 = vmatpush.msra.mxu0 0.0
        %1894 = vmatpush.msra.mxu0 0.0
        %1895 = vmatpush.msra.mxu0 %v1351
        %1896 = vmatpush.msra.mxu0 %v1343
        %1897 = vmatpush.msra.mxu0 %v1335
        %1898 = vmatpush.msra.mxu0 %v1327
        %1899 = vmatmul.f32.gmra.mxu0 %v1681
        %v1900 = vpop.f32.mrf.mxu0
        %v1901 = vadd.f32 0.0, %v1900
        %1902 = vdwg.mxu0
        %1903 = vmatpush.msra.mxu0 0.0
        %1904 = vmatpush.msra.mxu0 0.0
        %1905 = vmatpush.msra.mxu0 0.0
        %1906 = vmatpush.msra.mxu0 0.0
        %1907 = vmatpush.msra.mxu0 0.0
        %1908 = vmatpush.msra.mxu0 0.0
        %1909 = vmatpush.msra.mxu0 0.0
        %1910 = vmatpush.msra.mxu0 0.0
        %1911 = vmatpush.msra.mxu0 0.0
        %1912 = vmatpush.msra.mxu0 0.0
        %1913 = vmatpush.msra.mxu0 0.0
        %1914 = vmatpush.msra.mxu0 0.0
        %1915 = vmatpush.msra.mxu0 %v1352
        %1916 = vmatpush.msra.mxu0 %v1344
        %1917 = vmatpush.msra.mxu0 %v1336
        %1918 = vmatpush.msra.mxu0 %v1328
        %1919 = vmatmul.f32.gmra.mxu0 %v1681
        %v1920 = vpop.f32.mrf.mxu0
        %v1921 = vadd.f32 0.0, %v1920
        %1922 = vdwg.mxu0
        %1923 = vmatpush.msra.mxu0 0.0
        %1924 = vmatpush.msra.mxu0 0.0
        %1925 = vmatpush.msra.mxu0 0.0
        %1926 = vmatpush.msra.mxu0 0.0
        %1927 = vmatpush.msra.mxu0 0.0
        %1928 = vmatpush.msra.mxu0 0.0
        %1929 = vmatpush.msra.mxu0 0.0
        %1930 = vmatpush.msra.mxu0 0.0
        %1931 = vmatpush.msra.mxu0 0.0
        %1932 = vmatpush.msra.mxu0 0.0
        %1933 = vmatpush.msra.mxu0 0.0
        %1934 = vmatpush.msra.mxu0 0.0
        %1935 = vmatpush.msra.mxu0 %v1353
        %1936 = vmatpush.msra.mxu0 %v1345
        %1937 = vmatpush.msra.mxu0 %v1337
        %1938 = vmatpush.msra.mxu0 %v1329
        %1939 = vmatmul.f32.gmra.mxu0 %v1681
        %v1940 = vpop.f32.mrf.mxu0
        %v1941 = vadd.f32 0.0, %v1940
        %1942 = vdwg.mxu0
        %1943 = vmatpush.msra.mxu0 0.0
        %1944 = vmatpush.msra.mxu0 0.0
        %1945 = vmatpush.msra.mxu0 0.0
        %1946 = vmatpush.msra.mxu0 0.0
        %1947 = vmatpush.msra.mxu0 0.0
        %1948 = vmatpush.msra.mxu0 0.0
        %1949 = vmatpush.msra.mxu0 0.0
        %1950 = vmatpush.msra.mxu0 0.0
        %1951 = vmatpush.msra.mxu0 0.0
        %1952 = vmatpush.msra.mxu0 0.0
        %1953 = vmatpush.msra.mxu0 0.0
        %1954 = vmatpush.msra.mxu0 0.0
        %1955 = vmatpush.msra.mxu0 %v1354
        %1956 = vmatpush.msra.mxu0 %v1346
        %1957 = vmatpush.msra.mxu0 %v1338
        %1958 = vmatpush.msra.mxu0 %v1330
        %1959 = vmatmul.f32.gmra.mxu0 %v1681
        %v1960 = vpop.f32.mrf.mxu0
        %v1961 = vadd.f32 0.0, %v1960
        %1962 = vdwg.mxu0
        %1963 = vmatpush.msra.mxu0 0.0
        %1964 = vmatpush.msra.mxu0 0.0
        %1965 = vmatpush.msra.mxu0 0.0
        %1966 = vmatpush.msra.mxu0 0.0
        %1967 = vmatpush.msra.mxu0 0.0
        %1968 = vmatpush.msra.mxu0 0.0
        %1969 = vmatpush.msra.mxu0 0.0
        %1970 = vmatpush.msra.mxu0 0.0
        %1971 = vmatpush.msra.mxu0 0.0
        %1972 = vmatpush.msra.mxu0 0.0
        %1973 = vmatpush.msra.mxu0 0.0
        %1974 = vmatpush.msra.mxu0 0.0
        %1975 = vmatpush.msra.mxu0 %v1355
        %1976 = vmatpush.msra.mxu0 %v1347
        %1977 = vmatpush.msra.mxu0 %v1339
        %1978 = vmatpush.msra.mxu0 %v1331
        %1979 = vmatmul.f32.gmra.mxu0 %v1681
        %v1980 = vpop.f32.mrf.mxu0
        %v1981 = vadd.f32 0.0, %v1980
        %1982 = vdwg.mxu0
        %1983 = vmatpush.msra.mxu0 0.0
        %1984 = vmatpush.msra.mxu0 0.0
        %1985 = vmatpush.msra.mxu0 0.0
        %1986 = vmatpush.msra.mxu0 0.0
        %1987 = vmatpush.msra.mxu0 0.0
        %1988 = vmatpush.msra.mxu0 0.0
        %1989 = vmatpush.msra.mxu0 0.0
        %1990 = vmatpush.msra.mxu0 0.0
        %1991 = vmatpush.msra.mxu0 0.0
        %1992 = vmatpush.msra.mxu0 0.0
        %1993 = vmatpush.msra.mxu0 0.0
        %1994 = vmatpush.msra.mxu0 0.0
        %1995 = vmatpush.msra.mxu0 %v1356
        %1996 = vmatpush.msra.mxu0 %v1348
        %1997 = vmatpush.msra.mxu0 %v1340
        %1998 = vmatpush.msra.mxu0 %v1332
        %1999 = vmatmul.f32.gmra.mxu0 %v1681
        %v2000 = vpop.f32.mrf.mxu0
        %v2001 = vadd.f32 0.0, %v2000
        %2002 = vdwg.mxu0
        %2004 = vrot.lane.b32.xlu0 %v1292, 96
        %v2005 = vpop.permute.xlu0 %2004
        %v2006 = vsel %vm1205, %v2005, 0
        %2008 = vmatpush.msra.mxu0 0.0
        %2009 = vmatpush.msra.mxu0 0.0
        %2010 = vmatpush.msra.mxu0 0.0
        %2011 = vmatpush.msra.mxu0 0.0
        %2012 = vmatpush.msra.mxu0 0.0
        %2013 = vmatpush.msra.mxu0 0.0
        %2014 = vmatpush.msra.mxu0 0.0
        %2015 = vmatpush.msra.mxu0 0.0
        %2016 = vmatpush.msra.mxu0 0.0
        %2017 = vmatpush.msra.mxu0 0.0
        %2018 = vmatpush.msra.mxu0 0.0
        %2019 = vmatpush.msra.mxu0 0.0
        %2020 = vmatpush.msra.mxu0 %v1317
        %2021 = vmatpush.msra.mxu0 %v1309
        %2022 = vmatpush.msra.mxu0 %v1301
        %2023 = vmatpush.msra.mxu0 %v1293
        %2024 = vmatmul.f32.gmra.mxu0 %v2006
        %v2025 = vpop.f32.mrf.mxu0
        %v2026 = vadd.f32 0.0, %v2025
        %2027 = vdwg.mxu0
        %2028 = vmatpush.msra.mxu0 0.0
        %2029 = vmatpush.msra.mxu0 0.0
        %2030 = vmatpush.msra.mxu0 0.0
        %2031 = vmatpush.msra.mxu0 0.0
        %2032 = vmatpush.msra.mxu0 0.0
        %2033 = vmatpush.msra.mxu0 0.0
        %2034 = vmatpush.msra.mxu0 0.0
        %2035 = vmatpush.msra.mxu0 0.0
        %2036 = vmatpush.msra.mxu0 0.0
        %2037 = vmatpush.msra.mxu0 0.0
        %2038 = vmatpush.msra.mxu0 0.0
        %2039 = vmatpush.msra.mxu0 0.0
        %2040 = vmatpush.msra.mxu0 %v1318
        %2041 = vmatpush.msra.mxu0 %v1310
        %2042 = vmatpush.msra.mxu0 %v1302
        %2043 = vmatpush.msra.mxu0 %v1294
        %2044 = vmatmul.f32.gmra.mxu0 %v2006
        %v2045 = vpop.f32.mrf.mxu0
        %v2046 = vadd.f32 0.0, %v2045
        %2047 = vdwg.mxu0
        %2048 = vmatpush.msra.mxu0 0.0
        %2049 = vmatpush.msra.mxu0 0.0
        %2050 = vmatpush.msra.mxu0 0.0
        %2051 = vmatpush.msra.mxu0 0.0
        %2052 = vmatpush.msra.mxu0 0.0
        %2053 = vmatpush.msra.mxu0 0.0
        %2054 = vmatpush.msra.mxu0 0.0
        %2055 = vmatpush.msra.mxu0 0.0
        %2056 = vmatpush.msra.mxu0 0.0
        %2057 = vmatpush.msra.mxu0 0.0
        %2058 = vmatpush.msra.mxu0 0.0
        %2059 = vmatpush.msra.mxu0 0.0
        %2060 = vmatpush.msra.mxu0 %v1319
        %2061 = vmatpush.msra.mxu0 %v1311
        %2062 = vmatpush.msra.mxu0 %v1303
        %2063 = vmatpush.msra.mxu0 %v1295
        %2064 = vmatmul.f32.gmra.mxu0 %v2006
        %v2065 = vpop.f32.mrf.mxu0
        %v2066 = vadd.f32 0.0, %v2065
        %2067 = vdwg.mxu0
        %2068 = vmatpush.msra.mxu0 0.0
        %2069 = vmatpush.msra.mxu0 0.0
        %2070 = vmatpush.msra.mxu0 0.0
        %2071 = vmatpush.msra.mxu0 0.0
        %2072 = vmatpush.msra.mxu0 0.0
        %2073 = vmatpush.msra.mxu0 0.0
        %2074 = vmatpush.msra.mxu0 0.0
        %2075 = vmatpush.msra.mxu0 0.0
        %2076 = vmatpush.msra.mxu0 0.0
        %2077 = vmatpush.msra.mxu0 0.0
        %2078 = vmatpush.msra.mxu0 0.0
        %2079 = vmatpush.msra.mxu0 0.0
        %2080 = vmatpush.msra.mxu0 %v1320
        %2081 = vmatpush.msra.mxu0 %v1312
        %2082 = vmatpush.msra.mxu0 %v1304
        %2083 = vmatpush.msra.mxu0 %v1296
        %2084 = vmatmul.f32.gmra.mxu0 %v2006
        %v2085 = vpop.f32.mrf.mxu0
        %v2086 = vadd.f32 0.0, %v2085
        %2087 = vdwg.mxu0
        %2088 = vmatpush.msra.mxu0 0.0
        %2089 = vmatpush.msra.mxu0 0.0
        %2090 = vmatpush.msra.mxu0 0.0
        %2091 = vmatpush.msra.mxu0 0.0
        %2092 = vmatpush.msra.mxu0 0.0
        %2093 = vmatpush.msra.mxu0 0.0
        %2094 = vmatpush.msra.mxu0 0.0
        %2095 = vmatpush.msra.mxu0 0.0
        %2096 = vmatpush.msra.mxu0 0.0
        %2097 = vmatpush.msra.mxu0 0.0
        %2098 = vmatpush.msra.mxu0 0.0
        %2099 = vmatpush.msra.mxu0 0.0
        %2100 = vmatpush.msra.mxu0 %v1321
        %2101 = vmatpush.msra.mxu0 %v1313
        %2102 = vmatpush.msra.mxu0 %v1305
        %2103 = vmatpush.msra.mxu0 %v1297
        %2104 = vmatmul.f32.gmra.mxu0 %v2006
        %v2105 = vpop.f32.mrf.mxu0
        %v2106 = vadd.f32 0.0, %v2105
        %2107 = vdwg.mxu0
        %2108 = vmatpush.msra.mxu0 0.0
        %2109 = vmatpush.msra.mxu0 0.0
        %2110 = vmatpush.msra.mxu0 0.0
        %2111 = vmatpush.msra.mxu0 0.0
        %2112 = vmatpush.msra.mxu0 0.0
        %2113 = vmatpush.msra.mxu0 0.0
        %2114 = vmatpush.msra.mxu0 0.0
        %2115 = vmatpush.msra.mxu0 0.0
        %2116 = vmatpush.msra.mxu0 0.0
        %2117 = vmatpush.msra.mxu0 0.0
        %2118 = vmatpush.msra.mxu0 0.0
        %2119 = vmatpush.msra.mxu0 0.0
        %2120 = vmatpush.msra.mxu0 %v1322
        %2121 = vmatpush.msra.mxu0 %v1314
        %2122 = vmatpush.msra.mxu0 %v1306
        %2123 = vmatpush.msra.mxu0 %v1298
        %2124 = vmatmul.f32.gmra.mxu0 %v2006
        %v2125 = vpop.f32.mrf.mxu0
        %v2126 = vadd.f32 0.0, %v2125
        %2127 = vdwg.mxu0
        %2128 = vmatpush.msra.mxu0 0.0
        %2129 = vmatpush.msra.mxu0 0.0
        %2130 = vmatpush.msra.mxu0 0.0
        %2131 = vmatpush.msra.mxu0 0.0
        %2132 = vmatpush.msra.mxu0 0.0
        %2133 = vmatpush.msra.mxu0 0.0
        %2134 = vmatpush.msra.mxu0 0.0
        %2135 = vmatpush.msra.mxu0 0.0
        %2136 = vmatpush.msra.mxu0 0.0
        %2137 = vmatpush.msra.mxu0 0.0
        %2138 = vmatpush.msra.mxu0 0.0
        %2139 = vmatpush.msra.mxu0 0.0
        %2140 = vmatpush.msra.mxu0 %v1323
        %2141 = vmatpush.msra.mxu0 %v1315
        %2142 = vmatpush.msra.mxu0 %v1307
        %2143 = vmatpush.msra.mxu0 %v1299
        %2144 = vmatmul.f32.gmra.mxu0 %v2006
        %v2145 = vpop.f32.mrf.mxu0
        %v2146 = vadd.f32 0.0, %v2145
        %2147 = vdwg.mxu0
        %2148 = vmatpush.msra.mxu0 0.0
        %2149 = vmatpush.msra.mxu0 0.0
        %2150 = vmatpush.msra.mxu0 0.0
        %2151 = vmatpush.msra.mxu0 0.0
        %2152 = vmatpush.msra.mxu0 0.0
        %2153 = vmatpush.msra.mxu0 0.0
        %2154 = vmatpush.msra.mxu0 0.0
        %2155 = vmatpush.msra.mxu0 0.0
        %2156 = vmatpush.msra.mxu0 0.0
        %2157 = vmatpush.msra.mxu0 0.0
        %2158 = vmatpush.msra.mxu0 0.0
        %2159 = vmatpush.msra.mxu0 0.0
        %2160 = vmatpush.msra.mxu0 %v1324
        %2161 = vmatpush.msra.mxu0 %v1316
        %2162 = vmatpush.msra.mxu0 %v1308
        %2163 = vmatpush.msra.mxu0 %v1300
        %2164 = vmatmul.f32.gmra.mxu0 %v2006
        %v2165 = vpop.f32.mrf.mxu0
        %v2166 = vadd.f32 0.0, %v2165
        %2167 = vdwg.mxu0
        %2168 = vmatpush.msra.mxu0 0.0
        %2169 = vmatpush.msra.mxu0 0.0
        %2170 = vmatpush.msra.mxu0 0.0
        %2171 = vmatpush.msra.mxu0 0.0
        %2172 = vmatpush.msra.mxu0 0.0
        %2173 = vmatpush.msra.mxu0 0.0
        %2174 = vmatpush.msra.mxu0 0.0
        %2175 = vmatpush.msra.mxu0 0.0
        %2176 = vmatpush.msra.mxu0 0.0
        %2177 = vmatpush.msra.mxu0 0.0
        %2178 = vmatpush.msra.mxu0 0.0
        %2179 = vmatpush.msra.mxu0 0.0
        %2180 = vmatpush.msra.mxu0 %v1349
        %2181 = vmatpush.msra.mxu0 %v1341
        %2182 = vmatpush.msra.mxu0 %v1333
        %2183 = vmatpush.msra.mxu0 %v1325
        %2184 = vmatmul.f32.gmra.mxu0 %v2006
        %v2185 = vpop.f32.mrf.mxu0
        %v2186 = vadd.f32 0.0, %v2185
        %2187 = vdwg.mxu0
        %2188 = vmatpush.msra.mxu0 0.0
        %2189 = vmatpush.msra.mxu0 0.0
        %2190 = vmatpush.msra.mxu0 0.0
        %2191 = vmatpush.msra.mxu0 0.0
        %2192 = vmatpush.msra.mxu0 0.0
        %2193 = vmatpush.msra.mxu0 0.0
        %2194 = vmatpush.msra.mxu0 0.0
        %2195 = vmatpush.msra.mxu0 0.0
        %2196 = vmatpush.msra.mxu0 0.0
        %2197 = vmatpush.msra.mxu0 0.0
        %2198 = vmatpush.msra.mxu0 0.0
        %2199 = vmatpush.msra.mxu0 0.0
        %2200 = vmatpush.msra.mxu0 %v1350
        %2201 = vmatpush.msra.mxu0 %v1342
        %2202 = vmatpush.msra.mxu0 %v1334
        %2203 = vmatpush.msra.mxu0 %v1326
        %2204 = vmatmul.f32.gmra.mxu0 %v2006
        %v2205 = vpop.f32.mrf.mxu0
        %v2206 = vadd.f32 0.0, %v2205
        %2207 = vdwg.mxu0
        %2208 = vmatpush.msra.mxu0 0.0
        %2209 = vmatpush.msra.mxu0 0.0
        %2210 = vmatpush.msra.mxu0 0.0
        %2211 = vmatpush.msra.mxu0 0.0
        %2212 = vmatpush.msra.mxu0 0.0
        %2213 = vmatpush.msra.mxu0 0.0
        %2214 = vmatpush.msra.mxu0 0.0
        %2215 = vmatpush.msra.mxu0 0.0
        %2216 = vmatpush.msra.mxu0 0.0
        %2217 = vmatpush.msra.mxu0 0.0
        %2218 = vmatpush.msra.mxu0 0.0
        %2219 = vmatpush.msra.mxu0 0.0
        %2220 = vmatpush.msra.mxu0 %v1351
        %2221 = vmatpush.msra.mxu0 %v1343
        %2222 = vmatpush.msra.mxu0 %v1335
        %2223 = vmatpush.msra.mxu0 %v1327
        %2224 = vmatmul.f32.gmra.mxu0 %v2006
        %v2225 = vpop.f32.mrf.mxu0
        %v2226 = vadd.f32 0.0, %v2225
        %2227 = vdwg.mxu0
        %2228 = vmatpush.msra.mxu0 0.0
        %2229 = vmatpush.msra.mxu0 0.0
        %2230 = vmatpush.msra.mxu0 0.0
        %2231 = vmatpush.msra.mxu0 0.0
        %2232 = vmatpush.msra.mxu0 0.0
        %2233 = vmatpush.msra.mxu0 0.0
        %2234 = vmatpush.msra.mxu0 0.0
        %2235 = vmatpush.msra.mxu0 0.0
        %2236 = vmatpush.msra.mxu0 0.0
        %2237 = vmatpush.msra.mxu0 0.0
        %2238 = vmatpush.msra.mxu0 0.0
        %2239 = vmatpush.msra.mxu0 0.0
        %2240 = vmatpush.msra.mxu0 %v1352
        %2241 = vmatpush.msra.mxu0 %v1344
        %2242 = vmatpush.msra.mxu0 %v1336
        %2243 = vmatpush.msra.mxu0 %v1328
        %2244 = vmatmul.f32.gmra.mxu0 %v2006
        %v2245 = vpop.f32.mrf.mxu0
        %v2246 = vadd.f32 0.0, %v2245
        %2247 = vdwg.mxu0
        %2248 = vmatpush.msra.mxu0 0.0
        %2249 = vmatpush.msra.mxu0 0.0
        %2250 = vmatpush.msra.mxu0 0.0
        %2251 = vmatpush.msra.mxu0 0.0
        %2252 = vmatpush.msra.mxu0 0.0
        %2253 = vmatpush.msra.mxu0 0.0
        %2254 = vmatpush.msra.mxu0 0.0
        %2255 = vmatpush.msra.mxu0 0.0
        %2256 = vmatpush.msra.mxu0 0.0
        %2257 = vmatpush.msra.mxu0 0.0
        %2258 = vmatpush.msra.mxu0 0.0
        %2259 = vmatpush.msra.mxu0 0.0
        %2260 = vmatpush.msra.mxu0 %v1353
        %2261 = vmatpush.msra.mxu0 %v1345
        %2262 = vmatpush.msra.mxu0 %v1337
        %2263 = vmatpush.msra.mxu0 %v1329
        %2264 = vmatmul.f32.gmra.mxu0 %v2006
        %v2265 = vpop.f32.mrf.mxu0
        %v2266 = vadd.f32 0.0, %v2265
        %2267 = vdwg.mxu0
        %2268 = vmatpush.msra.mxu0 0.0
        %2269 = vmatpush.msra.mxu0 0.0
        %2270 = vmatpush.msra.mxu0 0.0
        %2271 = vmatpush.msra.mxu0 0.0
        %2272 = vmatpush.msra.mxu0 0.0
        %2273 = vmatpush.msra.mxu0 0.0
        %2274 = vmatpush.msra.mxu0 0.0
        %2275 = vmatpush.msra.mxu0 0.0
        %2276 = vmatpush.msra.mxu0 0.0
        %2277 = vmatpush.msra.mxu0 0.0
        %2278 = vmatpush.msra.mxu0 0.0
        %2279 = vmatpush.msra.mxu0 0.0
        %2280 = vmatpush.msra.mxu0 %v1354
        %2281 = vmatpush.msra.mxu0 %v1346
        %2282 = vmatpush.msra.mxu0 %v1338
        %2283 = vmatpush.msra.mxu0 %v1330
        %2284 = vmatmul.f32.gmra.mxu0 %v2006
        %v2285 = vpop.f32.mrf.mxu0
        %v2286 = vadd.f32 0.0, %v2285
        %2287 = vdwg.mxu0
        %2288 = vmatpush.msra.mxu0 0.0
        %2289 = vmatpush.msra.mxu0 0.0
        %2290 = vmatpush.msra.mxu0 0.0
        %2291 = vmatpush.msra.mxu0 0.0
        %2292 = vmatpush.msra.mxu0 0.0
        %2293 = vmatpush.msra.mxu0 0.0
        %2294 = vmatpush.msra.mxu0 0.0
        %2295 = vmatpush.msra.mxu0 0.0
        %2296 = vmatpush.msra.mxu0 0.0
        %2297 = vmatpush.msra.mxu0 0.0
        %2298 = vmatpush.msra.mxu0 0.0
        %2299 = vmatpush.msra.mxu0 0.0
        %2300 = vmatpush.msra.mxu0 %v1355
        %2301 = vmatpush.msra.mxu0 %v1347
        %2302 = vmatpush.msra.mxu0 %v1339
        %2303 = vmatpush.msra.mxu0 %v1331
        %2304 = vmatmul.f32.gmra.mxu0 %v2006
        %v2305 = vpop.f32.mrf.mxu0
        %v2306 = vadd.f32 0.0, %v2305
        %2307 = vdwg.mxu0
        %2308 = vmatpush.msra.mxu0 0.0
        %2309 = vmatpush.msra.mxu0 0.0
        %2310 = vmatpush.msra.mxu0 0.0
        %2311 = vmatpush.msra.mxu0 0.0
        %2312 = vmatpush.msra.mxu0 0.0
        %2313 = vmatpush.msra.mxu0 0.0
        %2314 = vmatpush.msra.mxu0 0.0
        %2315 = vmatpush.msra.mxu0 0.0
        %2316 = vmatpush.msra.mxu0 0.0
        %2317 = vmatpush.msra.mxu0 0.0
        %2318 = vmatpush.msra.mxu0 0.0
        %2319 = vmatpush.msra.mxu0 0.0
        %2320 = vmatpush.msra.mxu0 %v1356
        %2321 = vmatpush.msra.mxu0 %v1348
        %2322 = vmatpush.msra.mxu0 %v1340
        %2323 = vmatpush.msra.mxu0 %v1332
        %2324 = vmatmul.f32.gmra.mxu0 %v2006
        %v2325 = vpop.f32.mrf.mxu0
        %v2326 = vadd.f32 0.0, %v2325
        %2327 = vdwg.mxu0
        %v2328 = vld [vmem:[#allocation14] sm:$0xff]
        %v2329 = vld [vmem:[#allocation14 + $0x8] sm:$0xff]
        %v2330 = vld [vmem:[#allocation14 + $0x10] sm:$0xff]
        %v2331 = vld [vmem:[#allocation14 + $0x18] sm:$0xff]
        %v2332 = vld [vmem:[#allocation14 + $0x20] sm:$0xff]
        %v2333 = vld [vmem:[#allocation14 + $0x28] sm:$0xff]
        %v2334 = vld [vmem:[#allocation14 + $0x30] sm:$0xff]
        %v2335 = vld [vmem:[#allocation14 + $0x38] sm:$0xff]
        %v2336 = vld [vmem:[#allocation14 + $0x40] sm:$0xff]
        %v2337 = vld [vmem:[#allocation14 + $0x48] sm:$0xff]
        %v2338 = vld [vmem:[#allocation14 + $0x50] sm:$0xff]
        %v2339 = vld [vmem:[#allocation14 + $0x58] sm:$0xff]
        %v2340 = vld [vmem:[#allocation14 + $0x60] sm:$0xff]
        %v2341 = vld [vmem:[#allocation14 + $0x68] sm:$0xff]
        %v2342 = vld [vmem:[#allocation14 + $0x70] sm:$0xff]
        %v2343 = vld [vmem:[#allocation14 + $0x78] sm:$0xff]
        %v2344 = vld [vmem:[#allocation14 + $0x80] sm:$0xff]
        %v2345 = vld [vmem:[#allocation14 + $0x88] sm:$0xff]
        %v2346 = vld [vmem:[#allocation14 + $0x90] sm:$0xff]
        %v2347 = vld [vmem:[#allocation14 + $0x98] sm:$0xff]
        %v2348 = vld [vmem:[#allocation14 + $0xa0] sm:$0xff]
        %v2349 = vld [vmem:[#allocation14 + $0xa8] sm:$0xff]
        %v2350 = vld [vmem:[#allocation14 + $0xb0] sm:$0xff]
        %v2351 = vld [vmem:[#allocation14 + $0xb8] sm:$0xff]
        %v2352 = vld [vmem:[#allocation14 + $0xc0] sm:$0xff]
        %v2353 = vld [vmem:[#allocation14 + $0xc8] sm:$0xff]
        %v2354 = vld [vmem:[#allocation14 + $0xd0] sm:$0xff]
        %v2355 = vld [vmem:[#allocation14 + $0xd8] sm:$0xff]
        %v2356 = vld [vmem:[#allocation14 + $0xe0] sm:$0xff]
        %v2357 = vld [vmem:[#allocation14 + $0xe8] sm:$0xff]
        %v2358 = vld [vmem:[#allocation14 + $0xf0] sm:$0xff]
        %v2359 = vld [vmem:[#allocation14 + $0xf8] sm:$0xff]
        %2360 = vmatpush.msra.mxu0 0.0
        %2361 = vmatpush.msra.mxu0 0.0
        %2362 = vmatpush.msra.mxu0 0.0
        %2363 = vmatpush.msra.mxu0 0.0
        %2364 = vmatpush.msra.mxu0 0.0
        %2365 = vmatpush.msra.mxu0 0.0
        %2366 = vmatpush.msra.mxu0 0.0
        %2367 = vmatpush.msra.mxu0 0.0
        %2368 = vmatpush.msra.mxu0 0.0
        %2369 = vmatpush.msra.mxu0 0.0
        %2370 = vmatpush.msra.mxu0 0.0
        %2371 = vmatpush.msra.mxu0 0.0
        %2372 = vmatpush.msra.mxu0 %v2352
        %2373 = vmatpush.msra.mxu0 %v2344
        %2374 = vmatpush.msra.mxu0 %v2336
        %2375 = vmatpush.msra.mxu0 %v2328
        %2376 = vmatmul.f32.gmra.mxu0 %v1207
        %v2377 = vpop.f32.mrf.mxu0
        %v2378 = vadd.f32 0.0, %v2377
        %2379 = vdwg.mxu0
        %2380 = vmatpush.msra.mxu0 0.0
        %2381 = vmatpush.msra.mxu0 0.0
        %2382 = vmatpush.msra.mxu0 0.0
        %2383 = vmatpush.msra.mxu0 0.0
        %2384 = vmatpush.msra.mxu0 0.0
        %2385 = vmatpush.msra.mxu0 0.0
        %2386 = vmatpush.msra.mxu0 0.0
        %2387 = vmatpush.msra.mxu0 0.0
        %2388 = vmatpush.msra.mxu0 0.0
        %2389 = vmatpush.msra.mxu0 0.0
        %2390 = vmatpush.msra.mxu0 0.0
        %2391 = vmatpush.msra.mxu0 0.0
        %2392 = vmatpush.msra.mxu0 %v2353
        %2393 = vmatpush.msra.mxu0 %v2345
        %2394 = vmatpush.msra.mxu0 %v2337
        %2395 = vmatpush.msra.mxu0 %v2329
        %2396 = vmatmul.f32.gmra.mxu0 %v1207
        %v2397 = vpop.f32.mrf.mxu0
        %v2398 = vadd.f32 0.0, %v2397
        %2399 = vdwg.mxu0
        %2400 = vmatpush.msra.mxu0 0.0
        %2401 = vmatpush.msra.mxu0 0.0
        %2402 = vmatpush.msra.mxu0 0.0
        %2403 = vmatpush.msra.mxu0 0.0
        %2404 = vmatpush.msra.mxu0 0.0
        %2405 = vmatpush.msra.mxu0 0.0
        %2406 = vmatpush.msra.mxu0 0.0
        %2407 = vmatpush.msra.mxu0 0.0
        %2408 = vmatpush.msra.mxu0 0.0
        %2409 = vmatpush.msra.mxu0 0.0
        %2410 = vmatpush.msra.mxu0 0.0
        %2411 = vmatpush.msra.mxu0 0.0
        %2412 = vmatpush.msra.mxu0 %v2354
        %2413 = vmatpush.msra.mxu0 %v2346
        %2414 = vmatpush.msra.mxu0 %v2338
        %2415 = vmatpush.msra.mxu0 %v2330
        %2416 = vmatmul.f32.gmra.mxu0 %v1207
        %v2417 = vpop.f32.mrf.mxu0
        %v2418 = vadd.f32 0.0, %v2417
        %2419 = vdwg.mxu0
        %2420 = vmatpush.msra.mxu0 0.0
        %2421 = vmatpush.msra.mxu0 0.0
        %2422 = vmatpush.msra.mxu0 0.0
        %2423 = vmatpush.msra.mxu0 0.0
        %2424 = vmatpush.msra.mxu0 0.0
        %2425 = vmatpush.msra.mxu0 0.0
        %2426 = vmatpush.msra.mxu0 0.0
        %2427 = vmatpush.msra.mxu0 0.0
        %2428 = vmatpush.msra.mxu0 0.0
        %2429 = vmatpush.msra.mxu0 0.0
        %2430 = vmatpush.msra.mxu0 0.0
        %2431 = vmatpush.msra.mxu0 0.0
        %2432 = vmatpush.msra.mxu0 %v2355
        %2433 = vmatpush.msra.mxu0 %v2347
        %2434 = vmatpush.msra.mxu0 %v2339
        %2435 = vmatpush.msra.mxu0 %v2331
        %2436 = vmatmul.f32.gmra.mxu0 %v1207
        %v2437 = vpop.f32.mrf.mxu0
        %v2438 = vadd.f32 0.0, %v2437
        %2439 = vdwg.mxu0
        %2440 = vmatpush.msra.mxu0 0.0
        %2441 = vmatpush.msra.mxu0 0.0
        %2442 = vmatpush.msra.mxu0 0.0
        %2443 = vmatpush.msra.mxu0 0.0
        %2444 = vmatpush.msra.mxu0 0.0
        %2445 = vmatpush.msra.mxu0 0.0
        %2446 = vmatpush.msra.mxu0 0.0
        %2447 = vmatpush.msra.mxu0 0.0
        %2448 = vmatpush.msra.mxu0 0.0
        %2449 = vmatpush.msra.mxu0 0.0
        %2450 = vmatpush.msra.mxu0 0.0
        %2451 = vmatpush.msra.mxu0 0.0
        %2452 = vmatpush.msra.mxu0 %v2356
        %2453 = vmatpush.msra.mxu0 %v2348
        %2454 = vmatpush.msra.mxu0 %v2340
        %2455 = vmatpush.msra.mxu0 %v2332
        %2456 = vmatmul.f32.gmra.mxu0 %v1207
        %v2457 = vpop.f32.mrf.mxu0
        %v2458 = vadd.f32 0.0, %v2457
        %2459 = vdwg.mxu0
        %2460 = vmatpush.msra.mxu0 0.0
        %2461 = vmatpush.msra.mxu0 0.0
        %2462 = vmatpush.msra.mxu0 0.0
        %2463 = vmatpush.msra.mxu0 0.0
        %2464 = vmatpush.msra.mxu0 0.0
        %2465 = vmatpush.msra.mxu0 0.0
        %2466 = vmatpush.msra.mxu0 0.0
        %2467 = vmatpush.msra.mxu0 0.0
        %2468 = vmatpush.msra.mxu0 0.0
        %2469 = vmatpush.msra.mxu0 0.0
        %2470 = vmatpush.msra.mxu0 0.0
        %2471 = vmatpush.msra.mxu0 0.0
        %2472 = vmatpush.msra.mxu0 %v2357
        %2473 = vmatpush.msra.mxu0 %v2349
        %2474 = vmatpush.msra.mxu0 %v2341
        %2475 = vmatpush.msra.mxu0 %v2333
        %2476 = vmatmul.f32.gmra.mxu0 %v1207
        %v2477 = vpop.f32.mrf.mxu0
        %v2478 = vadd.f32 0.0, %v2477
        %2479 = vdwg.mxu0
        %2480 = vmatpush.msra.mxu0 0.0
        %2481 = vmatpush.msra.mxu0 0.0
        %2482 = vmatpush.msra.mxu0 0.0
        %2483 = vmatpush.msra.mxu0 0.0
        %2484 = vmatpush.msra.mxu0 0.0
        %2485 = vmatpush.msra.mxu0 0.0
        %2486 = vmatpush.msra.mxu0 0.0
        %2487 = vmatpush.msra.mxu0 0.0
        %2488 = vmatpush.msra.mxu0 0.0
        %2489 = vmatpush.msra.mxu0 0.0
        %2490 = vmatpush.msra.mxu0 0.0
        %2491 = vmatpush.msra.mxu0 0.0
        %2492 = vmatpush.msra.mxu0 %v2358
        %2493 = vmatpush.msra.mxu0 %v2350
        %2494 = vmatpush.msra.mxu0 %v2342
        %2495 = vmatpush.msra.mxu0 %v2334
        %2496 = vmatmul.f32.gmra.mxu0 %v1207
        %v2497 = vpop.f32.mrf.mxu0
        %v2498 = vadd.f32 0.0, %v2497
        %2499 = vdwg.mxu0
        %2500 = vmatpush.msra.mxu0 0.0
        %2501 = vmatpush.msra.mxu0 0.0
        %2502 = vmatpush.msra.mxu0 0.0
        %2503 = vmatpush.msra.mxu0 0.0
        %2504 = vmatpush.msra.mxu0 0.0
        %2505 = vmatpush.msra.mxu0 0.0
        %2506 = vmatpush.msra.mxu0 0.0
        %2507 = vmatpush.msra.mxu0 0.0
        %2508 = vmatpush.msra.mxu0 0.0
        %2509 = vmatpush.msra.mxu0 0.0
        %2510 = vmatpush.msra.mxu0 0.0
        %2511 = vmatpush.msra.mxu0 0.0
        %2512 = vmatpush.msra.mxu0 %v2359
        %2513 = vmatpush.msra.mxu0 %v2351
        %2514 = vmatpush.msra.mxu0 %v2343
        %2515 = vmatpush.msra.mxu0 %v2335
        %2516 = vmatmul.f32.gmra.mxu0 %v1207
        %v2517 = vpop.f32.mrf.mxu0
        %v2518 = vadd.f32 0.0, %v2517
        %2519 = vdwg.mxu0
        %v2520 = vld [vmem:[#allocation16] sm:$0xff]
        %v2521 = vld [vmem:[#allocation16 + $0x8] sm:$0xff]
        %v2522 = vld [vmem:[#allocation16 + $0x10] sm:$0xff]
        %v2523 = vld [vmem:[#allocation16 + $0x18] sm:$0xff]
        %v2524 = vld [vmem:[#allocation16 + $0x20] sm:$0xff]
        %v2525 = vld [vmem:[#allocation16 + $0x28] sm:$0xff]
        %v2526 = vld [vmem:[#allocation16 + $0x30] sm:$0xff]
        %v2527 = vld [vmem:[#allocation16 + $0x38] sm:$0xff]
        %v2528 = vld [vmem:[#allocation16 + $0x40] sm:$0xff]
        %v2529 = vld [vmem:[#allocation16 + $0x48] sm:$0xff]
        %v2530 = vld [vmem:[#allocation16 + $0x50] sm:$0xff]
        %v2531 = vld [vmem:[#allocation16 + $0x58] sm:$0xff]
        %v2532 = vld [vmem:[#allocation16 + $0x60] sm:$0xff]
        %v2533 = vld [vmem:[#allocation16 + $0x68] sm:$0xff]
        %v2534 = vld [vmem:[#allocation16 + $0x70] sm:$0xff]
        %v2535 = vld [vmem:[#allocation16 + $0x78] sm:$0xff]
        %v2536 = vld [vmem:[#allocation16 + $0x80] sm:$0xff]
        %v2537 = vld [vmem:[#allocation16 + $0x88] sm:$0xff]
        %v2538 = vld [vmem:[#allocation16 + $0x90] sm:$0xff]
        %v2539 = vld [vmem:[#allocation16 + $0x98] sm:$0xff]
        %v2540 = vld [vmem:[#allocation16 + $0xa0] sm:$0xff]
        %v2541 = vld [vmem:[#allocation16 + $0xa8] sm:$0xff]
        %v2542 = vld [vmem:[#allocation16 + $0xb0] sm:$0xff]
        %v2543 = vld [vmem:[#allocation16 + $0xb8] sm:$0xff]
        %v2544 = vld [vmem:[#allocation16 + $0xc0] sm:$0xff]
        %v2545 = vld [vmem:[#allocation16 + $0xc8] sm:$0xff]
        %v2546 = vld [vmem:[#allocation16 + $0xd0] sm:$0xff]
        %v2547 = vld [vmem:[#allocation16 + $0xd8] sm:$0xff]
        %v2548 = vld [vmem:[#allocation16 + $0xe0] sm:$0xff]
        %v2549 = vld [vmem:[#allocation16 + $0xe8] sm:$0xff]
        %v2550 = vld [vmem:[#allocation16 + $0xf0] sm:$0xff]
        %v2551 = vld [vmem:[#allocation16 + $0xf8] sm:$0xff]
        %2552 = vmatpush.msra.mxu0 0.0
        %2553 = vmatpush.msra.mxu0 0.0
        %2554 = vmatpush.msra.mxu0 0.0
        %2555 = vmatpush.msra.mxu0 0.0
        %2556 = vmatpush.msra.mxu0 0.0
        %2557 = vmatpush.msra.mxu0 0.0
        %2558 = vmatpush.msra.mxu0 0.0
        %2559 = vmatpush.msra.mxu0 0.0
        %2560 = vmatpush.msra.mxu0 0.0
        %2561 = vmatpush.msra.mxu0 0.0
        %2562 = vmatpush.msra.mxu0 0.0
        %2563 = vmatpush.msra.mxu0 0.0
        %2564 = vmatpush.msra.mxu0 %v2544
        %2565 = vmatpush.msra.mxu0 %v2536
        %2566 = vmatpush.msra.mxu0 %v2528
        %2567 = vmatpush.msra.mxu0 %v2520
        %2568 = vmatmul.f32.gmra.mxu0 %v1234
        %v2569 = vpop.f32.mrf.mxu0
        %v2570 = vadd.f32 0.0, %v2569
        %2571 = vdwg.mxu0
        %2572 = vmatpush.msra.mxu0 0.0
        %2573 = vmatpush.msra.mxu0 0.0
        %2574 = vmatpush.msra.mxu0 0.0
        %2575 = vmatpush.msra.mxu0 0.0
        %2576 = vmatpush.msra.mxu0 0.0
        %2577 = vmatpush.msra.mxu0 0.0
        %2578 = vmatpush.msra.mxu0 0.0
        %2579 = vmatpush.msra.mxu0 0.0
        %2580 = vmatpush.msra.mxu0 0.0
        %2581 = vmatpush.msra.mxu0 0.0
        %2582 = vmatpush.msra.mxu0 0.0
        %2583 = vmatpush.msra.mxu0 0.0
        %2584 = vmatpush.msra.mxu0 %v2545
        %2585 = vmatpush.msra.mxu0 %v2537
        %2586 = vmatpush.msra.mxu0 %v2529
        %2587 = vmatpush.msra.mxu0 %v2521
        %2588 = vmatmul.f32.gmra.mxu0 %v1234
        %v2589 = vpop.f32.mrf.mxu0
        %v2590 = vadd.f32 0.0, %v2589
        %2591 = vdwg.mxu0
        %2592 = vmatpush.msra.mxu0 0.0
        %2593 = vmatpush.msra.mxu0 0.0
        %2594 = vmatpush.msra.mxu0 0.0
        %2595 = vmatpush.msra.mxu0 0.0
        %2596 = vmatpush.msra.mxu0 0.0
        %2597 = vmatpush.msra.mxu0 0.0
        %2598 = vmatpush.msra.mxu0 0.0
        %2599 = vmatpush.msra.mxu0 0.0
        %2600 = vmatpush.msra.mxu0 0.0
        %2601 = vmatpush.msra.mxu0 0.0
        %2602 = vmatpush.msra.mxu0 0.0
        %2603 = vmatpush.msra.mxu0 0.0
        %2604 = vmatpush.msra.mxu0 %v2546
        %2605 = vmatpush.msra.mxu0 %v2538
        %2606 = vmatpush.msra.mxu0 %v2530
        %2607 = vmatpush.msra.mxu0 %v2522
        %2608 = vmatmul.f32.gmra.mxu0 %v1234
        %v2609 = vpop.f32.mrf.mxu0
        %v2610 = vadd.f32 0.0, %v2609
        %2611 = vdwg.mxu0
        %2612 = vmatpush.msra.mxu0 0.0
        %2613 = vmatpush.msra.mxu0 0.0
        %2614 = vmatpush.msra.mxu0 0.0
        %2615 = vmatpush.msra.mxu0 0.0
        %2616 = vmatpush.msra.mxu0 0.0
        %2617 = vmatpush.msra.mxu0 0.0
        %2618 = vmatpush.msra.mxu0 0.0
        %2619 = vmatpush.msra.mxu0 0.0
        %2620 = vmatpush.msra.mxu0 0.0
        %2621 = vmatpush.msra.mxu0 0.0
        %2622 = vmatpush.msra.mxu0 0.0
        %2623 = vmatpush.msra.mxu0 0.0
        %2624 = vmatpush.msra.mxu0 %v2547
        %2625 = vmatpush.msra.mxu0 %v2539
        %2626 = vmatpush.msra.mxu0 %v2531
        %2627 = vmatpush.msra.mxu0 %v2523
        %2628 = vmatmul.f32.gmra.mxu0 %v1234
        %v2629 = vpop.f32.mrf.mxu0
        %v2630 = vadd.f32 0.0, %v2629
        %2631 = vdwg.mxu0
        %2632 = vmatpush.msra.mxu0 0.0
        %2633 = vmatpush.msra.mxu0 0.0
        %2634 = vmatpush.msra.mxu0 0.0
        %2635 = vmatpush.msra.mxu0 0.0
        %2636 = vmatpush.msra.mxu0 0.0
        %2637 = vmatpush.msra.mxu0 0.0
        %2638 = vmatpush.msra.mxu0 0.0
        %2639 = vmatpush.msra.mxu0 0.0
        %2640 = vmatpush.msra.mxu0 0.0
        %2641 = vmatpush.msra.mxu0 0.0
        %2642 = vmatpush.msra.mxu0 0.0
        %2643 = vmatpush.msra.mxu0 0.0
        %2644 = vmatpush.msra.mxu0 %v2548
        %2645 = vmatpush.msra.mxu0 %v2540
        %2646 = vmatpush.msra.mxu0 %v2532
        %2647 = vmatpush.msra.mxu0 %v2524
        %2648 = vmatmul.f32.gmra.mxu0 %v1234
        %v2649 = vpop.f32.mrf.mxu0
        %v2650 = vadd.f32 0.0, %v2649
        %2651 = vdwg.mxu0
        %2652 = vmatpush.msra.mxu0 0.0
        %2653 = vmatpush.msra.mxu0 0.0
        %2654 = vmatpush.msra.mxu0 0.0
        %2655 = vmatpush.msra.mxu0 0.0
        %2656 = vmatpush.msra.mxu0 0.0
        %2657 = vmatpush.msra.mxu0 0.0
        %2658 = vmatpush.msra.mxu0 0.0
        %2659 = vmatpush.msra.mxu0 0.0
        %2660 = vmatpush.msra.mxu0 0.0
        %2661 = vmatpush.msra.mxu0 0.0
        %2662 = vmatpush.msra.mxu0 0.0
        %2663 = vmatpush.msra.mxu0 0.0
        %2664 = vmatpush.msra.mxu0 %v2549
        %2665 = vmatpush.msra.mxu0 %v2541
        %2666 = vmatpush.msra.mxu0 %v2533
        %2667 = vmatpush.msra.mxu0 %v2525
        %2668 = vmatmul.f32.gmra.mxu0 %v1234
        %v2669 = vpop.f32.mrf.mxu0
        %v2670 = vadd.f32 0.0, %v2669
        %2671 = vdwg.mxu0
        %2672 = vmatpush.msra.mxu0 0.0
        %2673 = vmatpush.msra.mxu0 0.0
        %2674 = vmatpush.msra.mxu0 0.0
        %2675 = vmatpush.msra.mxu0 0.0
        %2676 = vmatpush.msra.mxu0 0.0
        %2677 = vmatpush.msra.mxu0 0.0
        %2678 = vmatpush.msra.mxu0 0.0
        %2679 = vmatpush.msra.mxu0 0.0
        %2680 = vmatpush.msra.mxu0 0.0
        %2681 = vmatpush.msra.mxu0 0.0
        %2682 = vmatpush.msra.mxu0 0.0
        %2683 = vmatpush.msra.mxu0 0.0
        %2684 = vmatpush.msra.mxu0 %v2550
        %2685 = vmatpush.msra.mxu0 %v2542
        %2686 = vmatpush.msra.mxu0 %v2534
        %2687 = vmatpush.msra.mxu0 %v2526
        %2688 = vmatmul.f32.gmra.mxu0 %v1234
        %v2689 = vpop.f32.mrf.mxu0
        %v2690 = vadd.f32 0.0, %v2689
        %2691 = vdwg.mxu0
        %2692 = vmatpush.msra.mxu0 0.0
        %2693 = vmatpush.msra.mxu0 0.0
        %2694 = vmatpush.msra.mxu0 0.0
        %2695 = vmatpush.msra.mxu0 0.0
        %2696 = vmatpush.msra.mxu0 0.0
        %2697 = vmatpush.msra.mxu0 0.0
        %2698 = vmatpush.msra.mxu0 0.0
        %2699 = vmatpush.msra.mxu0 0.0
        %2700 = vmatpush.msra.mxu0 0.0
        %2701 = vmatpush.msra.mxu0 0.0
        %2702 = vmatpush.msra.mxu0 0.0
        %2703 = vmatpush.msra.mxu0 0.0
        %2704 = vmatpush.msra.mxu0 %v2551
        %2705 = vmatpush.msra.mxu0 %v2543
        %2706 = vmatpush.msra.mxu0 %v2535
        %2707 = vmatpush.msra.mxu0 %v2527
        %2708 = vmatmul.f32.gmra.mxu0 %v1234
        %v2709 = vpop.f32.mrf.mxu0
        %v2710 = vadd.f32 0.0, %v2709
        %2711 = vdwg.mxu0
        %v2712 = vld [vmem:[%s1008] sm:$0xff]
        %v2713 = vld [vmem:[%s1008 + $0x8] sm:$0xff]
        %v2714 = vld [vmem:[%s1008 + $0x10] sm:$0xff]
        %v2715 = vld [vmem:[%s1008 + $0x18] sm:$0xff]
        %v2716 = vld [vmem:[%s1008 + $0x20] sm:$0xff]
        %v2717 = vld [vmem:[%s1008 + $0x28] sm:$0xff]
        %v2718 = vld [vmem:[%s1008 + $0x30] sm:$0xff]
        %v2719 = vld [vmem:[%s1008 + $0x38] sm:$0xff]
        %v2720 = vmul.f32 %v2712, %v1378
        %v2721 = vmul.f32 %v2713, %v1398
        %v2722 = vmul.f32 %v2714, %v1418
        %v2723 = vmul.f32 %v2715, %v1438
        %v2724 = vmul.f32 %v2716, %v1458
        %v2725 = vmul.f32 %v2717, %v1478
        %v2726 = vmul.f32 %v2718, %v1498
        %v2727 = vmul.f32 %v2719, %v1518
        %v2728 = vmul.f32 %v1701, %v2378
        %v2729 = vmul.f32 %v1721, %v2398
        %v2730 = vmul.f32 %v1741, %v2418
        %v2731 = vmul.f32 %v1761, %v2438
        %v2732 = vmul.f32 %v1781, %v2458
        %v2733 = vmul.f32 %v1801, %v2478
        %v2734 = vmul.f32 %v1821, %v2498
        %v2735 = vmul.f32 %v1841, %v2518
        %v2736 = vadd.f32 %v2720, %v2728
        %v2737 = vadd.f32 %v2721, %v2729
        %v2738 = vadd.f32 %v2722, %v2730
        %v2739 = vadd.f32 %v2723, %v2731
        %v2740 = vadd.f32 %v2724, %v2732
        %v2741 = vadd.f32 %v2725, %v2733
        %v2742 = vadd.f32 %v2726, %v2734
        %v2743 = vadd.f32 %v2727, %v2735
        %2744 = vst [vmem:[%s1135] sm:$0xff] %v2736
        %2745 = vst [vmem:[%s1135 + $0x8] sm:$0xff] %v2737
        %2746 = vst [vmem:[%s1135 + $0x10] sm:$0xff] %v2738
        %2747 = vst [vmem:[%s1135 + $0x18] sm:$0xff] %v2739
        %2748 = vst [vmem:[%s1135 + $0x20] sm:$0xff] %v2740
        %2749 = vst [vmem:[%s1135 + $0x28] sm:$0xff] %v2741
        %2750 = vst [vmem:[%s1135 + $0x30] sm:$0xff] %v2742
        %2751 = vst [vmem:[%s1135 + $0x38] sm:$0xff] %v2743
        %v2752 = vld [vmem:[%s1018] sm:$0xff]
        %v2753 = vld [vmem:[%s1018 + $0x8] sm:$0xff]
        %v2754 = vld [vmem:[%s1018 + $0x10] sm:$0xff]
        %v2755 = vld [vmem:[%s1018 + $0x18] sm:$0xff]
        %v2756 = vld [vmem:[%s1018 + $0x20] sm:$0xff]
        %v2757 = vld [vmem:[%s1018 + $0x28] sm:$0xff]
        %v2758 = vld [vmem:[%s1018 + $0x30] sm:$0xff]
        %v2759 = vld [vmem:[%s1018 + $0x38] sm:$0xff]
        %v2760 = vmul.f32 %v2752, %v1538
        %v2761 = vmul.f32 %v2753, %v1558
        %v2762 = vmul.f32 %v2754, %v1578
        %v2763 = vmul.f32 %v2755, %v1598
        %v2764 = vmul.f32 %v2756, %v1618
        %v2765 = vmul.f32 %v2757, %v1638
        %v2766 = vmul.f32 %v2758, %v1658
        %v2767 = vmul.f32 %v2759, %v1678
        %v2768 = vmul.f32 %v1861, %v2570
        %v2769 = vmul.f32 %v1881, %v2590
        %v2770 = vmul.f32 %v1901, %v2610
        %v2771 = vmul.f32 %v1921, %v2630
        %v2772 = vmul.f32 %v1941, %v2650
        %v2773 = vmul.f32 %v1961, %v2670
        %v2774 = vmul.f32 %v1981, %v2690
        %v2775 = vmul.f32 %v2001, %v2710
        %v2776 = vadd.f32 %v2760, %v2768
        %v2777 = vadd.f32 %v2761, %v2769
        %v2778 = vadd.f32 %v2762, %v2770
        %v2779 = vadd.f32 %v2763, %v2771
        %v2780 = vadd.f32 %v2764, %v2772
        %v2781 = vadd.f32 %v2765, %v2773
        %v2782 = vadd.f32 %v2766, %v2774
        %v2783 = vadd.f32 %v2767, %v2775
        %2784 = vst [vmem:[%s1142] sm:$0xff] %v2776
        %2785 = vst [vmem:[%s1142 + $0x8] sm:$0xff] %v2777
        %2786 = vst [vmem:[%s1142 + $0x10] sm:$0xff] %v2778
        %2787 = vst [vmem:[%s1142 + $0x18] sm:$0xff] %v2779
        %2788 = vst [vmem:[%s1142 + $0x20] sm:$0xff] %v2780
        %2789 = vst [vmem:[%s1142 + $0x28] sm:$0xff] %v2781
        %2790 = vst [vmem:[%s1142 + $0x30] sm:$0xff] %v2782
        %2791 = vst [vmem:[%s1142 + $0x38] sm:$0xff] %v2783
        %v2792 = vld [vmem:[%s1178] sm:$0xff]
        %v2793 = vmul.f32 %v2792, %v1269
        %v2794 = vadd.f32 %v2793, %v1285
        %2795 = vst.msk [vmem:[%s1190] sm:$0xff] %vm1205, %v2794
        %v2796 = vld [vmem:[%s1028] sm:$0xff]
        %v2797 = vld [vmem:[%s1028 + $0x8] sm:$0xff]
        %v2798 = vld [vmem:[%s1028 + $0x10] sm:$0xff]
        %v2799 = vld [vmem:[%s1028 + $0x18] sm:$0xff]
        %v2800 = vld [vmem:[%s1028 + $0x20] sm:$0xff]
        %v2801 = vld [vmem:[%s1028 + $0x28] sm:$0xff]
        %v2802 = vld [vmem:[%s1028 + $0x30] sm:$0xff]
        %v2803 = vld [vmem:[%s1028 + $0x38] sm:$0xff]
        %v2804 = vmul.f32 %v2796, %v1378
        %v2805 = vmul.f32 %v2797, %v1398
        %v2806 = vmul.f32 %v2798, %v1418
        %v2807 = vmul.f32 %v2799, %v1438
        %v2808 = vmul.f32 %v2800, %v1458
        %v2809 = vmul.f32 %v2801, %v1478
        %v2810 = vmul.f32 %v2802, %v1498
        %v2811 = vmul.f32 %v2803, %v1518
        %v2812 = vmul.f32 %v2026, %v2378
        %v2813 = vmul.f32 %v2046, %v2398
        %v2814 = vmul.f32 %v2066, %v2418
        %v2815 = vmul.f32 %v2086, %v2438
        %v2816 = vmul.f32 %v2106, %v2458
        %v2817 = vmul.f32 %v2126, %v2478
        %v2818 = vmul.f32 %v2146, %v2498
        %v2819 = vmul.f32 %v2166, %v2518
        %v2820 = vadd.f32 %v2804, %v2812
        %v2821 = vadd.f32 %v2805, %v2813
        %v2822 = vadd.f32 %v2806, %v2814
        %v2823 = vadd.f32 %v2807, %v2815
        %v2824 = vadd.f32 %v2808, %v2816
        %v2825 = vadd.f32 %v2809, %v2817
        %v2826 = vadd.f32 %v2810, %v2818
        %v2827 = vadd.f32 %v2811, %v2819
        %2828 = vst [vmem:[%s1155] sm:$0xff] %v2820
        %2829 = vst [vmem:[%s1155 + $0x8] sm:$0xff] %v2821
        %2830 = vst [vmem:[%s1155 + $0x10] sm:$0xff] %v2822
        %2831 = vst [vmem:[%s1155 + $0x18] sm:$0xff] %v2823
        %2832 = vst [vmem:[%s1155 + $0x20] sm:$0xff] %v2824
        %2833 = vst [vmem:[%s1155 + $0x28] sm:$0xff] %v2825
        %2834 = vst [vmem:[%s1155 + $0x30] sm:$0xff] %v2826
        %2835 = vst [vmem:[%s1155 + $0x38] sm:$0xff] %v2827
        %v2836 = vld [vmem:[%s1038] sm:$0xff]
        %v2837 = vld [vmem:[%s1038 + $0x8] sm:$0xff]
        %v2838 = vld [vmem:[%s1038 + $0x10] sm:$0xff]
        %v2839 = vld [vmem:[%s1038 + $0x18] sm:$0xff]
        %v2840 = vld [vmem:[%s1038 + $0x20] sm:$0xff]
        %v2841 = vld [vmem:[%s1038 + $0x28] sm:$0xff]
        %v2842 = vld [vmem:[%s1038 + $0x30] sm:$0xff]
        %v2843 = vld [vmem:[%s1038 + $0x38] sm:$0xff]
        %v2844 = vmul.f32 %v2836, %v1538
        %v2845 = vmul.f32 %v2837, %v1558
        %v2846 = vmul.f32 %v2838, %v1578
        %v2847 = vmul.f32 %v2839, %v1598
        %v2848 = vmul.f32 %v2840, %v1618
        %v2849 = vmul.f32 %v2841, %v1638
        %v2850 = vmul.f32 %v2842, %v1658
        %v2851 = vmul.f32 %v2843, %v1678
        %v2852 = vmul.f32 %v2186, %v2570
        %v2853 = vmul.f32 %v2206, %v2590
        %v2854 = vmul.f32 %v2226, %v2610
        %v2855 = vmul.f32 %v2246, %v2630
        %v2856 = vmul.f32 %v2266, %v2650
        %v2857 = vmul.f32 %v2286, %v2670
        %v2858 = vmul.f32 %v2306, %v2690
        %v2859 = vmul.f32 %v2326, %v2710
        %v2860 = vadd.f32 %v2844, %v2852
        %v2861 = vadd.f32 %v2845, %v2853
        %v2862 = vadd.f32 %v2846, %v2854
        %v2863 = vadd.f32 %v2847, %v2855
        %v2864 = vadd.f32 %v2848, %v2856
        %v2865 = vadd.f32 %v2849, %v2857
        %v2866 = vadd.f32 %v2850, %v2858
        %v2867 = vadd.f32 %v2851, %v2859
        %2868 = vst [vmem:[%s1162] sm:$0xff] %v2860
        %2869 = vst [vmem:[%s1162 + $0x8] sm:$0xff] %v2861
        %2870 = vst [vmem:[%s1162 + $0x10] sm:$0xff] %v2862
        %2871 = vst [vmem:[%s1162 + $0x18] sm:$0xff] %v2863
        %2872 = vst [vmem:[%s1162 + $0x20] sm:$0xff] %v2864
        %2873 = vst [vmem:[%s1162 + $0x28] sm:$0xff] %v2865
        %2874 = vst [vmem:[%s1162 + $0x30] sm:$0xff] %v2866
        %2875 = vst [vmem:[%s1162 + $0x38] sm:$0xff] %v2867
        %v2876 = vld [vmem:[%s1182] sm:$0xff]
        %v2877 = vmul.f32 %v2876, %v1269
        %v2879 = vadd.f32 %v2877, %v2005
        %2880 = vst.msk [vmem:[%s1194] sm:$0xff] %vm1205, %v2879
        %v2881 = vld [vmem:[#allocation10] sm:$0xff]
        %v2882 = vld [vmem:[#allocation10 + $0x8] sm:$0xff]
        %v2883 = vld [vmem:[#allocation10 + $0x10] sm:$0xff]
        %v2884 = vld [vmem:[#allocation10 + $0x18] sm:$0xff]
        %v2886 = vsel %vm1205, %v1271, 0
        %2888 = vmatpush.msra.mxu0 0.0
        %2889 = vmatpush.msra.mxu0 0.0
        %2890 = vmatpush.msra.mxu0 0.0
        %2891 = vmatpush.msra.mxu0 0.0
        %2892 = vmatpush.msra.mxu0 0.0
        %2893 = vmatpush.msra.mxu0 0.0
        %2894 = vmatpush.msra.mxu0 0.0
        %2895 = vmatpush.msra.mxu0 0.0
        %2896 = vmatpush.msra.mxu0 0.0
        %2897 = vmatpush.msra.mxu0 0.0
        %2898 = vmatpush.msra.mxu0 0.0
        %2899 = vmatpush.msra.mxu0 0.0
        %2900 = vmatpush.msra.mxu0 %v2884
        %2901 = vmatpush.msra.mxu0 %v2883
        %2902 = vmatpush.msra.mxu0 %v2882
        %2903 = vmatpush.msra.mxu0 %v2881
        %2904 = vmatmul.f32.gmra.mxu0 %v2886
        %v2905 = vpop.f32.mrf.mxu0
        %v2906 = vadd.f32 0.0, %v2905
        %2907 = vdwg.mxu0
        %2909 = vrot.lane.b32.xlu0 %v2906, 64
        %v2910 = vpop.permute.xlu0 %2909
        %v2912 = vadd.f32 %v1227, %v2910
        %v2913 = vld [vmem:[%s6] sm:$0x1]
        %v2915 = vperm.slane %v2913, 0
        %2916 = vrot.lane.b32.xlu0 %v2915, 64
        %v2917 = vpop.permute.xlu0 %2916
        %v2919 = vadd.f32 %v2912, %v2917
        %v2920 = vtanh.pop %v2919
        %v2921 = vxor.u32 %v2919, 2147483648
        %v2922 = vmul.f32 %v2921, 1.442695
        %v2923 = vpow.pop %v2922
        %v2924 = vadd.f32 %v2923, 1.0
        %v2925 = vrcp.pop %v2924
        %v2926 = vmul.f32 %v2924, %v2925
        %v2927 = vsub.f32 1.0, %v2926
        %v2928 = vmul.f32 %v2925, %v2927
        %v2929 = vadd.f32 %v2925, %v2928
        %vm2930 = vweird.f32 %v2924
        %vm2931 = vweird.f32 %v2925
        %vm2932 = vmor %vm2930, %vm2931
        %v2933 = vsel %vm2932, %v2925, %v2929
        %v2934 = vand.u32 2147483647, %v2924
        %vm2935 = vcmp.eq.f32.partialorder %v2934, 8.507059e+37
        %v2936 = vand.u32 %v2924, 2147483648
        %v2937 = vor.u32 1.1754944e-38, %v2936
        %v2938 = vsel %vm2935, %v2937, %v2933
        %v2939 = vmul.f32 1.0, %v2938
        %2941 = vrot.lane.b32.xlu0 %v2920, 16
        %v2942 = vpop.permute.xlu0 %2941
        %v2944 = vmul.f32 %v2939, %v2942
        %2946 = vrot.lane.b32.xlu0 %v2944, 48
        %v2947 = vpop.permute.xlu0 %2946
        %vm2949 = vcmask 130048
        %2950 = vst.msk [vmem:[%s1122] sm:$0xff] %vm2949, %v2947
        %2951 = vst.msk [vmem:[%s1186] sm:$0xff] %vm1205, %v1271
        %2952 = vst.msk [vmem:[%s1198] sm:$0xff] %vm1205, %v1273
        %s2953 = sand.u32 %s466, 1
        %s2954 = scalar_lea.sflag [#allocation4], %s2953
        %s2955 = sand.u32 %s466, 1
        %s2956 = smul.addr %s2955, 8
        %s2957 = scalar_lea.vmem [#allocation23], %s2956
        %p2958 = scmp.lt.s32.totalorder %s61, 1
        %s2959 = scalar_select %p2958, %s61, 1
        %s2960 = smul.addr %s2959, 8
        %s2961 = scalar_lea.vmem %s18, %s2960
        %s2962 = sand.u32 %s61, 1
        %s2963 = scalar_lea.sflag [#allocation25], %s2962
        %s2964 = sand.u32 %s518, 1
        %s2965 = smul.addr %s2964, 64
        %s2966 = scalar_lea.vmem [#allocation24], %s2965
        %s2967 = sand.u32 %s61, 1
        %s2968 = scalar_lea.sflag [#allocation25], %s2967
        %s2969 = sand.u32 %s544, 1
        %s2970 = smul.addr %s2969, 64
        %s2971 = scalar_lea.vmem [#allocation26], %s2970
        %p2972 = scmp.lt.s32.totalorder %s61, 1
        %s2973 = scalar_select %p2972, %s61, 1
        %s2974 = smul.addr %s2973, 8
        %s2975 = scalar_lea.vmem %s21, %s2974
        %s2976 = sand.u32 %s61, 1
        %s2977 = scalar_lea.sflag [#allocation28], %s2976
        %s2978 = sand.u32 %s596, 1
        %s2979 = smul.addr %s2978, 64
        %s2980 = scalar_lea.vmem [#allocation27], %s2979
        %s2981 = sand.u32 %s61, 1
        %s2982 = scalar_lea.sflag [#allocation28], %s2981
        %s2983 = sand.u32 %s622, 1
        %s2984 = smul.addr %s2983, 64
        %s2985 = scalar_lea.vmem [#allocation29], %s2984
        %p2986 = scmp.lt.s32.totalorder %s61, 1
        %s2987 = scalar_select %p2986, %s61, 1
        %s2988 = smul.addr %s2987, 8
        %s2989 = scalar_lea.vmem %s24, %s2988
        %p2990 = scmp.lt.s32.totalorder %s61, 1
        %s2991 = scalar_select %p2990, %s61, 1
        %s2992 = smul.addr %s2991, 8
        %s2993 = scalar_lea.vmem %s25, %s2992
        // Predicated region
        $region141: #{_forward_impl.1} parent=87 // pred_check
          %p2994 = pneg %p476
        $region142: #{_forward_impl.1} parent=87 // pred_check_branch
          %2996 = sbr.rel (%p2994) target = $region144
        $region143: #{_forward_impl.1} parent=87 // pred_region
          %2998 = vsyncadd %s2954, 0
          %s2999 = smul.addr %s61, 8
          %s3000 = scalar_lea.hbm %s17, %s2999
          %s3002 = sshll.u32 %s2957, 4
          %s3003 = int_to_ptr.vmem [resolvable:$true] %s3002
          %s3004 = sshll.u32 %s3000, 4
          %s3005 = int_to_ptr.hbm [resolvable:$true] %s3004
          %3007 = dma.vmem_to_hbm [thread:$0]  %s3003, 128, %s3005, %s2954
        $region144: #{_forward_impl.1} parent=87 // pred_fallthru
          _
        // Predicated region
        $region145: #{_forward_impl.1} parent=87 // pred_check
          %p3008 = pneg %p502
        $region146: #{_forward_impl.1} parent=87 // pred_check_branch
          %3010 = sbr.rel (%p3008) target = $region148
        $region147: #{_forward_impl.1} parent=87 // pred_region
          _
        $region148: #{_forward_impl.1} parent=87 // pred_fallthru
          _
        // Predicated region
        $region149: #{_forward_impl.1} parent=87 // pred_check
          %p3011 = pneg %p528
        $region150: #{_forward_impl.1} parent=87 // pred_check_branch
          %3013 = sbr.rel (%p3011) target = $region152
        $region151: #{_forward_impl.1} parent=87 // pred_region
          %3015 = vsyncadd %s2963, 0
          %s3016 = smul.addr %s61, 8
          %s3017 = smul.addr %s3016, 8
          %s3018 = scalar_lea.hbm %s19, %s3017
          %s3020 = sshll.u32 %s2966, 4
          %s3021 = int_to_ptr.vmem [resolvable:$true] %s3020
          %s3022 = sshll.u32 %s3018, 4
          %s3023 = int_to_ptr.hbm [resolvable:$true] %s3022
          %3025 = dma.vmem_to_hbm [thread:$0]  %s3021, 1024, %s3023, %s2963
        $region152: #{_forward_impl.1} parent=87 // pred_fallthru
          _
        // Predicated region
        $region153: #{_forward_impl.1} parent=87 // pred_check
          %p3026 = pneg %p554
        $region154: #{_forward_impl.1} parent=87 // pred_check_branch
          %3028 = sbr.rel (%p3026) target = $region156
        $region155: #{_forward_impl.1} parent=87 // pred_region
          %3030 = vsyncadd %s2968, 0
          %s3031 = smul.addr %s61, 8
          %s3032 = smul.addr %s3031, 8
          %s3033 = scalar_lea.hbm %s20, %s3032
          %s3035 = sshll.u32 %s2971, 4
          %s3036 = int_to_ptr.vmem [resolvable:$true] %s3035
          %s3037 = sshll.u32 %s3033, 4
          %s3038 = int_to_ptr.hbm [resolvable:$true] %s3037
          %3040 = dma.vmem_to_hbm [thread:$0]  %s3036, 1024, %s3038, %s2968
        $region156: #{_forward_impl.1} parent=87 // pred_fallthru
          _
        // Predicated region
        $region157: #{_forward_impl.1} parent=87 // pred_check
          %p3041 = pneg %p580
        $region158: #{_forward_impl.1} parent=87 // pred_check_branch
          %3043 = sbr.rel (%p3041) target = $region160
        $region159: #{_forward_impl.1} parent=87 // pred_region
          _
        $region160: #{_forward_impl.1} parent=87 // pred_fallthru
          _
        // Predicated region
        $region161: #{_forward_impl.1} parent=87 // pred_check
          %p3044 = pneg %p606
        $region162: #{_forward_impl.1} parent=87 // pred_check_branch
          %3046 = sbr.rel (%p3044) target = $region164
        $region163: #{_forward_impl.1} parent=87 // pred_region
          %3048 = vsyncadd %s2977, 0
          %s3049 = smul.addr %s61, 8
          %s3050 = smul.addr %s3049, 8
          %s3051 = scalar_lea.hbm %s22, %s3050
          %s3053 = sshll.u32 %s2980, 4
          %s3054 = int_to_ptr.vmem [resolvable:$true] %s3053
          %s3055 = sshll.u32 %s3051, 4
          %s3056 = int_to_ptr.hbm [resolvable:$true] %s3055
          %3058 = dma.vmem_to_hbm [thread:$0]  %s3054, 1024, %s3056, %s2977
        $region164: #{_forward_impl.1} parent=87 // pred_fallthru
          _
        // Predicated region
        $region165: #{_forward_impl.1} parent=87 // pred_check
          %p3059 = pneg %p632
        $region166: #{_forward_impl.1} parent=87 // pred_check_branch
          %3061 = sbr.rel (%p3059) target = $region168
        $region167: #{_forward_impl.1} parent=87 // pred_region
          %3063 = vsyncadd %s2982, 0
          %s3064 = smul.addr %s61, 8
          %s3065 = smul.addr %s3064, 8
          %s3066 = scalar_lea.hbm %s23, %s3065
          %s3068 = sshll.u32 %s2985, 4
          %s3069 = int_to_ptr.vmem [resolvable:$true] %s3068
          %s3070 = sshll.u32 %s3066, 4
          %s3071 = int_to_ptr.hbm [resolvable:$true] %s3070
          %3073 = dma.vmem_to_hbm [thread:$0]  %s3069, 1024, %s3071, %s2982
        $region168: #{_forward_impl.1} parent=87 // pred_fallthru
          _
        // Predicated region
        $region169: #{_forward_impl.1} parent=87 // pred_check
          %p3074 = pneg %p658
        $region170: #{_forward_impl.1} parent=87 // pred_check_branch
          %3076 = sbr.rel (%p3074) target = $region172
        $region171: #{_forward_impl.1} parent=87 // pred_region
          _
        $region172: #{_forward_impl.1} parent=87 // pred_fallthru
          _
        // Predicated region
        $region173: #{_forward_impl.1} parent=87 // pred_check
          %p3077 = pneg %p684
        $region174: #{_forward_impl.1} parent=87 // pred_check_branch
          %3079 = sbr.rel (%p3077) target = $region176
        $region175: #{_forward_impl.1} parent=87 // pred_region
          _
        $region176: #{_forward_impl.1} parent=87 // pred_fallthru
          _
      $region88: #{_forward_impl.1} parent=5 // pred_fallthru
        _
      %p3080 = scmp.le.s32.totalorder 2, %s56
      // Predicated region
      $region177: #{_forward_impl.1} parent=5 // pred_check
        %p3081 = pneg %p3080
      $region178: #{_forward_impl.1} parent=5 // pred_check_branch
        %3083 = sbr.rel (%p3081) target = $region180
      $region179: #{_forward_impl.1} parent=5 // pred_region
        %s3084 = ssub.s32 %s56, 2
        // Predicated region
        $region181: #{_forward_impl.1} parent=179 // pred_check
          %p3085 = pneg %p482
        $region182: #{_forward_impl.1} parent=179 // pred_check_branch
          %3087 = sbr.rel (%p3085) target = $region184
        $region183: #{_forward_impl.1} parent=179 // pred_region
          %s3088 = sand.u32 %s467, 1
          %s3089 = scalar_lea.sflag [#allocation4], %s3088
          %s3090 = sand.u32 %s467, 1
          %s3091 = smul.addr %s3090, 8
          %s3092 = scalar_lea.vmem [#allocation23], %s3091
          %3094 = dma.done %s3089, 128
        $region184: #{_forward_impl.1} parent=179 // pred_fallthru
          _
        // Predicated region
        $region185: #{_forward_impl.1} parent=179 // pred_check
          %p3095 = pneg %p508
        $region186: #{_forward_impl.1} parent=179 // pred_check_branch
          %3097 = sbr.rel (%p3095) target = $region188
        $region187: #{_forward_impl.1} parent=179 // pred_region
          %p3098 = scmp.lt.s32.totalorder %s62, 1
          %s3099 = scalar_select %p3098, %s62, 1
          %s3100 = smul.addr %s3099, 8
          %s3101 = scalar_lea.vmem %s18, %s3100
        $region188: #{_forward_impl.1} parent=179 // pred_fallthru
          _
        // Predicated region
        $region189: #{_forward_impl.1} parent=179 // pred_check
          %p3102 = pneg %p534
        $region190: #{_forward_impl.1} parent=179 // pred_check_branch
          %3104 = sbr.rel (%p3102) target = $region192
        $region191: #{_forward_impl.1} parent=179 // pred_region
          %s3105 = sand.u32 %s62, 1
          %s3106 = scalar_lea.sflag [#allocation25], %s3105
          %s3107 = sand.u32 %s519, 1
          %s3108 = smul.addr %s3107, 64
          %s3109 = scalar_lea.vmem [#allocation24], %s3108
          %3111 = dma.done %s3106, 1024
        $region192: #{_forward_impl.1} parent=179 // pred_fallthru
          _
        // Predicated region
        $region193: #{_forward_impl.1} parent=179 // pred_check
          %p3112 = pneg %p560
        $region194: #{_forward_impl.1} parent=179 // pred_check_branch
          %3114 = sbr.rel (%p3112) target = $region196
        $region195: #{_forward_impl.1} parent=179 // pred_region
          %s3115 = sand.u32 %s62, 1
          %s3116 = scalar_lea.sflag [#allocation25], %s3115
          %s3117 = sand.u32 %s545, 1
          %s3118 = smul.addr %s3117, 64
          %s3119 = scalar_lea.vmem [#allocation26], %s3118
          %3121 = dma.done %s3116, 1024
        $region196: #{_forward_impl.1} parent=179 // pred_fallthru
          _
        // Predicated region
        $region197: #{_forward_impl.1} parent=179 // pred_check
          %p3122 = pneg %p586
        $region198: #{_forward_impl.1} parent=179 // pred_check_branch
          %3124 = sbr.rel (%p3122) target = $region200
        $region199: #{_forward_impl.1} parent=179 // pred_region
          %p3125 = scmp.lt.s32.totalorder %s62, 1
          %s3126 = scalar_select %p3125, %s62, 1
          %s3127 = smul.addr %s3126, 8
          %s3128 = scalar_lea.vmem %s21, %s3127
        $region200: #{_forward_impl.1} parent=179 // pred_fallthru
          _
        // Predicated region
        $region201: #{_forward_impl.1} parent=179 // pred_check
          %p3129 = pneg %p612
        $region202: #{_forward_impl.1} parent=179 // pred_check_branch
          %3131 = sbr.rel (%p3129) target = $region204
        $region203: #{_forward_impl.1} parent=179 // pred_region
          %s3132 = sand.u32 %s62, 1
          %s3133 = scalar_lea.sflag [#allocation28], %s3132
          %s3134 = sand.u32 %s597, 1
          %s3135 = smul.addr %s3134, 64
          %s3136 = scalar_lea.vmem [#allocation27], %s3135
          %3138 = dma.done %s3133, 1024
        $region204: #{_forward_impl.1} parent=179 // pred_fallthru
          _
        // Predicated region
        $region205: #{_forward_impl.1} parent=179 // pred_check
          %p3139 = pneg %p638
        $region206: #{_forward_impl.1} parent=179 // pred_check_branch
          %3141 = sbr.rel (%p3139) target = $region208
        $region207: #{_forward_impl.1} parent=179 // pred_region
          %s3142 = sand.u32 %s62, 1
          %s3143 = scalar_lea.sflag [#allocation28], %s3142
          %s3144 = sand.u32 %s623, 1
          %s3145 = smul.addr %s3144, 64
          %s3146 = scalar_lea.vmem [#allocation29], %s3145
          %3148 = dma.done %s3143, 1024
        $region208: #{_forward_impl.1} parent=179 // pred_fallthru
          _
        // Predicated region
        $region209: #{_forward_impl.1} parent=179 // pred_check
          %p3149 = pneg %p664
        $region210: #{_forward_impl.1} parent=179 // pred_check_branch
          %3151 = sbr.rel (%p3149) target = $region212
        $region211: #{_forward_impl.1} parent=179 // pred_region
          %p3152 = scmp.lt.s32.totalorder %s62, 1
          %s3153 = scalar_select %p3152, %s62, 1
          %s3154 = smul.addr %s3153, 8
          %s3155 = scalar_lea.vmem %s24, %s3154
        $region212: #{_forward_impl.1} parent=179 // pred_fallthru
          _
        // Predicated region
        $region213: #{_forward_impl.1} parent=179 // pred_check
          %p3156 = pneg %p690
        $region214: #{_forward_impl.1} parent=179 // pred_check_branch
          %3158 = sbr.rel (%p3156) target = $region216
        $region215: #{_forward_impl.1} parent=179 // pred_region
          %p3159 = scmp.lt.s32.totalorder %s62, 1
          %s3160 = scalar_select %p3159, %s62, 1
          %s3161 = smul.addr %s3160, 8
          %s3162 = scalar_lea.vmem %s25, %s3161
        $region216: #{_forward_impl.1} parent=179 // pred_fallthru
          _
      $region180: #{_forward_impl.1} parent=5 // pred_fallthru
        _
    $region6: #{_forward_impl.1} parent=1 // loop_footer
      %s60 = sadd.s32 1, %s56
    $region7: #{_forward_impl.1} parent=1 // loop_footer_branch
      %55 = sbr.rel target = $region3
    $region8: #{_forward_impl.1} parent=1 // loop_exit
      _
    %3163 = vsyncpa [#allocation3], 1
    %s3164 = scalar_lea.sflag [#allocation3], 1
    %3165 = vsyncpa %s3164, 1
    %3166 = vsyncpa [#allocation6], 1
    %s3167 = scalar_lea.sflag [#allocation6], 1
    %3168 = vsyncpa %s3167, 1
    %3169 = vsyncpa [#allocation9], 1
    %3170 = vsyncpa [#allocation12], 1
    %3171 = vsyncpa [#allocation15], 1
    %3172 = vsyncpa [#allocation18], 1
    %s3173 = scalar_lea.sflag [#allocation18], 1
    %3174 = vsyncpa %s3173, 1
    %3175 = vsyncpa [#allocation21], 1
    %s3176 = scalar_lea.sflag [#allocation21], 1
    %3177 = vsyncpa %s3176, 1
    %3178 = vsyncpa [#allocation4], 1
    %s3179 = scalar_lea.sflag [#allocation4], 1
    %3180 = vsyncpa %s3179, 1
    %3181 = vsyncpa [#allocation25], 1
    %s3182 = scalar_lea.sflag [#allocation25], 1
    %3183 = vsyncpa %s3182, 1
    %3184 = vsyncpa [#allocation28], 1
    %s3185 = scalar_lea.sflag [#allocation28], 1
    %3186 = vsyncpa %s3185, 1

</llo_original>
